<compile_context>
chip_gen: v7x
topology: tpu7x:2x2x1
jax: 0.10.0
libtpu: 0.0.40
codegen_flags: <defaults>
</compile_context>

<pallas_src>
import functools
import math

import jax
import jax.numpy as jnp
from jax.experimental import pallas as pl
from jax.experimental.pallas import tpu as pltpu


# ----------------------------------------------------------------------------- helpers ----
def _bilinear_taps(in_size, out_size):
    """align_corners=True source taps/weights (UpsamplingBilinear2d semantics)."""
    taps = []
    for i in range(out_size):
        src = i * (in_size - 1) / (out_size - 1) if out_size > 1 else 0.0
        lo = int(math.floor(src))
        hi = min(lo + 1, in_size - 1)
        taps.append((lo, hi, float(src - lo)))
    return tuple(taps)


# ------------------------------------------------------------------------------ kernel ----
def _norm_downsample_kernel(x_ref, w_ref, alpha_ref, gamma_ref, beta_ref, o_ref,
                            ycol_ref, yout_ref, *,
                            H, W, Cin, Cout, Ho, Wo, col_taps, row_taps, use_norm, eps):
    # x_ref:     (1, H+2, W+2, Cin) bf16  padded NHWC input block
    # w_ref:     (9, Cin, Cout)     bf16  per-tap conv weights (tap = ky*3 + kx)
    # alpha_ref: (1,) f32 in SMEM         shared PReLU slope
    # gamma/beta:(Cout, 1) f32            LayerNorm affine params
    # o_ref:     (1, Cout, Ho*Wo) f32     lane-dense NCHW output block
    # ycol_ref:  (Wo, H, Cout) f32 VMEM   col-downsampled intermediate
    # yout_ref:  (Ho, Wo, Cout) f32 VMEM  fully downsampled intermediate (NHWC)

    # ---- 3x3 conv (stride 1, pad 1): 9 per-tap bf16 matmuls, f32 accumulation ----------
    xp = x_ref[0]                                              # (H+2, W+2, Cin) bf16
    acc = jnp.zeros((H * W, Cout), jnp.float32)
    for ky in range(3):
        for kx in range(3):
            tap = xp[ky:ky + H, kx:kx + W, :].reshape(H * W, Cin)        # bf16
            acc = acc + jnp.dot(tap, w_ref[ky * 3 + kx],
                                preferred_element_type=jnp.float32)
    y = acc.reshape(H, W, Cout)                                # (H, W, Cout) f32, NHWC

    # ---- bilinear 0.5x downsample (align_corners=True): 2-tap separable, VPU FMAs ------
    # column (W) pass: y (H, W, Cout) -> ycol (Wo, H, Cout)
    for wo, (lo, hi, t) in enumerate(col_taps):                # static Python taps
        if t == 0.0:
            col = y[:, lo, :]
        else:
            col = (1.0 - t) * y[:, lo, :] + t * y[:, hi, :]
        ycol_ref[wo] = col                                     # (H, Cout)
    yc = ycol_ref[...]                                         # (Wo, H, Cout)
    # row (H) pass: ycol (Wo, H, Cout) -> yout (Ho, Wo, Cout)
    for ho, (lo, hi, t) in enumerate(row_taps):
        if t == 0.0:
            row = yc[:, lo, :]
        else:
            row = (1.0 - t) * yc[:, lo, :] + t * yc[:, hi, :]
        yout_ref[ho] = row                                     # (Wo, Cout)

    # ---- NHWC -> NCHW with one rank-2 transpose; PReLU + channels-first LayerNorm ------
    z = jnp.transpose(yout_ref[...].reshape(Ho * Wo, Cout))    # (Cout, Ho*Wo) f32

    alpha = alpha_ref[0]
    z = jnp.where(z >= 0, z, alpha * z)                        # PReLU (shared alpha)

    if use_norm:
        u = jnp.mean(z, axis=0, keepdims=True)                 # mean over channels
        d = z - u
        s = jnp.mean(d * d, axis=0, keepdims=True)             # biased variance
        z = d * jax.lax.rsqrt(s + eps)
        z = gamma_ref[...] * z + beta_ref[...]                 # (Cout, 1) broadcasts

    o_ref[0] = z                                               # lane-dense (Cout, Ho*Wo)


# ----------------------------------------------------------------------------- wrapper ----
def norm_downsample(x_nchw, conv_w, alpha, gamma, beta,
                    *, scale=0.5, use_norm=True, eps=1e-6):
    """Pallas implementation of NormDownsample.forward. Inputs/outputs are NCHW f32."""
    N, Cin, H, W = x_nchw.shape
    Cout = conv_w.shape[0]
    Ho, Wo = int(H * scale), int(W * scale)

    row_taps = _bilinear_taps(H, Ho)
    col_taps = _bilinear_taps(W, Wo)

    # One light preprocessing pass over the (smallest) tensor: NCHW -> NHWC, bf16 cast
    # (MXU operand dtype), zero halo pad.  See TODO(synk) at the top of the file.
    x_nhwc = jnp.transpose(x_nchw, (0, 2, 3, 1)).astype(jnp.bfloat16)
    x_pad = jnp.pad(x_nhwc, ((0, 0), (1, 1), (1, 1), (0, 0)))

    # (Cout, Cin, 3, 3) -> (9, Cin, Cout); tap index j = ky*3 + kx matches the kernel.
    w_taps = jnp.transpose(conv_w.astype(jnp.bfloat16), (2, 3, 1, 0)).reshape(9, Cin, Cout)

    alpha_arr = jnp.asarray(alpha, jnp.float32).reshape(1)
    gamma_arr = jnp.asarray(gamma, jnp.float32).reshape(Cout, 1)
    beta_arr = jnp.asarray(beta, jnp.float32).reshape(Cout, 1)

    kernel = functools.partial(
        _norm_downsample_kernel, H=H, W=W, Cin=Cin, Cout=Cout, Ho=Ho, Wo=Wo,
        col_taps=col_taps, row_taps=row_taps, use_norm=use_norm, eps=eps)

    out_flat = pl.pallas_call(
        kernel,
        out_shape=jax.ShapeDtypeStruct((N, Cout, Ho * Wo), jnp.float32),
        grid=(N,),
        in_specs=[
            pl.BlockSpec((1, H + 2, W + 2, Cin), lambda b: (b, 0, 0, 0)),
            pl.BlockSpec((9, Cin, Cout), lambda b: (0, 0, 0)),
            pl.BlockSpec(memory_space=pltpu.MemorySpace.SMEM),            # PReLU alpha
            pl.BlockSpec((Cout, 1), lambda b: (0, 0)),
            pl.BlockSpec((Cout, 1), lambda b: (0, 0)),
        ],
        out_specs=pl.BlockSpec((1, Cout, Ho * Wo), lambda b: (b, 0, 0)),
        scratch_shapes=[
            pltpu.VMEM((Wo, H, Cout), jnp.float32),
            pltpu.VMEM((Ho, Wo, Cout), jnp.float32),
        ],
        compiler_params=pltpu.CompilerParams(dimension_semantics=("parallel",)),
    )(x_pad, w_taps, alpha_arr, gamma_arr, beta_arr)

    # Free metadata reshape back to NCHW.
    return out_flat.reshape(N, Cout, Ho, Wo)


# ----------------------------------------------------------------------------- reference --
def _reference(x_nchw, conv_w, alpha, gamma, beta, *, scale=0.5, use_norm=True, eps=1e-6):
    """Pure-JAX f32 reference matching the PyTorch semantics (for validation)."""
    y = jax.lax.conv_general_dilated(
        x_nchw.astype(jnp.float32), conv_w.astype(jnp.float32),
        window_strides=(1, 1), padding=((1, 1), (1, 1)),
        dimension_numbers=('NCHW', 'OIHW', 'NCHW'))
    N, C, H, W = y.shape
    Ho, Wo = int(H * scale), int(W * scale)
    rt = _bilinear_taps(H, Ho)
    ct = _bilinear_taps(W, Wo)
    y0 = jnp.array([t[0] for t in rt]); y1 = jnp.array([t[1] for t in rt])
    wy = jnp.array([t[2] for t in rt], jnp.float32).reshape(1, 1, Ho, 1)
    x0 = jnp.array([t[0] for t in ct]); x1 = jnp.array([t[1] for t in ct])
    wx = jnp.array([t[2] for t in ct], jnp.float32).reshape(1, 1, 1, Wo)
    yh = y[:, :, y0, :] * (1 - wy) + y[:, :, y1, :] * wy
    yw = yh[:, :, :, x0] * (1 - wx) + yh[:, :, :, x1] * wx
    z = jnp.where(yw >= 0, yw, alpha * yw)
    if use_norm:
        u = z.mean(axis=1, keepdims=True)
        s = ((z - u) ** 2).mean(axis=1, keepdims=True)
        z = (z - u) / jnp.sqrt(s + eps)
        z = gamma[None, :, None, None] * z + beta[None, :, None, None]
    return z


if __name__ == "__main__":
    # Small deterministic example: NormDownsample(in_ch=4, out_ch=8, scale=0.5, use_norm=True)
    N, Cin, H, W = 2, 4, 16, 16
    Cout = 8

    key = jax.random.PRNGKey(0)
    k_x, k_w = jax.random.split(key)
    x = jax.random.normal(k_x, (N, Cin, H, W), jnp.float32)
    conv_w = 0.1 * jax.random.normal(k_w, (Cout, Cin, 3, 3), jnp.float32)
    alpha = jnp.float32(0.25)                 # nn.PReLU() default init
    gamma = jnp.ones((Cout,), jnp.float32)    # LayerNorm weight
    beta = jnp.zeros((Cout,), jnp.float32)    # LayerNorm bias

    fwd = jax.jit(functools.partial(norm_downsample, scale=0.5, use_norm=True, eps=1e-6))
    out = jax.block_until_ready(fwd(x, conv_w, alpha, gamma, beta))

    ref = _reference(x, conv_w, alpha, gamma, beta, scale=0.5, use_norm=True, eps=1e-6)
    # Reference fed the same bf16-quantized conv inputs (isolates implementation error
    # from the intentional bf16 MXU input cast).
    xq = x.astype(jnp.bfloat16).astype(jnp.float32)
    wq = conv_w.astype(jnp.bfloat16).astype(jnp.float32)
    ref_q = _reference(xq, wq, alpha, gamma, beta, scale=0.5, use_norm=True, eps=1e-6)

    assert out.shape == (N, Cout, H // 2, W // 2), out.shape
    assert jnp.allclose(out, ref_q, atol=2e-3, rtol=2e-3), \
        float(jnp.max(jnp.abs(out - ref_q)))
    # Loose check vs the full-f32 reference (bf16 input quantization, amplified by LayerNorm).
    assert jnp.allclose(out, ref, atol=1e-1, rtol=1e-1), \
        float(jnp.max(jnp.abs(out - ref)))

    print("KERNEL_OK")
</pallas_src>

<mosaic_0001>
module attributes {stable_mosaic.version = 11 : i64} {
  func.func @_norm_downsample_kernel(%arg0: i32, %arg1: memref<1x18x18x4xbf16, #tpu.memory_space<vmem>>, %arg2: memref<9x4x8xbf16, #tpu.memory_space<vmem>>, %arg3: memref<1xf32, #tpu.memory_space<smem>>, %arg4: memref<8x1xf32, #tpu.memory_space<vmem>>, %arg5: memref<8x1xf32, #tpu.memory_space<vmem>>, %arg6: memref<1x8x64xf32, #tpu.memory_space<vmem>>, %arg7: memref<8x16x8xf32, #tpu.memory_space<vmem>>, %arg8: memref<8x8x8xf32, #tpu.memory_space<vmem>>) attributes {dimension_semantics = [#tpu.dimension_semantics<parallel>], iteration_bounds = array<i64: 2>, scalar_prefetch = 0 : i64, scratch_operands = 2 : i64, tpu.core_type = #tpu.core_type<tc>, window_params = [{transform_indices = @transform_0, window_bounds = array<i64: 1, 18, 18, 4>}, {pipeline_mode = #tpu.pipeline_mode<synchronous>, transform_indices = @transform_1, window_bounds = array<i64: 9, 4, 8>}, {transform_indices = @transform_2, window_bounds = array<i64: 1>}, {pipeline_mode = #tpu.pipeline_mode<synchronous>, transform_indices = @transform_3, window_bounds = array<i64: 8, 1>}, {pipeline_mode = #tpu.pipeline_mode<synchronous>, transform_indices = @transform_4, window_bounds = array<i64: 8, 1>}, {transform_indices = @transform_5, window_bounds = array<i64: 1, 8, 64>}]} {
    %c0 = arith.constant 0 : index
    %c0_0 = arith.constant 0 : index
    %c0_1 = arith.constant 0 : index
    %c0_2 = arith.constant 0 : index
    %0 = vector.load %arg1[%c0, %c0_0, %c0_1, %c0_2] : memref<1x18x18x4xbf16, #tpu.memory_space<vmem>>, vector<1x18x18x4xbf16>
    %1 = vector.shape_cast %0 : vector<1x18x18x4xbf16> to vector<18x18x4xbf16>
    %cst = arith.constant 0.000000e+00 : f32
    %2 = vector.broadcast %cst : f32 to vector<256x8xf32>
    %3 = vector.extract_strided_slice %1 {offsets = [0, 0, 0], sizes = [16, 16, 4], strides = [1, 1, 1]} : vector<18x18x4xbf16> to vector<16x16x4xbf16>
    %4 = vector.shape_cast %3 : vector<16x16x4xbf16> to vector<256x4xbf16>
    %c0_3 = arith.constant 0 : index
    %c0_4 = arith.constant 0 : index
    %c0_5 = arith.constant 0 : index
    %5 = vector.load %arg2[%c0_3, %c0_4, %c0_5] : memref<9x4x8xbf16, #tpu.memory_space<vmem>>, vector<1x4x8xbf16>
    %6 = vector.shape_cast %5 : vector<1x4x8xbf16> to vector<4x8xbf16>
    %cst_6 = arith.constant dense<0.000000e+00> : vector<256x8xf32>
    %7 = tpu.matmul %4, %6, %cst_6 {dimension_numbers = #tpu.dot_dimension_numbers<[1], [0], [0], [1], [0, 0, 1, 1], [], []>} : vector<256x4xbf16>, vector<4x8xbf16>, vector<256x8xf32> -> vector<256x8xf32>
    %8 = arith.addf %2, %7 : vector<256x8xf32>
    %9 = vector.extract_strided_slice %1 {offsets = [0, 1, 0], sizes = [16, 16, 4], strides = [1, 1, 1]} : vector<18x18x4xbf16> to vector<16x16x4xbf16>
    %10 = vector.shape_cast %9 : vector<16x16x4xbf16> to vector<256x4xbf16>
    %c1 = arith.constant 1 : index
    %c0_7 = arith.constant 0 : index
    %c0_8 = arith.constant 0 : index
    %11 = vector.load %arg2[%c1, %c0_7, %c0_8] : memref<9x4x8xbf16, #tpu.memory_space<vmem>>, vector<1x4x8xbf16>
    %12 = vector.shape_cast %11 : vector<1x4x8xbf16> to vector<4x8xbf16>
    %cst_9 = arith.constant dense<0.000000e+00> : vector<256x8xf32>
    %13 = tpu.matmul %10, %12, %cst_9 {dimension_numbers = #tpu.dot_dimension_numbers<[1], [0], [0], [1], [0, 0, 1, 1], [], []>} : vector<256x4xbf16>, vector<4x8xbf16>, vector<256x8xf32> -> vector<256x8xf32>
    %14 = arith.addf %8, %13 : vector<256x8xf32>
    %15 = vector.extract_strided_slice %1 {offsets = [0, 2, 0], sizes = [16, 16, 4], strides = [1, 1, 1]} : vector<18x18x4xbf16> to vector<16x16x4xbf16>
    %16 = vector.shape_cast %15 : vector<16x16x4xbf16> to vector<256x4xbf16>
    %c2 = arith.constant 2 : index
    %c0_10 = arith.constant 0 : index
    %c0_11 = arith.constant 0 : index
    %17 = vector.load %arg2[%c2, %c0_10, %c0_11] : memref<9x4x8xbf16, #tpu.memory_space<vmem>>, vector<1x4x8xbf16>
    %18 = vector.shape_cast %17 : vector<1x4x8xbf16> to vector<4x8xbf16>
    %cst_12 = arith.constant dense<0.000000e+00> : vector<256x8xf32>
    %19 = tpu.matmul %16, %18, %cst_12 {dimension_numbers = #tpu.dot_dimension_numbers<[1], [0], [0], [1], [0, 0, 1, 1], [], []>} : vector<256x4xbf16>, vector<4x8xbf16>, vector<256x8xf32> -> vector<256x8xf32>
    %20 = arith.addf %14, %19 : vector<256x8xf32>
    %21 = vector.extract_strided_slice %1 {offsets = [1, 0, 0], sizes = [16, 16, 4], strides = [1, 1, 1]} : vector<18x18x4xbf16> to vector<16x16x4xbf16>
    %22 = vector.shape_cast %21 : vector<16x16x4xbf16> to vector<256x4xbf16>
    %c3 = arith.constant 3 : index
    %c0_13 = arith.constant 0 : index
    %c0_14 = arith.constant 0 : index
    %23 = vector.load %arg2[%c3, %c0_13, %c0_14] : memref<9x4x8xbf16, #tpu.memory_space<vmem>>, vector<1x4x8xbf16>
    %24 = vector.shape_cast %23 : vector<1x4x8xbf16> to vector<4x8xbf16>
    %cst_15 = arith.constant dense<0.000000e+00> : vector<256x8xf32>
    %25 = tpu.matmul %22, %24, %cst_15 {dimension_numbers = #tpu.dot_dimension_numbers<[1], [0], [0], [1], [0, 0, 1, 1], [], []>} : vector<256x4xbf16>, vector<4x8xbf16>, vector<256x8xf32> -> vector<256x8xf32>
    %26 = arith.addf %20, %25 : vector<256x8xf32>
    %27 = vector.extract_strided_slice %1 {offsets = [1, 1, 0], sizes = [16, 16, 4], strides = [1, 1, 1]} : vector<18x18x4xbf16> to vector<16x16x4xbf16>
    %28 = vector.shape_cast %27 : vector<16x16x4xbf16> to vector<256x4xbf16>
    %c4 = arith.constant 4 : index
    %c0_16 = arith.constant 0 : index
    %c0_17 = arith.constant 0 : index
    %29 = vector.load %arg2[%c4, %c0_16, %c0_17] : memref<9x4x8xbf16, #tpu.memory_space<vmem>>, vector<1x4x8xbf16>
    %30 = vector.shape_cast %29 : vector<1x4x8xbf16> to vector<4x8xbf16>
    %cst_18 = arith.constant dense<0.000000e+00> : vector<256x8xf32>
    %31 = tpu.matmul %28, %30, %cst_18 {dimension_numbers = #tpu.dot_dimension_numbers<[1], [0], [0], [1], [0, 0, 1, 1], [], []>} : vector<256x4xbf16>, vector<4x8xbf16>, vector<256x8xf32> -> vector<256x8xf32>
    %32 = arith.addf %26, %31 : vector<256x8xf32>
    %33 = vector.extract_strided_slice %1 {offsets = [1, 2, 0], sizes = [16, 16, 4], strides = [1, 1, 1]} : vector<18x18x4xbf16> to vector<16x16x4xbf16>
    %34 = vector.shape_cast %33 : vector<16x16x4xbf16> to vector<256x4xbf16>
    %c5 = arith.constant 5 : index
    %c0_19 = arith.constant 0 : index
    %c0_20 = arith.constant 0 : index
    %35 = vector.load %arg2[%c5, %c0_19, %c0_20] : memref<9x4x8xbf16, #tpu.memory_space<vmem>>, vector<1x4x8xbf16>
    %36 = vector.shape_cast %35 : vector<1x4x8xbf16> to vector<4x8xbf16>
    %cst_21 = arith.constant dense<0.000000e+00> : vector<256x8xf32>
    %37 = tpu.matmul %34, %36, %cst_21 {dimension_numbers = #tpu.dot_dimension_numbers<[1], [0], [0], [1], [0, 0, 1, 1], [], []>} : vector<256x4xbf16>, vector<4x8xbf16>, vector<256x8xf32> -> vector<256x8xf32>
    %38 = arith.addf %32, %37 : vector<256x8xf32>
    %39 = vector.extract_strided_slice %1 {offsets = [2, 0, 0], sizes = [16, 16, 4], strides = [1, 1, 1]} : vector<18x18x4xbf16> to vector<16x16x4xbf16>
    %40 = vector.shape_cast %39 : vector<16x16x4xbf16> to vector<256x4xbf16>
    %c6 = arith.constant 6 : index
    %c0_22 = arith.constant 0 : index
    %c0_23 = arith.constant 0 : index
    %41 = vector.load %arg2[%c6, %c0_22, %c0_23] : memref<9x4x8xbf16, #tpu.memory_space<vmem>>, vector<1x4x8xbf16>
    %42 = vector.shape_cast %41 : vector<1x4x8xbf16> to vector<4x8xbf16>
    %cst_24 = arith.constant dense<0.000000e+00> : vector<256x8xf32>
    %43 = tpu.matmul %40, %42, %cst_24 {dimension_numbers = #tpu.dot_dimension_numbers<[1], [0], [0], [1], [0, 0, 1, 1], [], []>} : vector<256x4xbf16>, vector<4x8xbf16>, vector<256x8xf32> -> vector<256x8xf32>
    %44 = arith.addf %38, %43 : vector<256x8xf32>
    %45 = vector.extract_strided_slice %1 {offsets = [2, 1, 0], sizes = [16, 16, 4], strides = [1, 1, 1]} : vector<18x18x4xbf16> to vector<16x16x4xbf16>
    %46 = vector.shape_cast %45 : vector<16x16x4xbf16> to vector<256x4xbf16>
    %c7 = arith.constant 7 : index
    %c0_25 = arith.constant 0 : index
    %c0_26 = arith.constant 0 : index
    %47 = vector.load %arg2[%c7, %c0_25, %c0_26] : memref<9x4x8xbf16, #tpu.memory_space<vmem>>, vector<1x4x8xbf16>
    %48 = vector.shape_cast %47 : vector<1x4x8xbf16> to vector<4x8xbf16>
    %cst_27 = arith.constant dense<0.000000e+00> : vector<256x8xf32>
    %49 = tpu.matmul %46, %48, %cst_27 {dimension_numbers = #tpu.dot_dimension_numbers<[1], [0], [0], [1], [0, 0, 1, 1], [], []>} : vector<256x4xbf16>, vector<4x8xbf16>, vector<256x8xf32> -> vector<256x8xf32>
    %50 = arith.addf %44, %49 : vector<256x8xf32>
    %51 = vector.extract_strided_slice %1 {offsets = [2, 2, 0], sizes = [16, 16, 4], strides = [1, 1, 1]} : vector<18x18x4xbf16> to vector<16x16x4xbf16>
    %52 = vector.shape_cast %51 : vector<16x16x4xbf16> to vector<256x4xbf16>
    %c8 = arith.constant 8 : index
    %c0_28 = arith.constant 0 : index
    %c0_29 = arith.constant 0 : index
    %53 = vector.load %arg2[%c8, %c0_28, %c0_29] : memref<9x4x8xbf16, #tpu.memory_space<vmem>>, vector<1x4x8xbf16>
    %54 = vector.shape_cast %53 : vector<1x4x8xbf16> to vector<4x8xbf16>
    %cst_30 = arith.constant dense<0.000000e+00> : vector<256x8xf32>
    %55 = tpu.matmul %52, %54, %cst_30 {dimension_numbers = #tpu.dot_dimension_numbers<[1], [0], [0], [1], [0, 0, 1, 1], [], []>} : vector<256x4xbf16>, vector<4x8xbf16>, vector<256x8xf32> -> vector<256x8xf32>
    %56 = arith.addf %50, %55 : vector<256x8xf32>
    %57 = vector.shape_cast %56 : vector<256x8xf32> to vector<16x16x8xf32>
    %58 = vector.extract_strided_slice %57 {offsets = [0, 0, 0], sizes = [16, 1, 8], strides = [1, 1, 1]} : vector<16x16x8xf32> to vector<16x1x8xf32>
    %59 = vector.shape_cast %58 : vector<16x1x8xf32> to vector<16x8xf32>
    %c0_31 = arith.constant 0 : index
    %c0_32 = arith.constant 0 : index
    %c0_33 = arith.constant 0 : index
    %60 = vector.load %arg7[%c0_31, %c0_32, %c0_33] : memref<8x16x8xf32, #tpu.memory_space<vmem>>, vector<1x16x8xf32>
    %61 = vector.shape_cast %60 : vector<1x16x8xf32> to vector<16x8xf32>
    %62 = vector.shape_cast %59 : vector<16x8xf32> to vector<1x16x8xf32>
    tpu.vector_store %arg7[%c0_31, %c0_32, %c0_33], %62 {strides = array<i32>} : memref<8x16x8xf32, #tpu.memory_space<vmem>>, vector<1x16x8xf32>,
    %63 = vector.extract_strided_slice %57 {offsets = [0, 2, 0], sizes = [16, 1, 8], strides = [1, 1, 1]} : vector<16x16x8xf32> to vector<16x1x8xf32>
    %64 = vector.shape_cast %63 : vector<16x1x8xf32> to vector<16x8xf32>
    %cst_34 = arith.constant 0.857142865 : f32
    %65 = vector.broadcast %cst_34 : f32 to vector<16x8xf32>
    %66 = arith.mulf %65, %64 : vector<16x8xf32>
    %67 = vector.extract_strided_slice %57 {offsets = [0, 3, 0], sizes = [16, 1, 8], strides = [1, 1, 1]} : vector<16x16x8xf32> to vector<16x1x8xf32>
    %68 = vector.shape_cast %67 : vector<16x1x8xf32> to vector<16x8xf32>
    %cst_35 = arith.constant 0.142857149 : f32
    %69 = vector.broadcast %cst_35 : f32 to vector<16x8xf32>
    %70 = arith.mulf %69, %68 : vector<16x8xf32>
    %71 = arith.addf %66, %70 : vector<16x8xf32>
    %c1_36 = arith.constant 1 : index
    %c0_37 = arith.constant 0 : index
    %c0_38 = arith.constant 0 : index
    %72 = vector.load %arg7[%c1_36, %c0_37, %c0_38] : memref<8x16x8xf32, #tpu.memory_space<vmem>>, vector<1x16x8xf32>
    %73 = vector.shape_cast %72 : vector<1x16x8xf32> to vector<16x8xf32>
    %74 = vector.shape_cast %71 : vector<16x8xf32> to vector<1x16x8xf32>
    tpu.vector_store %arg7[%c1_36, %c0_37, %c0_38], %74 {strides = array<i32>} : memref<8x16x8xf32, #tpu.memory_space<vmem>>, vector<1x16x8xf32>,
    %75 = vector.extract_strided_slice %57 {offsets = [0, 4, 0], sizes = [16, 1, 8], strides = [1, 1, 1]} : vector<16x16x8xf32> to vector<16x1x8xf32>
    %76 = vector.shape_cast %75 : vector<16x1x8xf32> to vector<16x8xf32>
    %cst_39 = arith.constant 0.714285731 : f32
    %77 = vector.broadcast %cst_39 : f32 to vector<16x8xf32>
    %78 = arith.mulf %77, %76 : vector<16x8xf32>
    %79 = vector.extract_strided_slice %57 {offsets = [0, 5, 0], sizes = [16, 1, 8], strides = [1, 1, 1]} : vector<16x16x8xf32> to vector<16x1x8xf32>
    %80 = vector.shape_cast %79 : vector<16x1x8xf32> to vector<16x8xf32>
    %cst_40 = arith.constant 0.285714298 : f32
    %81 = vector.broadcast %cst_40 : f32 to vector<16x8xf32>
    %82 = arith.mulf %81, %80 : vector<16x8xf32>
    %83 = arith.addf %78, %82 : vector<16x8xf32>
    %c2_41 = arith.constant 2 : index
    %c0_42 = arith.constant 0 : index
    %c0_43 = arith.constant 0 : index
    %84 = vector.load %arg7[%c2_41, %c0_42, %c0_43] : memref<8x16x8xf32, #tpu.memory_space<vmem>>, vector<1x16x8xf32>
    %85 = vector.shape_cast %84 : vector<1x16x8xf32> to vector<16x8xf32>
    %86 = vector.shape_cast %83 : vector<16x8xf32> to vector<1x16x8xf32>
    tpu.vector_store %arg7[%c2_41, %c0_42, %c0_43], %86 {strides = array<i32>} : memref<8x16x8xf32, #tpu.memory_space<vmem>>, vector<1x16x8xf32>,
    %87 = vector.extract_strided_slice %57 {offsets = [0, 6, 0], sizes = [16, 1, 8], strides = [1, 1, 1]} : vector<16x16x8xf32> to vector<16x1x8xf32>
    %88 = vector.shape_cast %87 : vector<16x1x8xf32> to vector<16x8xf32>
    %cst_44 = arith.constant 0.571428597 : f32
    %89 = vector.broadcast %cst_44 : f32 to vector<16x8xf32>
    %90 = arith.mulf %89, %88 : vector<16x8xf32>
    %91 = vector.extract_strided_slice %57 {offsets = [0, 7, 0], sizes = [16, 1, 8], strides = [1, 1, 1]} : vector<16x16x8xf32> to vector<16x1x8xf32>
    %92 = vector.shape_cast %91 : vector<16x1x8xf32> to vector<16x8xf32>
    %cst_45 = arith.constant 0.428571433 : f32
    %93 = vector.broadcast %cst_45 : f32 to vector<16x8xf32>
    %94 = arith.mulf %93, %92 : vector<16x8xf32>
    %95 = arith.addf %90, %94 : vector<16x8xf32>
    %c3_46 = arith.constant 3 : index
    %c0_47 = arith.constant 0 : index
    %c0_48 = arith.constant 0 : index
    %96 = vector.load %arg7[%c3_46, %c0_47, %c0_48] : memref<8x16x8xf32, #tpu.memory_space<vmem>>, vector<1x16x8xf32>
    %97 = vector.shape_cast %96 : vector<1x16x8xf32> to vector<16x8xf32>
    %98 = vector.shape_cast %95 : vector<16x8xf32> to vector<1x16x8xf32>
    tpu.vector_store %arg7[%c3_46, %c0_47, %c0_48], %98 {strides = array<i32>} : memref<8x16x8xf32, #tpu.memory_space<vmem>>, vector<1x16x8xf32>,
    %99 = vector.extract_strided_slice %57 {offsets = [0, 8, 0], sizes = [16, 1, 8], strides = [1, 1, 1]} : vector<16x16x8xf32> to vector<16x1x8xf32>
    %100 = vector.shape_cast %99 : vector<16x1x8xf32> to vector<16x8xf32>
    %cst_49 = arith.constant 0.428571433 : f32
    %101 = vector.broadcast %cst_49 : f32 to vector<16x8xf32>
    %102 = arith.mulf %101, %100 : vector<16x8xf32>
    %103 = vector.extract_strided_slice %57 {offsets = [0, 9, 0], sizes = [16, 1, 8], strides = [1, 1, 1]} : vector<16x16x8xf32> to vector<16x1x8xf32>
    %104 = vector.shape_cast %103 : vector<16x1x8xf32> to vector<16x8xf32>
    %cst_50 = arith.constant 0.571428597 : f32
    %105 = vector.broadcast %cst_50 : f32 to vector<16x8xf32>
    %106 = arith.mulf %105, %104 : vector<16x8xf32>
    %107 = arith.addf %102, %106 : vector<16x8xf32>
    %c4_51 = arith.constant 4 : index
    %c0_52 = arith.constant 0 : index
    %c0_53 = arith.constant 0 : index
    %108 = vector.load %arg7[%c4_51, %c0_52, %c0_53] : memref<8x16x8xf32, #tpu.memory_space<vmem>>, vector<1x16x8xf32>
    %109 = vector.shape_cast %108 : vector<1x16x8xf32> to vector<16x8xf32>
    %110 = vector.shape_cast %107 : vector<16x8xf32> to vector<1x16x8xf32>
    tpu.vector_store %arg7[%c4_51, %c0_52, %c0_53], %110 {strides = array<i32>} : memref<8x16x8xf32, #tpu.memory_space<vmem>>, vector<1x16x8xf32>,
    %111 = vector.extract_strided_slice %57 {offsets = [0, 10, 0], sizes = [16, 1, 8], strides = [1, 1, 1]} : vector<16x16x8xf32> to vector<16x1x8xf32>
    %112 = vector.shape_cast %111 : vector<16x1x8xf32> to vector<16x8xf32>
    %cst_54 = arith.constant 0.285714298 : f32
    %113 = vector.broadcast %cst_54 : f32 to vector<16x8xf32>
    %114 = arith.mulf %113, %112 : vector<16x8xf32>
    %115 = vector.extract_strided_slice %57 {offsets = [0, 11, 0], sizes = [16, 1, 8], strides = [1, 1, 1]} : vector<16x16x8xf32> to vector<16x1x8xf32>
    %116 = vector.shape_cast %115 : vector<16x1x8xf32> to vector<16x8xf32>
    %cst_55 = arith.constant 0.714285731 : f32
    %117 = vector.broadcast %cst_55 : f32 to vector<16x8xf32>
    %118 = arith.mulf %117, %116 : vector<16x8xf32>
    %119 = arith.addf %114, %118 : vector<16x8xf32>
    %c5_56 = arith.constant 5 : index
    %c0_57 = arith.constant 0 : index
    %c0_58 = arith.constant 0 : index
    %120 = vector.load %arg7[%c5_56, %c0_57, %c0_58] : memref<8x16x8xf32, #tpu.memory_space<vmem>>, vector<1x16x8xf32>
    %121 = vector.shape_cast %120 : vector<1x16x8xf32> to vector<16x8xf32>
    %122 = vector.shape_cast %119 : vector<16x8xf32> to vector<1x16x8xf32>
    tpu.vector_store %arg7[%c5_56, %c0_57, %c0_58], %122 {strides = array<i32>} : memref<8x16x8xf32, #tpu.memory_space<vmem>>, vector<1x16x8xf32>,
    %123 = vector.extract_strided_slice %57 {offsets = [0, 12, 0], sizes = [16, 1, 8], strides = [1, 1, 1]} : vector<16x16x8xf32> to vector<16x1x8xf32>
    %124 = vector.shape_cast %123 : vector<16x1x8xf32> to vector<16x8xf32>
    %cst_59 = arith.constant 0.142857149 : f32
    %125 = vector.broadcast %cst_59 : f32 to vector<16x8xf32>
    %126 = arith.mulf %125, %124 : vector<16x8xf32>
    %127 = vector.extract_strided_slice %57 {offsets = [0, 13, 0], sizes = [16, 1, 8], strides = [1, 1, 1]} : vector<16x16x8xf32> to vector<16x1x8xf32>
    %128 = vector.shape_cast %127 : vector<16x1x8xf32> to vector<16x8xf32>
    %cst_60 = arith.constant 0.857142865 : f32
    %129 = vector.broadcast %cst_60 : f32 to vector<16x8xf32>
    %130 = arith.mulf %129, %128 : vector<16x8xf32>
    %131 = arith.addf %126, %130 : vector<16x8xf32>
    %c6_61 = arith.constant 6 : index
    %c0_62 = arith.constant 0 : index
    %c0_63 = arith.constant 0 : index
    %132 = vector.load %arg7[%c6_61, %c0_62, %c0_63] : memref<8x16x8xf32, #tpu.memory_space<vmem>>, vector<1x16x8xf32>
    %133 = vector.shape_cast %132 : vector<1x16x8xf32> to vector<16x8xf32>
    %134 = vector.shape_cast %131 : vector<16x8xf32> to vector<1x16x8xf32>
    tpu.vector_store %arg7[%c6_61, %c0_62, %c0_63], %134 {strides = array<i32>} : memref<8x16x8xf32, #tpu.memory_space<vmem>>, vector<1x16x8xf32>,
    %135 = vector.extract_strided_slice %57 {offsets = [0, 15, 0], sizes = [16, 1, 8], strides = [1, 1, 1]} : vector<16x16x8xf32> to vector<16x1x8xf32>
    %136 = vector.shape_cast %135 : vector<16x1x8xf32> to vector<16x8xf32>
    %c7_64 = arith.constant 7 : index
    %c0_65 = arith.constant 0 : index
    %c0_66 = arith.constant 0 : index
    %137 = vector.load %arg7[%c7_64, %c0_65, %c0_66] : memref<8x16x8xf32, #tpu.memory_space<vmem>>, vector<1x16x8xf32>
    %138 = vector.shape_cast %137 : vector<1x16x8xf32> to vector<16x8xf32>
    %139 = vector.shape_cast %136 : vector<16x8xf32> to vector<1x16x8xf32>
    tpu.vector_store %arg7[%c7_64, %c0_65, %c0_66], %139 {strides = array<i32>} : memref<8x16x8xf32, #tpu.memory_space<vmem>>, vector<1x16x8xf32>,
    %c0_67 = arith.constant 0 : index
    %c0_68 = arith.constant 0 : index
    %c0_69 = arith.constant 0 : index
    %140 = vector.load %arg7[%c0_67, %c0_68, %c0_69] : memref<8x16x8xf32, #tpu.memory_space<vmem>>, vector<8x16x8xf32>
    %141 = vector.extract_strided_slice %140 {offsets = [0, 0, 0], sizes = [8, 1, 8], strides = [1, 1, 1]} : vector<8x16x8xf32> to vector<8x1x8xf32>
    %142 = vector.shape_cast %141 : vector<8x1x8xf32> to vector<8x8xf32>
    %c0_70 = arith.constant 0 : index
    %c0_71 = arith.constant 0 : index
    %c0_72 = arith.constant 0 : index
    %143 = vector.load %arg8[%c0_70, %c0_71, %c0_72] : memref<8x8x8xf32, #tpu.memory_space<vmem>>, vector<1x8x8xf32>
    %144 = vector.shape_cast %143 : vector<1x8x8xf32> to vector<8x8xf32>
    %145 = vector.shape_cast %142 : vector<8x8xf32> to vector<1x8x8xf32>
    tpu.vector_store %arg8[%c0_70, %c0_71, %c0_72], %145 {strides = array<i32>} : memref<8x8x8xf32, #tpu.memory_space<vmem>>, vector<1x8x8xf32>,
    %146 = vector.extract_strided_slice %140 {offsets = [0, 2, 0], sizes = [8, 1, 8], strides = [1, 1, 1]} : vector<8x16x8xf32> to vector<8x1x8xf32>
    %147 = vector.shape_cast %146 : vector<8x1x8xf32> to vector<8x8xf32>
    %cst_73 = arith.constant 0.857142865 : f32
    %148 = vector.broadcast %cst_73 : f32 to vector<8x8xf32>
    %149 = arith.mulf %148, %147 : vector<8x8xf32>
    %150 = vector.extract_strided_slice %140 {offsets = [0, 3, 0], sizes = [8, 1, 8], strides = [1, 1, 1]} : vector<8x16x8xf32> to vector<8x1x8xf32>
    %151 = vector.shape_cast %150 : vector<8x1x8xf32> to vector<8x8xf32>
    %cst_74 = arith.constant 0.142857149 : f32
    %152 = vector.broadcast %cst_74 : f32 to vector<8x8xf32>
    %153 = arith.mulf %152, %151 : vector<8x8xf32>
    %154 = arith.addf %149, %153 : vector<8x8xf32>
    %c1_75 = arith.constant 1 : index
    %c0_76 = arith.constant 0 : index
    %c0_77 = arith.constant 0 : index
    %155 = vector.load %arg8[%c1_75, %c0_76, %c0_77] : memref<8x8x8xf32, #tpu.memory_space<vmem>>, vector<1x8x8xf32>
    %156 = vector.shape_cast %155 : vector<1x8x8xf32> to vector<8x8xf32>
    %157 = vector.shape_cast %154 : vector<8x8xf32> to vector<1x8x8xf32>
    tpu.vector_store %arg8[%c1_75, %c0_76, %c0_77], %157 {strides = array<i32>} : memref<8x8x8xf32, #tpu.memory_space<vmem>>, vector<1x8x8xf32>,
    %158 = vector.extract_strided_slice %140 {offsets = [0, 4, 0], sizes = [8, 1, 8], strides = [1, 1, 1]} : vector<8x16x8xf32> to vector<8x1x8xf32>
    %159 = vector.shape_cast %158 : vector<8x1x8xf32> to vector<8x8xf32>
    %cst_78 = arith.constant 0.714285731 : f32
    %160 = vector.broadcast %cst_78 : f32 to vector<8x8xf32>
    %161 = arith.mulf %160, %159 : vector<8x8xf32>
    %162 = vector.extract_strided_slice %140 {offsets = [0, 5, 0], sizes = [8, 1, 8], strides = [1, 1, 1]} : vector<8x16x8xf32> to vector<8x1x8xf32>
    %163 = vector.shape_cast %162 : vector<8x1x8xf32> to vector<8x8xf32>
    %cst_79 = arith.constant 0.285714298 : f32
    %164 = vector.broadcast %cst_79 : f32 to vector<8x8xf32>
    %165 = arith.mulf %164, %163 : vector<8x8xf32>
    %166 = arith.addf %161, %165 : vector<8x8xf32>
    %c2_80 = arith.constant 2 : index
    %c0_81 = arith.constant 0 : index
    %c0_82 = arith.constant 0 : index
    %167 = vector.load %arg8[%c2_80, %c0_81, %c0_82] : memref<8x8x8xf32, #tpu.memory_space<vmem>>, vector<1x8x8xf32>
    %168 = vector.shape_cast %167 : vector<1x8x8xf32> to vector<8x8xf32>
    %169 = vector.shape_cast %166 : vector<8x8xf32> to vector<1x8x8xf32>
    tpu.vector_store %arg8[%c2_80, %c0_81, %c0_82], %169 {strides = array<i32>} : memref<8x8x8xf32, #tpu.memory_space<vmem>>, vector<1x8x8xf32>,
    %170 = vector.extract_strided_slice %140 {offsets = [0, 6, 0], sizes = [8, 1, 8], strides = [1, 1, 1]} : vector<8x16x8xf32> to vector<8x1x8xf32>
    %171 = vector.shape_cast %170 : vector<8x1x8xf32> to vector<8x8xf32>
    %cst_83 = arith.constant 0.571428597 : f32
    %172 = vector.broadcast %cst_83 : f32 to vector<8x8xf32>
    %173 = arith.mulf %172, %171 : vector<8x8xf32>
    %174 = vector.extract_strided_slice %140 {offsets = [0, 7, 0], sizes = [8, 1, 8], strides = [1, 1, 1]} : vector<8x16x8xf32> to vector<8x1x8xf32>
    %175 = vector.shape_cast %174 : vector<8x1x8xf32> to vector<8x8xf32>
    %cst_84 = arith.constant 0.428571433 : f32
    %176 = vector.broadcast %cst_84 : f32 to vector<8x8xf32>
    %177 = arith.mulf %176, %175 : vector<8x8xf32>
    %178 = arith.addf %173, %177 : vector<8x8xf32>
    %c3_85 = arith.constant 3 : index
    %c0_86 = arith.constant 0 : index
    %c0_87 = arith.constant 0 : index
    %179 = vector.load %arg8[%c3_85, %c0_86, %c0_87] : memref<8x8x8xf32, #tpu.memory_space<vmem>>, vector<1x8x8xf32>
    %180 = vector.shape_cast %179 : vector<1x8x8xf32> to vector<8x8xf32>
    %181 = vector.shape_cast %178 : vector<8x8xf32> to vector<1x8x8xf32>
    tpu.vector_store %arg8[%c3_85, %c0_86, %c0_87], %181 {strides = array<i32>} : memref<8x8x8xf32, #tpu.memory_space<vmem>>, vector<1x8x8xf32>,
    %182 = vector.extract_strided_slice %140 {offsets = [0, 8, 0], sizes = [8, 1, 8], strides = [1, 1, 1]} : vector<8x16x8xf32> to vector<8x1x8xf32>
    %183 = vector.shape_cast %182 : vector<8x1x8xf32> to vector<8x8xf32>
    %cst_88 = arith.constant 0.428571433 : f32
    %184 = vector.broadcast %cst_88 : f32 to vector<8x8xf32>
    %185 = arith.mulf %184, %183 : vector<8x8xf32>
    %186 = vector.extract_strided_slice %140 {offsets = [0, 9, 0], sizes = [8, 1, 8], strides = [1, 1, 1]} : vector<8x16x8xf32> to vector<8x1x8xf32>
    %187 = vector.shape_cast %186 : vector<8x1x8xf32> to vector<8x8xf32>
    %cst_89 = arith.constant 0.571428597 : f32
    %188 = vector.broadcast %cst_89 : f32 to vector<8x8xf32>
    %189 = arith.mulf %188, %187 : vector<8x8xf32>
    %190 = arith.addf %185, %189 : vector<8x8xf32>
    %c4_90 = arith.constant 4 : index
    %c0_91 = arith.constant 0 : index
    %c0_92 = arith.constant 0 : index
    %191 = vector.load %arg8[%c4_90, %c0_91, %c0_92] : memref<8x8x8xf32, #tpu.memory_space<vmem>>, vector<1x8x8xf32>
    %192 = vector.shape_cast %191 : vector<1x8x8xf32> to vector<8x8xf32>
    %193 = vector.shape_cast %190 : vector<8x8xf32> to vector<1x8x8xf32>
    tpu.vector_store %arg8[%c4_90, %c0_91, %c0_92], %193 {strides = array<i32>} : memref<8x8x8xf32, #tpu.memory_space<vmem>>, vector<1x8x8xf32>,
    %194 = vector.extract_strided_slice %140 {offsets = [0, 10, 0], sizes = [8, 1, 8], strides = [1, 1, 1]} : vector<8x16x8xf32> to vector<8x1x8xf32>
    %195 = vector.shape_cast %194 : vector<8x1x8xf32> to vector<8x8xf32>
    %cst_93 = arith.constant 0.285714298 : f32
    %196 = vector.broadcast %cst_93 : f32 to vector<8x8xf32>
    %197 = arith.mulf %196, %195 : vector<8x8xf32>
    %198 = vector.extract_strided_slice %140 {offsets = [0, 11, 0], sizes = [8, 1, 8], strides = [1, 1, 1]} : vector<8x16x8xf32> to vector<8x1x8xf32>
    %199 = vector.shape_cast %198 : vector<8x1x8xf32> to vector<8x8xf32>
    %cst_94 = arith.constant 0.714285731 : f32
    %200 = vector.broadcast %cst_94 : f32 to vector<8x8xf32>
    %201 = arith.mulf %200, %199 : vector<8x8xf32>
    %202 = arith.addf %197, %201 : vector<8x8xf32>
    %c5_95 = arith.constant 5 : index
    %c0_96 = arith.constant 0 : index
    %c0_97 = arith.constant 0 : index
    %203 = vector.load %arg8[%c5_95, %c0_96, %c0_97] : memref<8x8x8xf32, #tpu.memory_space<vmem>>, vector<1x8x8xf32>
    %204 = vector.shape_cast %203 : vector<1x8x8xf32> to vector<8x8xf32>
    %205 = vector.shape_cast %202 : vector<8x8xf32> to vector<1x8x8xf32>
    tpu.vector_store %arg8[%c5_95, %c0_96, %c0_97], %205 {strides = array<i32>} : memref<8x8x8xf32, #tpu.memory_space<vmem>>, vector<1x8x8xf32>,
    %206 = vector.extract_strided_slice %140 {offsets = [0, 12, 0], sizes = [8, 1, 8], strides = [1, 1, 1]} : vector<8x16x8xf32> to vector<8x1x8xf32>
    %207 = vector.shape_cast %206 : vector<8x1x8xf32> to vector<8x8xf32>
    %cst_98 = arith.constant 0.142857149 : f32
    %208 = vector.broadcast %cst_98 : f32 to vector<8x8xf32>
    %209 = arith.mulf %208, %207 : vector<8x8xf32>
    %210 = vector.extract_strided_slice %140 {offsets = [0, 13, 0], sizes = [8, 1, 8], strides = [1, 1, 1]} : vector<8x16x8xf32> to vector<8x1x8xf32>
    %211 = vector.shape_cast %210 : vector<8x1x8xf32> to vector<8x8xf32>
    %cst_99 = arith.constant 0.857142865 : f32
    %212 = vector.broadcast %cst_99 : f32 to vector<8x8xf32>
    %213 = arith.mulf %212, %211 : vector<8x8xf32>
    %214 = arith.addf %209, %213 : vector<8x8xf32>
    %c6_100 = arith.constant 6 : index
    %c0_101 = arith.constant 0 : index
    %c0_102 = arith.constant 0 : index
    %215 = vector.load %arg8[%c6_100, %c0_101, %c0_102] : memref<8x8x8xf32, #tpu.memory_space<vmem>>, vector<1x8x8xf32>
    %216 = vector.shape_cast %215 : vector<1x8x8xf32> to vector<8x8xf32>
    %217 = vector.shape_cast %214 : vector<8x8xf32> to vector<1x8x8xf32>
    tpu.vector_store %arg8[%c6_100, %c0_101, %c0_102], %217 {strides = array<i32>} : memref<8x8x8xf32, #tpu.memory_space<vmem>>, vector<1x8x8xf32>,
    %218 = vector.extract_strided_slice %140 {offsets = [0, 15, 0], sizes = [8, 1, 8], strides = [1, 1, 1]} : vector<8x16x8xf32> to vector<8x1x8xf32>
    %219 = vector.shape_cast %218 : vector<8x1x8xf32> to vector<8x8xf32>
    %c7_103 = arith.constant 7 : index
    %c0_104 = arith.constant 0 : index
    %c0_105 = arith.constant 0 : index
    %220 = vector.load %arg8[%c7_103, %c0_104, %c0_105] : memref<8x8x8xf32, #tpu.memory_space<vmem>>, vector<1x8x8xf32>
    %221 = vector.shape_cast %220 : vector<1x8x8xf32> to vector<8x8xf32>
    %222 = vector.shape_cast %219 : vector<8x8xf32> to vector<1x8x8xf32>
    tpu.vector_store %arg8[%c7_103, %c0_104, %c0_105], %222 {strides = array<i32>} : memref<8x8x8xf32, #tpu.memory_space<vmem>>, vector<1x8x8xf32>,
    %c0_106 = arith.constant 0 : index
    %c0_107 = arith.constant 0 : index
    %c0_108 = arith.constant 0 : index
    %223 = vector.load %arg8[%c0_106, %c0_107, %c0_108] : memref<8x8x8xf32, #tpu.memory_space<vmem>>, vector<8x8x8xf32>
    %224 = vector.shape_cast %223 : vector<8x8x8xf32> to vector<64x8xf32>
    %225 = tpu.transpose %224, [1, 0] : vector<64x8xf32> -> vector<8x64xf32>
    %c0_109 = arith.constant 0 : index
    %226 = memref.load %arg3[%c0_109] : memref<1xf32, #tpu.memory_space<smem>>
    %cst_110 = arith.constant 0.000000e+00 : f32
    %227 = vector.broadcast %cst_110 : f32 to vector<8x64xf32>
    %228 = arith.cmpf oge, %225, %227 : vector<8x64xf32>
    %229 = vector.broadcast %226 : f32 to vector<8x64xf32>
    %230 = arith.mulf %229, %225 : vector<8x64xf32>
    %231 = arith.select %228, %225, %230 : vector<8x64xi1>, vector<8x64xf32>
    %cst_111 = arith.constant dense<0.000000e+00> : vector<64xf32>
    %232 = vector.multi_reduction <add>, %231, %cst_111 [0] : vector<8x64xf32> to vector<64xf32>
    %233 = vector.shape_cast %232 : vector<64xf32> to vector<1x64xf32>
    %cst_112 = arith.constant 8.000000e+00 : f32
    %234 = vector.broadcast %cst_112 : f32 to vector<1x64xf32>
    %235 = arith.divf %233, %234 : vector<1x64xf32>
    %236 = vector.broadcast %235 : vector<1x64xf32> to vector<8x64xf32>
    %237 = arith.subf %231, %236 : vector<8x64xf32>
    %238 = arith.mulf %237, %237 : vector<8x64xf32>
    %cst_113 = arith.constant dense<0.000000e+00> : vector<64xf32>
    %239 = vector.multi_reduction <add>, %238, %cst_113 [0] : vector<8x64xf32> to vector<64xf32>
    %240 = vector.shape_cast %239 : vector<64xf32> to vector<1x64xf32>
    %cst_114 = arith.constant 8.000000e+00 : f32
    %241 = vector.broadcast %cst_114 : f32 to vector<1x64xf32>
    %242 = arith.divf %240, %241 : vector<1x64xf32>
    %cst_115 = arith.constant 9.99999997E-7 : f32
    %243 = vector.broadcast %cst_115 : f32 to vector<1x64xf32>
    %244 = arith.addf %242, %243 : vector<1x64xf32>
    %245 = math.rsqrt %244 : vector<1x64xf32>
    %246 = vector.broadcast %245 : vector<1x64xf32> to vector<8x64xf32>
    %247 = arith.mulf %237, %246 : vector<8x64xf32>
    %c0_116 = arith.constant 0 : index
    %c0_117 = arith.constant 0 : index
    %248 = vector.load %arg4[%c0_116, %c0_117] : memref<8x1xf32, #tpu.memory_space<vmem>>, vector<8x1xf32>
    %249 = vector.broadcast %248 : vector<8x1xf32> to vector<8x64xf32>
    %250 = arith.mulf %249, %247 : vector<8x64xf32>
    %c0_118 = arith.constant 0 : index
    %c0_119 = arith.constant 0 : index
    %251 = vector.load %arg5[%c0_118, %c0_119] : memref<8x1xf32, #tpu.memory_space<vmem>>, vector<8x1xf32>
    %252 = vector.broadcast %251 : vector<8x1xf32> to vector<8x64xf32>
    %253 = arith.addf %250, %252 : vector<8x64xf32>
    %c0_120 = arith.constant 0 : index
    %c0_121 = arith.constant 0 : index
    %c0_122 = arith.constant 0 : index
    %254 = vector.load %arg6[%c0_120, %c0_121, %c0_122] : memref<1x8x64xf32, #tpu.memory_space<vmem>>, vector<1x8x64xf32>
    %255 = vector.shape_cast %254 : vector<1x8x64xf32> to vector<8x64xf32>
    %256 = vector.shape_cast %253 : vector<8x64xf32> to vector<1x8x64xf32>
    tpu.vector_store %arg6[%c0_120, %c0_121, %c0_122], %256 {strides = array<i32>} : memref<1x8x64xf32, #tpu.memory_space<vmem>>, vector<1x8x64xf32>,
    return
  }
  func.func @transform_0(%arg0: i32) -> (i32, i32, i32, i32) {
    %c0_i32 = arith.constant 0 : i32
    %c0_i32_0 = arith.constant 0 : i32
    %c0_i32_1 = arith.constant 0 : i32
    %c0_i32_2 = arith.constant 0 : i32
    return %arg0, %c0_i32, %c0_i32_0, %c0_i32_1 : i32, i32, i32, i32
  }
  func.func @transform_1(%arg0: i32) -> (i32, i32, i32) {
    %c0_i32 = arith.constant 0 : i32
    %c0_i32_0 = arith.constant 0 : i32
    %c0_i32_1 = arith.constant 0 : i32
    %c0_i32_2 = arith.constant 0 : i32
    return %c0_i32, %c0_i32_0, %c0_i32_1 : i32, i32, i32
  }
  func.func @transform_2(%arg0: i32) -> i32 {
    %c0_i32 = arith.constant 0 : i32
    %c0_i32_0 = arith.constant 0 : i32
    return %c0_i32 : i32
  }
  func.func @transform_3(%arg0: i32) -> (i32, i32) {
    %c0_i32 = arith.constant 0 : i32
    %c0_i32_0 = arith.constant 0 : i32
    %c0_i32_1 = arith.constant 0 : i32
    return %c0_i32, %c0_i32_0 : i32, i32
  }
  func.func @transform_4(%arg0: i32) -> (i32, i32) {
    %c0_i32 = arith.constant 0 : i32
    %c0_i32_0 = arith.constant 0 : i32
    %c0_i32_1 = arith.constant 0 : i32
    return %c0_i32, %c0_i32_0 : i32, i32
  }
  func.func @transform_5(%arg0: i32) -> (i32, i32, i32) {
    %c0_i32 = arith.constant 0 : i32
    %c0_i32_0 = arith.constant 0 : i32
    %c0_i32_1 = arith.constant 0 : i32
    return %arg0, %c0_i32, %c0_i32_0 : i32, i32, i32
  }
}

</mosaic_0001>

<llo_original>
// kernel: norm_downsample.1
$region0: #{norm_downsample.1}
  #allocation0 [shape = 'u32[]', space=smem, size = 0x4, offset = 0x4, fixed_abs, tag = 'smem constant byte address 0x4 - core index']
  #allocation1 [shape = 'u32[144,128]{1,0:T(1,128)}', space=vmem, size = 0x12000, scoped, tag = 'internal scratch']
  #allocation2 [shape = 'f32[8,16,8]{2,1,0:T(8,128)}', space=vmem, size = 0x10000, scoped, tag = 'scratch operand']
  #allocation3 [shape = 'f32[8,8,8]{2,1,0:T(8,128)}', space=vmem, size = 0x8000, scoped, tag = 'scratch operand']
  #allocation4 [shape = 'f32[1]{0:T(128)S(6)}', space=smem, size = 0x200, scoped, tag = 'scoped memory for norm_downsample.1']
  %s0 = inlined_call_operand.vmem [shape: bf16[2,18,18,4], index: 0, kind: input, shape index: {}]
  %s1 = inlined_call_operand.vmem [shape: bf16[9,4,8], index: 1, kind: input, shape index: {}]
  %s2 = inlined_call_operand.<no memory space> [shape: f32[1], index: 2, kind: input, shape index: {}]
  %s3 = inlined_call_operand.vmem [shape: f32[8,1], index: 3, kind: input, shape index: {}]
  %s4 = inlined_call_operand.vmem [shape: f32[8,1], index: 4, kind: input, shape index: {}]
  %s5 = inlined_call_operand.vmem [shape: f32[2,8,64], index: 5, kind: output, shape index: {}]
  %s6 = sld [smem:[#allocation0]]
  $region53: #{norm_downsample.1} parent=0
    _
  %s8 = ssub.s32 1, %s6
  %s9 = scalar_select 0, %s8, %s6
  %10 = sst [smem:[#allocation4]] %s2
  loop: start=0, step=1, limit=4
  $region2: #{norm_downsample.1} parent=0 // loop_pre_header
    _
  $region3: #{norm_downsample.1} parent=0 // loop_header
    %s12 = sphi 0, %s16
    %p13 = scmp.ge.s32.totalorder %s12, 4
    %s22 = sphi 0, %s24
    %s25 = sphi 0, %s22
    %s26 = sphi 0, %s25
    %s42 = sphi 0, %s26
    %s46 = sphi 0, %s46
    %s48 = sphi 0, %s46
    %s49 = sphi 0, %s48
    %s63 = sphi 0, %s49
    %s67 = sphi 0, %s67
    %s69 = sphi 0, %s67
    %s70 = sphi 0, %s69
    %s84 = sphi 0, %s70
    %s88 = sphi 0, %s88
    %s90 = sphi 0, %s88
    %s91 = sphi 0, %s90
    %s105 = sphi 0, %s91
    %s109 = sphi 0, %s109
    %s111 = sphi 0, %s109
    %s112 = sphi 0, %s111
    %s126 = sphi 0, %s112
    %s132 = sphi 0, %s134
    %s135 = sphi 0, %s132
    %s136 = sphi 0, %s135
    %s152 = sphi 0, %s136
  $region4: #{norm_downsample.1} parent=0 // loop_header_branch
    %15 = sbr.rel (%p13) target = $region8
  $region5: #{norm_downsample.1} parent=0 // loop_body
    %s17 = ssub.s32 %s12, 1
    %s18 = ssub.s32 %s12, 2
    %s19 = sadd.s32 %s12, 1
    %s20 = ssub.s32 %s12, %s19
    %p21 = scmp.eq.s32.totalorder %s20, 0
    %s23 = sadd.s32 %s22, 1
    %s24 = scalar_select %p21, %s22, %s23
    %p27 = pneg %p21
    %p28 = scmp.eq.s32.totalorder %s12, 1
    %p29 = por %p27, %p28
    %p30 = scmp.ne.s32.totalorder %s22, %s25
    %p31 = scmp.eq.s32.totalorder %s12, 0
    %p32 = por %p30, %p31
    %p33 = scmp.ne.s32.totalorder %s22, %s25
    %p34 = scmp.eq.s32.totalorder %s17, 1
    %p35 = por %p33, %p34
    %p36 = scmp.ne.s32.totalorder %s25, %s26
    %p37 = scmp.eq.s32.totalorder %s17, 0
    %p38 = por %p36, %p37
    %p39 = scmp.ne.s32.totalorder %s25, %s26
    %p40 = scmp.eq.s32.totalorder %s18, 1
    %p41 = por %p39, %p40
    %p43 = scmp.ne.s32.totalorder %s26, %s42
    %p44 = scmp.eq.s32.totalorder %s18, 0
    %p45 = por %p43, %p44
    %s47 = sadd.s32 %s46, 1
    %p50 = scmp.eq.s32.totalorder %s12, 1
    %p51 = scmp.ne.s32.totalorder %s46, %s48
    %p52 = scmp.eq.s32.totalorder %s12, 0
    %p53 = por %p51, %p52
    %p54 = scmp.ne.s32.totalorder %s46, %s48
    %p55 = scmp.eq.s32.totalorder %s17, 1
    %p56 = por %p54, %p55
    %p57 = scmp.ne.s32.totalorder %s48, %s49
    %p58 = scmp.eq.s32.totalorder %s17, 0
    %p59 = por %p57, %p58
    %p60 = scmp.ne.s32.totalorder %s48, %s49
    %p61 = scmp.eq.s32.totalorder %s18, 1
    %p62 = por %p60, %p61
    %p64 = scmp.ne.s32.totalorder %s49, %s63
    %p65 = scmp.eq.s32.totalorder %s18, 0
    %p66 = por %p64, %p65
    %s68 = sadd.s32 %s67, 1
    %p71 = scmp.eq.s32.totalorder %s12, 1
    %p72 = scmp.ne.s32.totalorder %s67, %s69
    %p73 = scmp.eq.s32.totalorder %s12, 0
    %p74 = por %p72, %p73
    %p75 = scmp.ne.s32.totalorder %s67, %s69
    %p76 = scmp.eq.s32.totalorder %s17, 1
    %p77 = por %p75, %p76
    %p78 = scmp.ne.s32.totalorder %s69, %s70
    %p79 = scmp.eq.s32.totalorder %s17, 0
    %p80 = por %p78, %p79
    %p81 = scmp.ne.s32.totalorder %s69, %s70
    %p82 = scmp.eq.s32.totalorder %s18, 1
    %p83 = por %p81, %p82
    %p85 = scmp.ne.s32.totalorder %s70, %s84
    %p86 = scmp.eq.s32.totalorder %s18, 0
    %p87 = por %p85, %p86
    %s89 = sadd.s32 %s88, 1
    %p92 = scmp.eq.s32.totalorder %s12, 1
    %p93 = scmp.ne.s32.totalorder %s88, %s90
    %p94 = scmp.eq.s32.totalorder %s12, 0
    %p95 = por %p93, %p94
    %p96 = scmp.ne.s32.totalorder %s88, %s90
    %p97 = scmp.eq.s32.totalorder %s17, 1
    %p98 = por %p96, %p97
    %p99 = scmp.ne.s32.totalorder %s90, %s91
    %p100 = scmp.eq.s32.totalorder %s17, 0
    %p101 = por %p99, %p100
    %p102 = scmp.ne.s32.totalorder %s90, %s91
    %p103 = scmp.eq.s32.totalorder %s18, 1
    %p104 = por %p102, %p103
    %p106 = scmp.ne.s32.totalorder %s91, %s105
    %p107 = scmp.eq.s32.totalorder %s18, 0
    %p108 = por %p106, %p107
    %s110 = sadd.s32 %s109, 1
    %p113 = scmp.eq.s32.totalorder %s12, 1
    %p114 = scmp.ne.s32.totalorder %s109, %s111
    %p115 = scmp.eq.s32.totalorder %s12, 0
    %p116 = por %p114, %p115
    %p117 = scmp.ne.s32.totalorder %s109, %s111
    %p118 = scmp.eq.s32.totalorder %s17, 1
    %p119 = por %p117, %p118
    %p120 = scmp.ne.s32.totalorder %s111, %s112
    %p121 = scmp.eq.s32.totalorder %s17, 0
    %p122 = por %p120, %p121
    %p123 = scmp.ne.s32.totalorder %s111, %s112
    %p124 = scmp.eq.s32.totalorder %s18, 1
    %p125 = por %p123, %p124
    %p127 = scmp.ne.s32.totalorder %s112, %s126
    %p128 = scmp.eq.s32.totalorder %s18, 0
    %p129 = por %p127, %p128
    %s130 = ssub.s32 %s12, %s19
    %p131 = scmp.eq.s32.totalorder %s130, 0
    %s133 = sadd.s32 %s132, 1
    %s134 = scalar_select %p131, %s132, %s133
    %p137 = pneg %p131
    %p138 = scmp.eq.s32.totalorder %s12, 1
    %p139 = por %p137, %p138
    %p140 = scmp.ne.s32.totalorder %s132, %s135
    %p141 = scmp.eq.s32.totalorder %s12, 0
    %p142 = por %p140, %p141
    %p143 = scmp.ne.s32.totalorder %s132, %s135
    %p144 = scmp.eq.s32.totalorder %s17, 1
    %p145 = por %p143, %p144
    %p146 = scmp.ne.s32.totalorder %s135, %s136
    %p147 = scmp.eq.s32.totalorder %s17, 0
    %p148 = por %p146, %p147
    %p149 = scmp.ne.s32.totalorder %s135, %s136
    %p150 = scmp.eq.s32.totalorder %s18, 1
    %p151 = por %p149, %p150
    %p153 = scmp.ne.s32.totalorder %s136, %s152
    %p154 = scmp.eq.s32.totalorder %s18, 0
    %p155 = por %p153, %p154
    %p156 = scmp.le.s32.totalorder 1, %s12
    %p157 = scmp.lt.s32.totalorder %s12, 3
    %p158 = pnand %p156, %p157
    %p159 = pneg %p158
    // Predicated region
    $region9: #{norm_downsample.1} parent=5 // pred_check
      _
    $region10: #{norm_downsample.1} parent=5 // pred_check_branch
      %161 = sbr.rel (%p158) target = $region12
    $region11: #{norm_downsample.1} parent=5 // pred_region
      %s162 = ssub.s32 %s12, 1
      // Predicated region
      $region13: #{norm_downsample.1} parent=11 // pred_check
        %p163 = pneg %p59
      $region14: #{norm_downsample.1} parent=11 // pred_check_branch
        %165 = sbr.rel (%p163) target = $region16
      $region15: #{norm_downsample.1} parent=11 // pred_region
        _
      $region16: #{norm_downsample.1} parent=11 // pred_fallthru
        _
      // Predicated region
      $region17: #{norm_downsample.1} parent=11 // pred_check
        %p166 = pneg %p80
      $region18: #{norm_downsample.1} parent=11 // pred_check_branch
        %168 = sbr.rel (%p166) target = $region20
      $region19: #{norm_downsample.1} parent=11 // pred_region
        _
      $region20: #{norm_downsample.1} parent=11 // pred_fallthru
        _
      // Predicated region
      $region21: #{norm_downsample.1} parent=11 // pred_check
        %p169 = pneg %p101
      $region22: #{norm_downsample.1} parent=11 // pred_check_branch
        %171 = sbr.rel (%p169) target = $region24
      $region23: #{norm_downsample.1} parent=11 // pred_region
        _
      $region24: #{norm_downsample.1} parent=11 // pred_fallthru
        _
      // Predicated region
      $region25: #{norm_downsample.1} parent=11 // pred_check
        %p172 = pneg %p122
      $region26: #{norm_downsample.1} parent=11 // pred_check_branch
        %174 = sbr.rel (%p172) target = $region28
      $region27: #{norm_downsample.1} parent=11 // pred_region
        _
      $region28: #{norm_downsample.1} parent=11 // pred_fallthru
        _
    $region12: #{norm_downsample.1} parent=5 // pred_fallthru
      _
    %p175 = scmp.lt.s32.totalorder %s12, 2
    // Predicated region
    $region29: #{norm_downsample.1} parent=5 // pred_check
      %p176 = pneg %p175
    $region30: #{norm_downsample.1} parent=5 // pred_check_branch
      %178 = sbr.rel (%p176) target = $region32
    $region31: #{norm_downsample.1} parent=5 // pred_region
      // Predicated region
      $region33: #{norm_downsample.1} parent=31 // pred_check
        %p179 = pneg %p32
      $region34: #{norm_downsample.1} parent=31 // pred_check_branch
        %181 = sbr.rel (%p179) target = $region36
      $region35: #{norm_downsample.1} parent=31 // pred_region
        %p182 = scmp.lt.s32.totalorder %s12, 1
        %s183 = scalar_select %p182, %s12, 1
        %s184 = smul.addr %s183, 54
        %s185 = smul.addr %s184, 4
        %s186 = scalar_lea.vmem %s0, %s185
      $region36: #{norm_downsample.1} parent=31 // pred_fallthru
        _
    $region32: #{norm_downsample.1} parent=5 // pred_fallthru
      _
    %p187 = scmp.le.s32.totalorder 1, %s12
    %p188 = scmp.lt.s32.totalorder %s12, 3
    %p189 = pnand %p187, %p188
    %p190 = pneg %p189
    // Predicated region
    $region37: #{norm_downsample.1} parent=5 // pred_check
      _
    $region38: #{norm_downsample.1} parent=5 // pred_check_branch
      %192 = sbr.rel (%p189) target = $region40
    $region39: #{norm_downsample.1} parent=5 // pred_region
      %s193 = ssub.s32 %s12, 1
      %p194 = scmp.lt.s32.totalorder %s17, 1
      %s195 = scalar_select %p194, %s17, 1
      %s196 = smul.addr %s195, 54
      %s197 = smul.addr %s196, 4
      %s198 = scalar_lea.vmem %s0, %s197
      %p199 = pneg %p38
      %p200 = pneg %p35
      %p201 = pneg %p59
      %p202 = pneg %p56
      %p203 = pneg %p80
      %p204 = pneg %p77
      %p205 = pneg %p101
      %p206 = pneg %p98
      %p207 = pneg %p122
      %p208 = pneg %p119
      %p209 = pneg %p148
      %p210 = pneg %p145
      %p211 = scmp.lt.s32.totalorder %s17, 1
      %s212 = scalar_select %p211, %s17, 1
      %s213 = smul.addr %s212, 8
      %s214 = scalar_lea.vmem %s5, %s213
      %p215 = scmp.lt.s32.totalorder %s17, 1
      %s216 = scalar_select %p215, %s17, 1
      %s217 = smul.addr %s216, 54
      %s218 = smul.addr %s217, 4
      %s219 = scalar_lea.vmem %s0, %s218
      %p220 = scmp.lt.s32.totalorder %s17, 1
      %s221 = scalar_select %p220, %s17, 1
      %s222 = smul.addr %s221, 8
      %s223 = scalar_lea.vmem %s5, %s222
      %v225 = vld [vmem:[%s219] sm:$0xf]
      %v226 = vld [vmem:[%s219 + $0x4] sm:$0xf]
      %v227 = vld [vmem:[%s219 + $0x8] sm:$0x1]
      %v228 = vld [vmem:[%s219 + $0xc] sm:$0xf]
      %v229 = vld [vmem:[%s219 + $0x10] sm:$0xf]
      %v230 = vld [vmem:[%s219 + $0x14] sm:$0x1]
      %v231 = vld [vmem:[%s219 + $0x18] sm:$0xf]
      %v232 = vld [vmem:[%s219 + $0x1c] sm:$0xf]
      %v233 = vld [vmem:[%s219 + $0x20] sm:$0x1]
      %v234 = vld [vmem:[%s219 + $0x24] sm:$0xf]
      %v235 = vld [vmem:[%s219 + $0x28] sm:$0xf]
      %v236 = vld [vmem:[%s219 + $0x2c] sm:$0x1]
      %v237 = vld [vmem:[%s219 + $0x30] sm:$0xf]
      %v238 = vld [vmem:[%s219 + $0x34] sm:$0xf]
      %v239 = vld [vmem:[%s219 + $0x38] sm:$0x1]
      %v240 = vld [vmem:[%s219 + $0x3c] sm:$0xf]
      %v241 = vld [vmem:[%s219 + $0x40] sm:$0xf]
      %v242 = vld [vmem:[%s219 + $0x44] sm:$0x1]
      %v243 = vld [vmem:[%s219 + $0x48] sm:$0xf]
      %v244 = vld [vmem:[%s219 + $0x4c] sm:$0xf]
      %v245 = vld [vmem:[%s219 + $0x50] sm:$0x1]
      %v246 = vld [vmem:[%s219 + $0x54] sm:$0xf]
      %v247 = vld [vmem:[%s219 + $0x58] sm:$0xf]
      %v248 = vld [vmem:[%s219 + $0x5c] sm:$0x1]
      %v249 = vld [vmem:[%s219 + $0x60] sm:$0xf]
      %v250 = vld [vmem:[%s219 + $0x64] sm:$0xf]
      %v251 = vld [vmem:[%s219 + $0x68] sm:$0x1]
      %v252 = vld [vmem:[%s219 + $0x6c] sm:$0xf]
      %v253 = vld [vmem:[%s219 + $0x70] sm:$0xf]
      %v254 = vld [vmem:[%s219 + $0x74] sm:$0x1]
      %v255 = vld [vmem:[%s219 + $0x78] sm:$0xf]
      %v256 = vld [vmem:[%s219 + $0x7c] sm:$0xf]
      %v257 = vld [vmem:[%s219 + $0x80] sm:$0x1]
      %v258 = vld [vmem:[%s219 + $0x84] sm:$0xf]
      %v259 = vld [vmem:[%s219 + $0x88] sm:$0xf]
      %v260 = vld [vmem:[%s219 + $0x8c] sm:$0x1]
      %v261 = vld [vmem:[%s219 + $0x90] sm:$0xf]
      %v262 = vld [vmem:[%s219 + $0x94] sm:$0xf]
      %v263 = vld [vmem:[%s219 + $0x98] sm:$0x1]
      %v264 = vld [vmem:[%s219 + $0x9c] sm:$0xf]
      %v265 = vld [vmem:[%s219 + $0xa0] sm:$0xf]
      %v266 = vld [vmem:[%s219 + $0xa4] sm:$0x1]
      %v267 = vld [vmem:[%s219 + $0xa8] sm:$0xf]
      %v268 = vld [vmem:[%s219 + $0xac] sm:$0xf]
      %v269 = vld [vmem:[%s219 + $0xb0] sm:$0x1]
      %v270 = vld [vmem:[%s219 + $0xb4] sm:$0xf]
      %v271 = vld [vmem:[%s219 + $0xb8] sm:$0xf]
      %v272 = vld [vmem:[%s219 + $0xbc] sm:$0x1]
      %v273 = vld [vmem:[%s219 + $0xc0] sm:$0xf]
      %v274 = vld [vmem:[%s219 + $0xc4] sm:$0xf]
      %v275 = vld [vmem:[%s219 + $0xc8] sm:$0x1]
      %v276 = vld [vmem:[%s219 + $0xcc] sm:$0xf]
      %v277 = vld [vmem:[%s219 + $0xd0] sm:$0xf]
      %v278 = vld [vmem:[%s219 + $0xd4] sm:$0x1]
      %v279 = vld [vmem:[%s1] sm:$0x3]
      %vm280 = vsmask.f32 3328
      %vm281 = vsmask.f32 7440
      %vm282 = vmor %vm280, %vm281
      %v284 = vshrl.u32 %v225, 16
      %v286 = vrot.slane %v284, 4
      %v287 = vshll.u32 %v225, 16
      %v289 = vrot.slane %v287, 5
      %v290 = vor.u32 %v286, %v289
      %v291 = vrot.slane %v290, 4
      %v293 = vshll.u32 %v226, 16
      %v295 = vrot.slane %v293, 5
      %v296 = vsel %vm282, %v291, %v295
      %v297 = vshrl.u32 %v226, 16
      %v299 = vrot.slane %v297, 4
      %v300 = vor.u32 %v299, %v295
      %v301 = vrot.slane %v300, 4
      %v303 = vshll.u32 %v227, 16
      %v305 = vrot.slane %v303, 5
      %v306 = vsel %vm282, %v301, %v305
      %v308 = vshrl.u32 %v228, 16
      %v310 = vrot.slane %v308, 4
      %v311 = vshll.u32 %v228, 16
      %v313 = vrot.slane %v311, 5
      %v314 = vor.u32 %v310, %v313
      %v315 = vrot.slane %v314, 4
      %v317 = vshll.u32 %v229, 16
      %v319 = vrot.slane %v317, 5
      %v320 = vsel %vm282, %v315, %v319
      %v321 = vshrl.u32 %v229, 16
      %v323 = vrot.slane %v321, 4
      %v324 = vor.u32 %v323, %v319
      %v325 = vrot.slane %v324, 4
      %v327 = vshll.u32 %v230, 16
      %v329 = vrot.slane %v327, 5
      %v330 = vsel %vm282, %v325, %v329
      %v332 = vshrl.u32 %v231, 16
      %v334 = vrot.slane %v332, 4
      %v335 = vshll.u32 %v231, 16
      %v337 = vrot.slane %v335, 5
      %v338 = vor.u32 %v334, %v337
      %v339 = vrot.slane %v338, 4
      %v341 = vshll.u32 %v232, 16
      %v343 = vrot.slane %v341, 5
      %v344 = vsel %vm282, %v339, %v343
      %v345 = vshrl.u32 %v232, 16
      %v347 = vrot.slane %v345, 4
      %v348 = vor.u32 %v347, %v343
      %v349 = vrot.slane %v348, 4
      %v351 = vshll.u32 %v233, 16
      %v353 = vrot.slane %v351, 5
      %v354 = vsel %vm282, %v349, %v353
      %v356 = vshrl.u32 %v234, 16
      %v358 = vrot.slane %v356, 4
      %v359 = vshll.u32 %v234, 16
      %v361 = vrot.slane %v359, 5
      %v362 = vor.u32 %v358, %v361
      %v363 = vrot.slane %v362, 4
      %v365 = vshll.u32 %v235, 16
      %v367 = vrot.slane %v365, 5
      %v368 = vsel %vm282, %v363, %v367
      %v369 = vshrl.u32 %v235, 16
      %v371 = vrot.slane %v369, 4
      %v372 = vor.u32 %v371, %v367
      %v373 = vrot.slane %v372, 4
      %v375 = vshll.u32 %v236, 16
      %v377 = vrot.slane %v375, 5
      %v378 = vsel %vm282, %v373, %v377
      %v380 = vshrl.u32 %v237, 16
      %v382 = vrot.slane %v380, 4
      %v383 = vshll.u32 %v237, 16
      %v385 = vrot.slane %v383, 5
      %v386 = vor.u32 %v382, %v385
      %v387 = vrot.slane %v386, 4
      %v389 = vshll.u32 %v238, 16
      %v391 = vrot.slane %v389, 5
      %v392 = vsel %vm282, %v387, %v391
      %v393 = vshrl.u32 %v238, 16
      %v395 = vrot.slane %v393, 4
      %v396 = vor.u32 %v395, %v391
      %v397 = vrot.slane %v396, 4
      %v399 = vshll.u32 %v239, 16
      %v401 = vrot.slane %v399, 5
      %v402 = vsel %vm282, %v397, %v401
      %v404 = vshrl.u32 %v240, 16
      %v406 = vrot.slane %v404, 4
      %v407 = vshll.u32 %v240, 16
      %v409 = vrot.slane %v407, 5
      %v410 = vor.u32 %v406, %v409
      %v411 = vrot.slane %v410, 4
      %v413 = vshll.u32 %v241, 16
      %v415 = vrot.slane %v413, 5
      %v416 = vsel %vm282, %v411, %v415
      %v417 = vshrl.u32 %v241, 16
      %v419 = vrot.slane %v417, 4
      %v420 = vor.u32 %v419, %v415
      %v421 = vrot.slane %v420, 4
      %v423 = vshll.u32 %v242, 16
      %v425 = vrot.slane %v423, 5
      %v426 = vsel %vm282, %v421, %v425
      %v428 = vshrl.u32 %v243, 16
      %v430 = vrot.slane %v428, 4
      %v431 = vshll.u32 %v243, 16
      %v433 = vrot.slane %v431, 5
      %v434 = vor.u32 %v430, %v433
      %v435 = vrot.slane %v434, 4
      %v437 = vshll.u32 %v244, 16
      %v439 = vrot.slane %v437, 5
      %v440 = vsel %vm282, %v435, %v439
      %v441 = vshrl.u32 %v244, 16
      %v443 = vrot.slane %v441, 4
      %v444 = vor.u32 %v443, %v439
      %v445 = vrot.slane %v444, 4
      %v447 = vshll.u32 %v245, 16
      %v449 = vrot.slane %v447, 5
      %v450 = vsel %vm282, %v445, %v449
      %v452 = vshrl.u32 %v246, 16
      %v454 = vrot.slane %v452, 4
      %v455 = vshll.u32 %v246, 16
      %v457 = vrot.slane %v455, 5
      %v458 = vor.u32 %v454, %v457
      %v459 = vrot.slane %v458, 4
      %v461 = vshll.u32 %v247, 16
      %v463 = vrot.slane %v461, 5
      %v464 = vsel %vm282, %v459, %v463
      %v465 = vshrl.u32 %v247, 16
      %v467 = vrot.slane %v465, 4
      %v468 = vor.u32 %v467, %v463
      %v469 = vrot.slane %v468, 4
      %v471 = vshll.u32 %v248, 16
      %v473 = vrot.slane %v471, 5
      %v474 = vsel %vm282, %v469, %v473
      %v476 = vshrl.u32 %v249, 16
      %v478 = vrot.slane %v476, 4
      %v479 = vshll.u32 %v249, 16
      %v481 = vrot.slane %v479, 5
      %v482 = vor.u32 %v478, %v481
      %v483 = vrot.slane %v482, 4
      %v485 = vshll.u32 %v250, 16
      %v487 = vrot.slane %v485, 5
      %v488 = vsel %vm282, %v483, %v487
      %v489 = vshrl.u32 %v250, 16
      %v491 = vrot.slane %v489, 4
      %v492 = vor.u32 %v491, %v487
      %v493 = vrot.slane %v492, 4
      %v495 = vshll.u32 %v251, 16
      %v497 = vrot.slane %v495, 5
      %v498 = vsel %vm282, %v493, %v497
      %v500 = vshrl.u32 %v252, 16
      %v502 = vrot.slane %v500, 4
      %v503 = vshll.u32 %v252, 16
      %v505 = vrot.slane %v503, 5
      %v506 = vor.u32 %v502, %v505
      %v507 = vrot.slane %v506, 4
      %v509 = vshll.u32 %v253, 16
      %v511 = vrot.slane %v509, 5
      %v512 = vsel %vm282, %v507, %v511
      %v513 = vshrl.u32 %v253, 16
      %v515 = vrot.slane %v513, 4
      %v516 = vor.u32 %v515, %v511
      %v517 = vrot.slane %v516, 4
      %v519 = vshll.u32 %v254, 16
      %v521 = vrot.slane %v519, 5
      %v522 = vsel %vm282, %v517, %v521
      %v524 = vshrl.u32 %v255, 16
      %v526 = vrot.slane %v524, 4
      %v527 = vshll.u32 %v255, 16
      %v529 = vrot.slane %v527, 5
      %v530 = vor.u32 %v526, %v529
      %v531 = vrot.slane %v530, 4
      %v533 = vshll.u32 %v256, 16
      %v535 = vrot.slane %v533, 5
      %v536 = vsel %vm282, %v531, %v535
      %v537 = vshrl.u32 %v256, 16
      %v539 = vrot.slane %v537, 4
      %v540 = vor.u32 %v539, %v535
      %v541 = vrot.slane %v540, 4
      %v543 = vshll.u32 %v257, 16
      %v545 = vrot.slane %v543, 5
      %v546 = vsel %vm282, %v541, %v545
      %v548 = vshrl.u32 %v258, 16
      %v550 = vrot.slane %v548, 4
      %v551 = vshll.u32 %v258, 16
      %v553 = vrot.slane %v551, 5
      %v554 = vor.u32 %v550, %v553
      %v555 = vrot.slane %v554, 4
      %v557 = vshll.u32 %v259, 16
      %v559 = vrot.slane %v557, 5
      %v560 = vsel %vm282, %v555, %v559
      %v561 = vshrl.u32 %v259, 16
      %v563 = vrot.slane %v561, 4
      %v564 = vor.u32 %v563, %v559
      %v565 = vrot.slane %v564, 4
      %v567 = vshll.u32 %v260, 16
      %v569 = vrot.slane %v567, 5
      %v570 = vsel %vm282, %v565, %v569
      %v572 = vshrl.u32 %v261, 16
      %v574 = vrot.slane %v572, 4
      %v575 = vshll.u32 %v261, 16
      %v577 = vrot.slane %v575, 5
      %v578 = vor.u32 %v574, %v577
      %v579 = vrot.slane %v578, 4
      %v581 = vshll.u32 %v262, 16
      %v583 = vrot.slane %v581, 5
      %v584 = vsel %vm282, %v579, %v583
      %v585 = vshrl.u32 %v262, 16
      %v587 = vrot.slane %v585, 4
      %v588 = vor.u32 %v587, %v583
      %v589 = vrot.slane %v588, 4
      %v591 = vshll.u32 %v263, 16
      %v593 = vrot.slane %v591, 5
      %v594 = vsel %vm282, %v589, %v593
      %v596 = vshrl.u32 %v264, 16
      %v598 = vrot.slane %v596, 4
      %v599 = vshll.u32 %v264, 16
      %v601 = vrot.slane %v599, 5
      %v602 = vor.u32 %v598, %v601
      %v603 = vrot.slane %v602, 4
      %v605 = vshll.u32 %v265, 16
      %v607 = vrot.slane %v605, 5
      %v608 = vsel %vm282, %v603, %v607
      %v609 = vshrl.u32 %v265, 16
      %v611 = vrot.slane %v609, 4
      %v612 = vor.u32 %v611, %v607
      %v613 = vrot.slane %v612, 4
      %v615 = vshll.u32 %v266, 16
      %v617 = vrot.slane %v615, 5
      %v618 = vsel %vm282, %v613, %v617
      %v620 = vshrl.u32 %v267, 16
      %v622 = vrot.slane %v620, 4
      %v623 = vshll.u32 %v267, 16
      %v625 = vrot.slane %v623, 5
      %v626 = vor.u32 %v622, %v625
      %v627 = vrot.slane %v626, 4
      %v629 = vshll.u32 %v268, 16
      %v631 = vrot.slane %v629, 5
      %v632 = vsel %vm282, %v627, %v631
      %v633 = vshrl.u32 %v268, 16
      %v635 = vrot.slane %v633, 4
      %v636 = vor.u32 %v635, %v631
      %v637 = vrot.slane %v636, 4
      %v639 = vshll.u32 %v269, 16
      %v641 = vrot.slane %v639, 5
      %v642 = vsel %vm282, %v637, %v641
      %v644 = vshrl.u32 %v270, 16
      %v646 = vrot.slane %v644, 4
      %v647 = vshll.u32 %v270, 16
      %v649 = vrot.slane %v647, 5
      %v650 = vor.u32 %v646, %v649
      %v651 = vrot.slane %v650, 4
      %v653 = vshll.u32 %v271, 16
      %v655 = vrot.slane %v653, 5
      %v656 = vsel %vm282, %v651, %v655
      %v657 = vshrl.u32 %v271, 16
      %v659 = vrot.slane %v657, 4
      %v660 = vor.u32 %v659, %v655
      %v661 = vrot.slane %v660, 4
      %v663 = vshll.u32 %v272, 16
      %v665 = vrot.slane %v663, 5
      %v666 = vsel %vm282, %v661, %v665
      %s667 = scalar_lea.vmem %s1, 2
      %v668 = vld [vmem:[%s667] sm:$0x3]
      %v669 = vunpack.c.l.b16 %v296
      %v670 = vunpack.c.l.b16 %v306
      %v671 = vunpack.c.l.b16 %v320
      %v672 = vunpack.c.l.b16 %v330
      %v673 = vunpack.c.l.b16 %v344
      %v674 = vunpack.c.l.b16 %v354
      %v675 = vunpack.c.l.b16 %v368
      %v676 = vunpack.c.l.b16 %v378
      %v677 = vunpack.c.l.b16 %v392
      %v678 = vunpack.c.l.b16 %v402
      %v679 = vunpack.c.l.b16 %v416
      %v680 = vunpack.c.l.b16 %v426
      %v681 = vunpack.c.l.b16 %v440
      %v682 = vunpack.c.l.b16 %v450
      %v683 = vunpack.c.l.b16 %v464
      %v684 = vunpack.c.l.b16 %v474
      %v685 = vunpack.c.l.b16 %v488
      %v686 = vunpack.c.l.b16 %v498
      %v687 = vunpack.c.l.b16 %v512
      %v688 = vunpack.c.l.b16 %v522
      %v689 = vunpack.c.l.b16 %v536
      %v690 = vunpack.c.l.b16 %v546
      %v691 = vunpack.c.l.b16 %v560
      %v692 = vunpack.c.l.b16 %v570
      %v693 = vunpack.c.l.b16 %v584
      %v694 = vunpack.c.l.b16 %v594
      %v695 = vunpack.c.l.b16 %v608
      %v696 = vunpack.c.l.b16 %v618
      %v697 = vunpack.c.l.b16 %v632
      %v698 = vunpack.c.l.b16 %v642
      %v699 = vunpack.c.l.b16 %v656
      %v700 = vunpack.c.l.b16 %v666
      %v701 = vpack.c.b16 %v670, %v669
      %v702 = vpack.c.b16 %v672, %v671
      %v703 = vpack.c.b16 %v674, %v673
      %v704 = vpack.c.b16 %v676, %v675
      %v705 = vpack.c.b16 %v678, %v677
      %v706 = vpack.c.b16 %v680, %v679
      %v707 = vpack.c.b16 %v682, %v681
      %v708 = vpack.c.b16 %v684, %v683
      %v709 = vpack.c.b16 %v686, %v685
      %v710 = vpack.c.b16 %v688, %v687
      %v711 = vpack.c.b16 %v690, %v689
      %v712 = vpack.c.b16 %v692, %v691
      %v713 = vpack.c.b16 %v694, %v693
      %v714 = vpack.c.b16 %v696, %v695
      %v715 = vpack.c.b16 %v698, %v697
      %v716 = vpack.c.b16 %v700, %v699
      %vm717 = vcmask 31744
      %v719 = vsel %vm717, %v701, 0
      %v722 = vsel %vm717, %v702, 0
      %v725 = vsel %vm717, %v703, 0
      %v728 = vsel %vm717, %v704, 0
      %v731 = vsel %vm717, %v705, 0
      %v734 = vsel %vm717, %v706, 0
      %v737 = vsel %vm717, %v707, 0
      %v740 = vsel %vm717, %v708, 0
      %v743 = vsel %vm717, %v709, 0
      %v746 = vsel %vm717, %v710, 0
      %v749 = vsel %vm717, %v711, 0
      %v752 = vsel %vm717, %v712, 0
      %v755 = vsel %vm717, %v713, 0
      %v758 = vsel %vm717, %v714, 0
      %v761 = vsel %vm717, %v715, 0
      %v764 = vsel %vm717, %v716, 0
      %vm766 = vcmask 1041408
      %v768 = vsel %vm766, %v668, 0
      %770 = vmatprep.subr.bf16.mxu0 0
      %771 = vmatpush1.bf16.msra.mxu0 %v768
      %772 = vmatprep.subr.bf16.mxu0 0
      %773 = vmatpush1.bf16.msra.mxu0 0
      %774 = vmatprep.subr.bf16.mxu0 0
      %775 = vmatpush1.bf16.msra.mxu0 0
      %776 = vmatprep.subr.bf16.mxu0 0
      %777 = vmatpush1.bf16.msra.mxu0 0
      %778 = vmatprep.subr.bf16.mxu0 0
      %779 = vmatpush1.bf16.msra.mxu0 0
      %780 = vmatprep.subr.bf16.mxu0 0
      %781 = vmatpush1.bf16.msra.mxu0 0
      %782 = vmatprep.subr.bf16.mxu0 0
      %783 = vmatpush1.bf16.msra.mxu0 0
      %784 = vmatprep.subr.bf16.mxu0 0
      %785 = vmatpush1.bf16.msra.mxu0 0
      %786 = vmatprep.subr.bf16.mxu0 0
      %787 = vmatpush1.bf16.msra.mxu0 0
      %788 = vmatprep.subr.bf16.mxu0 0
      %789 = vmatpush1.bf16.msra.mxu0 0
      %790 = vmatprep.subr.bf16.mxu0 0
      %791 = vmatpush1.bf16.msra.mxu0 0
      %792 = vmatprep.subr.bf16.mxu0 0
      %793 = vmatpush1.bf16.msra.mxu0 0
      %794 = vmatprep.subr.bf16.mxu0 0
      %795 = vmatpush1.bf16.msra.mxu0 0
      %796 = vmatprep.subr.bf16.mxu0 0
      %797 = vmatpush1.bf16.msra.mxu0 0
      %798 = vmatprep.subr.bf16.mxu0 0
      %799 = vmatpush1.bf16.msra.mxu0 0
      %800 = vmatprep.subr.bf16.mxu0 0
      %801 = vmatpush1.bf16.msra.mxu0 0
      %802 = vmatprep.mubr.bf16.mxu0 0
      %803 = vmatmul.mubr.bf16.gmra.mrb[0].mxu0 %v719
      %v804 = vpop.f32.mrb[0].mxu0
      %v805 = vadd.f32 0.0, %v804
      %v806 = vpop.f32.mrb[0].mxu0
      %v807 = vpop.f32.mrb[0].mxu0
      %v808 = vadd.f32 0.0, %v807
      %v809 = vpop.f32.mrb[0].mxu0
      %810 = vmatprep.mubr.bf16.mxu0 0
      %811 = vmatmul.mubr.bf16.gmra.mrb[0].mxu0 %v722
      %v812 = vpop.f32.mrb[0].mxu0
      %v813 = vadd.f32 0.0, %v812
      %v814 = vpop.f32.mrb[0].mxu0
      %v815 = vpop.f32.mrb[0].mxu0
      %v816 = vadd.f32 0.0, %v815
      %v817 = vpop.f32.mrb[0].mxu0
      %818 = vmatprep.mubr.bf16.mxu0 0
      %819 = vmatmul.mubr.bf16.gmra.mrb[0].mxu0 %v725
      %v820 = vpop.f32.mrb[0].mxu0
      %v821 = vadd.f32 0.0, %v820
      %v822 = vpop.f32.mrb[0].mxu0
      %v823 = vpop.f32.mrb[0].mxu0
      %v824 = vadd.f32 0.0, %v823
      %v825 = vpop.f32.mrb[0].mxu0
      %826 = vmatprep.mubr.bf16.mxu0 0
      %827 = vmatmul.mubr.bf16.gmra.mrb[0].mxu0 %v728
      %v828 = vpop.f32.mrb[0].mxu0
      %v829 = vadd.f32 0.0, %v828
      %v830 = vpop.f32.mrb[0].mxu0
      %v831 = vpop.f32.mrb[0].mxu0
      %v832 = vadd.f32 0.0, %v831
      %v833 = vpop.f32.mrb[0].mxu0
      %834 = vmatprep.mubr.bf16.mxu0 0
      %835 = vmatmul.mubr.bf16.gmra.mrb[0].mxu0 %v731
      %v836 = vpop.f32.mrb[0].mxu0
      %v837 = vadd.f32 0.0, %v836
      %v838 = vpop.f32.mrb[0].mxu0
      %v839 = vpop.f32.mrb[0].mxu0
      %v840 = vadd.f32 0.0, %v839
      %v841 = vpop.f32.mrb[0].mxu0
      %842 = vmatprep.mubr.bf16.mxu0 0
      %843 = vmatmul.mubr.bf16.gmra.mrb[0].mxu0 %v734
      %v844 = vpop.f32.mrb[0].mxu0
      %v845 = vadd.f32 0.0, %v844
      %v846 = vpop.f32.mrb[0].mxu0
      %v847 = vpop.f32.mrb[0].mxu0
      %v848 = vadd.f32 0.0, %v847
      %v849 = vpop.f32.mrb[0].mxu0
      %850 = vmatprep.mubr.bf16.mxu0 0
      %851 = vmatmul.mubr.bf16.gmra.mrb[0].mxu0 %v737
      %v852 = vpop.f32.mrb[0].mxu0
      %v853 = vadd.f32 0.0, %v852
      %v854 = vpop.f32.mrb[0].mxu0
      %v855 = vpop.f32.mrb[0].mxu0
      %v856 = vadd.f32 0.0, %v855
      %v857 = vpop.f32.mrb[0].mxu0
      %858 = vmatprep.mubr.bf16.mxu0 0
      %859 = vmatmul.mubr.bf16.gmra.mrb[0].mxu0 %v740
      %v860 = vpop.f32.mrb[0].mxu0
      %v861 = vadd.f32 0.0, %v860
      %v862 = vpop.f32.mrb[0].mxu0
      %v863 = vpop.f32.mrb[0].mxu0
      %v864 = vadd.f32 0.0, %v863
      %v865 = vpop.f32.mrb[0].mxu0
      %866 = vmatprep.mubr.bf16.mxu0 0
      %867 = vmatmul.mubr.bf16.gmra.mrb[0].mxu0 %v743
      %v868 = vpop.f32.mrb[0].mxu0
      %v869 = vadd.f32 0.0, %v868
      %v870 = vpop.f32.mrb[0].mxu0
      %v871 = vpop.f32.mrb[0].mxu0
      %v872 = vadd.f32 0.0, %v871
      %v873 = vpop.f32.mrb[0].mxu0
      %874 = vmatprep.mubr.bf16.mxu0 0
      %875 = vmatmul.mubr.bf16.gmra.mrb[0].mxu0 %v746
      %v876 = vpop.f32.mrb[0].mxu0
      %v877 = vadd.f32 0.0, %v876
      %v878 = vpop.f32.mrb[0].mxu0
      %v879 = vpop.f32.mrb[0].mxu0
      %v880 = vadd.f32 0.0, %v879
      %v881 = vpop.f32.mrb[0].mxu0
      %882 = vmatprep.mubr.bf16.mxu0 0
      %883 = vmatmul.mubr.bf16.gmra.mrb[0].mxu0 %v749
      %v884 = vpop.f32.mrb[0].mxu0
      %v885 = vadd.f32 0.0, %v884
      %v886 = vpop.f32.mrb[0].mxu0
      %v887 = vpop.f32.mrb[0].mxu0
      %v888 = vadd.f32 0.0, %v887
      %v889 = vpop.f32.mrb[0].mxu0
      %890 = vmatprep.mubr.bf16.mxu0 0
      %891 = vmatmul.mubr.bf16.gmra.mrb[0].mxu0 %v752
      %v892 = vpop.f32.mrb[0].mxu0
      %v893 = vadd.f32 0.0, %v892
      %v894 = vpop.f32.mrb[0].mxu0
      %v895 = vpop.f32.mrb[0].mxu0
      %v896 = vadd.f32 0.0, %v895
      %v897 = vpop.f32.mrb[0].mxu0
      %898 = vmatprep.mubr.bf16.mxu0 0
      %899 = vmatmul.mubr.bf16.gmra.mrb[0].mxu0 %v755
      %v900 = vpop.f32.mrb[0].mxu0
      %v901 = vadd.f32 0.0, %v900
      %v902 = vpop.f32.mrb[0].mxu0
      %v903 = vpop.f32.mrb[0].mxu0
      %v904 = vadd.f32 0.0, %v903
      %v905 = vpop.f32.mrb[0].mxu0
      %906 = vmatprep.mubr.bf16.mxu0 0
      %907 = vmatmul.mubr.bf16.gmra.mrb[0].mxu0 %v758
      %v908 = vpop.f32.mrb[0].mxu0
      %v909 = vadd.f32 0.0, %v908
      %v910 = vpop.f32.mrb[0].mxu0
      %v911 = vpop.f32.mrb[0].mxu0
      %v912 = vadd.f32 0.0, %v911
      %v913 = vpop.f32.mrb[0].mxu0
      %914 = vmatprep.mubr.bf16.mxu0 0
      %915 = vmatmul.mubr.bf16.gmra.mrb[0].mxu0 %v761
      %v916 = vpop.f32.mrb[0].mxu0
      %v917 = vadd.f32 0.0, %v916
      %v918 = vpop.f32.mrb[0].mxu0
      %v919 = vpop.f32.mrb[0].mxu0
      %v920 = vadd.f32 0.0, %v919
      %v921 = vpop.f32.mrb[0].mxu0
      %922 = vmatprep.mubr.bf16.mxu0 0
      %923 = vmatmul.mubr.bf16.gmra.mrb[0].mxu0 %v764
      %v924 = vpop.f32.mrb[0].mxu0
      %v925 = vadd.f32 0.0, %v924
      %v926 = vpop.f32.mrb[0].mxu0
      %v927 = vpop.f32.mrb[0].mxu0
      %v928 = vadd.f32 0.0, %v927
      %v929 = vpop.f32.mrb[0].mxu0
      %930 = vdwg.mxu0
      %v963 = vunpack.c.l.b16 %v225
      %v964 = vunpack.c.l.b16 %v226
      %v965 = vunpack.c.l.b16 %v228
      %v966 = vunpack.c.l.b16 %v229
      %v967 = vunpack.c.l.b16 %v231
      %v968 = vunpack.c.l.b16 %v232
      %v969 = vunpack.c.l.b16 %v234
      %v970 = vunpack.c.l.b16 %v235
      %v971 = vunpack.c.l.b16 %v237
      %v972 = vunpack.c.l.b16 %v238
      %v973 = vunpack.c.l.b16 %v240
      %v974 = vunpack.c.l.b16 %v241
      %v975 = vunpack.c.l.b16 %v243
      %v976 = vunpack.c.l.b16 %v244
      %v977 = vunpack.c.l.b16 %v246
      %v978 = vunpack.c.l.b16 %v247
      %v979 = vunpack.c.l.b16 %v249
      %v980 = vunpack.c.l.b16 %v250
      %v981 = vunpack.c.l.b16 %v252
      %v982 = vunpack.c.l.b16 %v253
      %v983 = vunpack.c.l.b16 %v255
      %v984 = vunpack.c.l.b16 %v256
      %v985 = vunpack.c.l.b16 %v258
      %v986 = vunpack.c.l.b16 %v259
      %v987 = vunpack.c.l.b16 %v261
      %v988 = vunpack.c.l.b16 %v262
      %v989 = vunpack.c.l.b16 %v264
      %v990 = vunpack.c.l.b16 %v265
      %v991 = vunpack.c.l.b16 %v267
      %v992 = vunpack.c.l.b16 %v268
      %v993 = vunpack.c.l.b16 %v270
      %v994 = vunpack.c.l.b16 %v271
      %v995 = vpack.c.b16 %v964, %v963
      %v996 = vpack.c.b16 %v966, %v965
      %v997 = vpack.c.b16 %v968, %v967
      %v998 = vpack.c.b16 %v970, %v969
      %v999 = vpack.c.b16 %v972, %v971
      %v1000 = vpack.c.b16 %v974, %v973
      %v1001 = vpack.c.b16 %v976, %v975
      %v1002 = vpack.c.b16 %v978, %v977
      %v1003 = vpack.c.b16 %v980, %v979
      %v1004 = vpack.c.b16 %v982, %v981
      %v1005 = vpack.c.b16 %v984, %v983
      %v1006 = vpack.c.b16 %v986, %v985
      %v1007 = vpack.c.b16 %v988, %v987
      %v1008 = vpack.c.b16 %v990, %v989
      %v1009 = vpack.c.b16 %v992, %v991
      %v1010 = vpack.c.b16 %v994, %v993
      %v1012 = vsel %vm717, %v995, 0
      %v1015 = vsel %vm717, %v996, 0
      %v1018 = vsel %vm717, %v997, 0
      %v1021 = vsel %vm717, %v998, 0
      %v1024 = vsel %vm717, %v999, 0
      %v1027 = vsel %vm717, %v1000, 0
      %v1030 = vsel %vm717, %v1001, 0
      %v1033 = vsel %vm717, %v1002, 0
      %v1036 = vsel %vm717, %v1003, 0
      %v1039 = vsel %vm717, %v1004, 0
      %v1042 = vsel %vm717, %v1005, 0
      %v1045 = vsel %vm717, %v1006, 0
      %v1048 = vsel %vm717, %v1007, 0
      %v1051 = vsel %vm717, %v1008, 0
      %v1054 = vsel %vm717, %v1009, 0
      %v1057 = vsel %vm717, %v1010, 0
      %v1060 = vsel %vm766, %v279, 0
      %1062 = vmatprep.subr.bf16.mxu0 0
      %1063 = vmatpush1.bf16.msra.mxu0 %v1060
      %1064 = vmatprep.subr.bf16.mxu0 0
      %1065 = vmatpush1.bf16.msra.mxu0 0
      %1066 = vmatprep.subr.bf16.mxu0 0
      %1067 = vmatpush1.bf16.msra.mxu0 0
      %1068 = vmatprep.subr.bf16.mxu0 0
      %1069 = vmatpush1.bf16.msra.mxu0 0
      %1070 = vmatprep.subr.bf16.mxu0 0
      %1071 = vmatpush1.bf16.msra.mxu0 0
      %1072 = vmatprep.subr.bf16.mxu0 0
      %1073 = vmatpush1.bf16.msra.mxu0 0
      %1074 = vmatprep.subr.bf16.mxu0 0
      %1075 = vmatpush1.bf16.msra.mxu0 0
      %1076 = vmatprep.subr.bf16.mxu0 0
      %1077 = vmatpush1.bf16.msra.mxu0 0
      %1078 = vmatprep.subr.bf16.mxu0 0
      %1079 = vmatpush1.bf16.msra.mxu0 0
      %1080 = vmatprep.subr.bf16.mxu0 0
      %1081 = vmatpush1.bf16.msra.mxu0 0
      %1082 = vmatprep.subr.bf16.mxu0 0
      %1083 = vmatpush1.bf16.msra.mxu0 0
      %1084 = vmatprep.subr.bf16.mxu0 0
      %1085 = vmatpush1.bf16.msra.mxu0 0
      %1086 = vmatprep.subr.bf16.mxu0 0
      %1087 = vmatpush1.bf16.msra.mxu0 0
      %1088 = vmatprep.subr.bf16.mxu0 0
      %1089 = vmatpush1.bf16.msra.mxu0 0
      %1090 = vmatprep.subr.bf16.mxu0 0
      %1091 = vmatpush1.bf16.msra.mxu0 0
      %1092 = vmatprep.subr.bf16.mxu0 0
      %1093 = vmatpush1.bf16.msra.mxu0 0
      %1094 = vmatprep.mubr.bf16.mxu0 0
      %1095 = vmatmul.mubr.bf16.gmra.mrb[0].mxu0 %v1012
      %v1096 = vpop.f32.mrb[0].mxu0
      %v1097 = vadd.f32 %v805, %v1096
      %v1098 = vpop.f32.mrb[0].mxu0
      %v1099 = vpop.f32.mrb[0].mxu0
      %v1100 = vadd.f32 %v808, %v1099
      %v1101 = vpop.f32.mrb[0].mxu0
      %1102 = vmatprep.mubr.bf16.mxu0 0
      %1103 = vmatmul.mubr.bf16.gmra.mrb[0].mxu0 %v1015
      %v1104 = vpop.f32.mrb[0].mxu0
      %v1105 = vadd.f32 %v813, %v1104
      %v1106 = vpop.f32.mrb[0].mxu0
      %v1107 = vpop.f32.mrb[0].mxu0
      %v1108 = vadd.f32 %v816, %v1107
      %v1109 = vpop.f32.mrb[0].mxu0
      %1110 = vmatprep.mubr.bf16.mxu0 0
      %1111 = vmatmul.mubr.bf16.gmra.mrb[0].mxu0 %v1018
      %v1112 = vpop.f32.mrb[0].mxu0
      %v1113 = vadd.f32 %v821, %v1112
      %v1114 = vpop.f32.mrb[0].mxu0
      %v1115 = vpop.f32.mrb[0].mxu0
      %v1116 = vadd.f32 %v824, %v1115
      %v1117 = vpop.f32.mrb[0].mxu0
      %1118 = vmatprep.mubr.bf16.mxu0 0
      %1119 = vmatmul.mubr.bf16.gmra.mrb[0].mxu0 %v1021
      %v1120 = vpop.f32.mrb[0].mxu0
      %v1121 = vadd.f32 %v829, %v1120
      %v1122 = vpop.f32.mrb[0].mxu0
      %v1123 = vpop.f32.mrb[0].mxu0
      %v1124 = vadd.f32 %v832, %v1123
      %v1125 = vpop.f32.mrb[0].mxu0
      %1126 = vmatprep.mubr.bf16.mxu0 0
      %1127 = vmatmul.mubr.bf16.gmra.mrb[0].mxu0 %v1024
      %v1128 = vpop.f32.mrb[0].mxu0
      %v1129 = vadd.f32 %v837, %v1128
      %v1130 = vpop.f32.mrb[0].mxu0
      %v1131 = vpop.f32.mrb[0].mxu0
      %v1132 = vadd.f32 %v840, %v1131
      %v1133 = vpop.f32.mrb[0].mxu0
      %1134 = vmatprep.mubr.bf16.mxu0 0
      %1135 = vmatmul.mubr.bf16.gmra.mrb[0].mxu0 %v1027
      %v1136 = vpop.f32.mrb[0].mxu0
      %v1137 = vadd.f32 %v845, %v1136
      %v1138 = vpop.f32.mrb[0].mxu0
      %v1139 = vpop.f32.mrb[0].mxu0
      %v1140 = vadd.f32 %v848, %v1139
      %v1141 = vpop.f32.mrb[0].mxu0
      %1142 = vmatprep.mubr.bf16.mxu0 0
      %1143 = vmatmul.mubr.bf16.gmra.mrb[0].mxu0 %v1030
      %v1144 = vpop.f32.mrb[0].mxu0
      %v1145 = vadd.f32 %v853, %v1144
      %v1146 = vpop.f32.mrb[0].mxu0
      %v1147 = vpop.f32.mrb[0].mxu0
      %v1148 = vadd.f32 %v856, %v1147
      %v1149 = vpop.f32.mrb[0].mxu0
      %1150 = vmatprep.mubr.bf16.mxu0 0
      %1151 = vmatmul.mubr.bf16.gmra.mrb[0].mxu0 %v1033
      %v1152 = vpop.f32.mrb[0].mxu0
      %v1153 = vadd.f32 %v861, %v1152
      %v1154 = vpop.f32.mrb[0].mxu0
      %v1155 = vpop.f32.mrb[0].mxu0
      %v1156 = vadd.f32 %v864, %v1155
      %v1157 = vpop.f32.mrb[0].mxu0
      %1158 = vmatprep.mubr.bf16.mxu0 0
      %1159 = vmatmul.mubr.bf16.gmra.mrb[0].mxu0 %v1036
      %v1160 = vpop.f32.mrb[0].mxu0
      %v1161 = vadd.f32 %v869, %v1160
      %v1162 = vpop.f32.mrb[0].mxu0
      %v1163 = vpop.f32.mrb[0].mxu0
      %v1164 = vadd.f32 %v872, %v1163
      %v1165 = vpop.f32.mrb[0].mxu0
      %1166 = vmatprep.mubr.bf16.mxu0 0
      %1167 = vmatmul.mubr.bf16.gmra.mrb[0].mxu0 %v1039
      %v1168 = vpop.f32.mrb[0].mxu0
      %v1169 = vadd.f32 %v877, %v1168
      %v1170 = vpop.f32.mrb[0].mxu0
      %v1171 = vpop.f32.mrb[0].mxu0
      %v1172 = vadd.f32 %v880, %v1171
      %v1173 = vpop.f32.mrb[0].mxu0
      %1174 = vmatprep.mubr.bf16.mxu0 0
      %1175 = vmatmul.mubr.bf16.gmra.mrb[0].mxu0 %v1042
      %v1176 = vpop.f32.mrb[0].mxu0
      %v1177 = vadd.f32 %v885, %v1176
      %v1178 = vpop.f32.mrb[0].mxu0
      %v1179 = vpop.f32.mrb[0].mxu0
      %v1180 = vadd.f32 %v888, %v1179
      %v1181 = vpop.f32.mrb[0].mxu0
      %1182 = vmatprep.mubr.bf16.mxu0 0
      %1183 = vmatmul.mubr.bf16.gmra.mrb[0].mxu0 %v1045
      %v1184 = vpop.f32.mrb[0].mxu0
      %v1185 = vadd.f32 %v893, %v1184
      %v1186 = vpop.f32.mrb[0].mxu0
      %v1187 = vpop.f32.mrb[0].mxu0
      %v1188 = vadd.f32 %v896, %v1187
      %v1189 = vpop.f32.mrb[0].mxu0
      %1190 = vmatprep.mubr.bf16.mxu0 0
      %1191 = vmatmul.mubr.bf16.gmra.mrb[0].mxu0 %v1048
      %v1192 = vpop.f32.mrb[0].mxu0
      %v1193 = vadd.f32 %v901, %v1192
      %v1194 = vpop.f32.mrb[0].mxu0
      %v1195 = vpop.f32.mrb[0].mxu0
      %v1196 = vadd.f32 %v904, %v1195
      %v1197 = vpop.f32.mrb[0].mxu0
      %1198 = vmatprep.mubr.bf16.mxu0 0
      %1199 = vmatmul.mubr.bf16.gmra.mrb[0].mxu0 %v1051
      %v1200 = vpop.f32.mrb[0].mxu0
      %v1201 = vadd.f32 %v909, %v1200
      %v1202 = vpop.f32.mrb[0].mxu0
      %v1203 = vpop.f32.mrb[0].mxu0
      %v1204 = vadd.f32 %v912, %v1203
      %v1205 = vpop.f32.mrb[0].mxu0
      %1206 = vmatprep.mubr.bf16.mxu0 0
      %1207 = vmatmul.mubr.bf16.gmra.mrb[0].mxu0 %v1054
      %v1208 = vpop.f32.mrb[0].mxu0
      %v1209 = vadd.f32 %v917, %v1208
      %v1210 = vpop.f32.mrb[0].mxu0
      %v1211 = vpop.f32.mrb[0].mxu0
      %v1212 = vadd.f32 %v920, %v1211
      %v1213 = vpop.f32.mrb[0].mxu0
      %1214 = vmatprep.mubr.bf16.mxu0 0
      %1215 = vmatmul.mubr.bf16.gmra.mrb[0].mxu0 %v1057
      %v1216 = vpop.f32.mrb[0].mxu0
      %v1217 = vadd.f32 %v925, %v1216
      %v1218 = vpop.f32.mrb[0].mxu0
      %v1219 = vpop.f32.mrb[0].mxu0
      %v1220 = vadd.f32 %v928, %v1219
      %v1221 = vpop.f32.mrb[0].mxu0
      %1222 = vdwg.mxu0
      %vm1239 = vcmask 1042432
      %vm1240 = vcmask 1046532
      %vm1241 = vmor %vm1239, %vm1240
      %v1242 = vrot.slane %v225, 5
      %v1243 = vrot.slane %v1242, 4
      %v1244 = vrot.slane %v226, 5
      %v1245 = vsel %vm1241, %v1243, %v1244
      %v1246 = vrot.slane %v1244, 4
      %v1247 = vrot.slane %v227, 5
      %v1248 = vsel %vm1241, %v1246, %v1247
      %v1249 = vrot.slane %v228, 5
      %v1250 = vrot.slane %v1249, 4
      %v1251 = vrot.slane %v229, 5
      %v1252 = vsel %vm1241, %v1250, %v1251
      %v1253 = vrot.slane %v1251, 4
      %v1254 = vrot.slane %v230, 5
      %v1255 = vsel %vm1241, %v1253, %v1254
      %v1256 = vrot.slane %v231, 5
      %v1257 = vrot.slane %v1256, 4
      %v1258 = vrot.slane %v232, 5
      %v1259 = vsel %vm1241, %v1257, %v1258
      %v1260 = vrot.slane %v1258, 4
      %v1261 = vrot.slane %v233, 5
      %v1262 = vsel %vm1241, %v1260, %v1261
      %v1263 = vrot.slane %v234, 5
      %v1264 = vrot.slane %v1263, 4
      %v1265 = vrot.slane %v235, 5
      %v1266 = vsel %vm1241, %v1264, %v1265
      %v1267 = vrot.slane %v1265, 4
      %v1268 = vrot.slane %v236, 5
      %v1269 = vsel %vm1241, %v1267, %v1268
      %v1270 = vrot.slane %v237, 5
      %v1271 = vrot.slane %v1270, 4
      %v1272 = vrot.slane %v238, 5
      %v1273 = vsel %vm1241, %v1271, %v1272
      %v1274 = vrot.slane %v1272, 4
      %v1275 = vrot.slane %v239, 5
      %v1276 = vsel %vm1241, %v1274, %v1275
      %v1277 = vrot.slane %v240, 5
      %v1278 = vrot.slane %v1277, 4
      %v1279 = vrot.slane %v241, 5
      %v1280 = vsel %vm1241, %v1278, %v1279
      %v1281 = vrot.slane %v1279, 4
      %v1282 = vrot.slane %v242, 5
      %v1283 = vsel %vm1241, %v1281, %v1282
      %v1284 = vrot.slane %v243, 5
      %v1285 = vrot.slane %v1284, 4
      %v1286 = vrot.slane %v244, 5
      %v1287 = vsel %vm1241, %v1285, %v1286
      %v1288 = vrot.slane %v1286, 4
      %v1289 = vrot.slane %v245, 5
      %v1290 = vsel %vm1241, %v1288, %v1289
      %v1291 = vrot.slane %v246, 5
      %v1292 = vrot.slane %v1291, 4
      %v1293 = vrot.slane %v247, 5
      %v1294 = vsel %vm1241, %v1292, %v1293
      %v1295 = vrot.slane %v1293, 4
      %v1296 = vrot.slane %v248, 5
      %v1297 = vsel %vm1241, %v1295, %v1296
      %v1298 = vrot.slane %v249, 5
      %v1299 = vrot.slane %v1298, 4
      %v1300 = vrot.slane %v250, 5
      %v1301 = vsel %vm1241, %v1299, %v1300
      %v1302 = vrot.slane %v1300, 4
      %v1303 = vrot.slane %v251, 5
      %v1304 = vsel %vm1241, %v1302, %v1303
      %v1305 = vrot.slane %v252, 5
      %v1306 = vrot.slane %v1305, 4
      %v1307 = vrot.slane %v253, 5
      %v1308 = vsel %vm1241, %v1306, %v1307
      %v1309 = vrot.slane %v1307, 4
      %v1310 = vrot.slane %v254, 5
      %v1311 = vsel %vm1241, %v1309, %v1310
      %v1312 = vrot.slane %v255, 5
      %v1313 = vrot.slane %v1312, 4
      %v1314 = vrot.slane %v256, 5
      %v1315 = vsel %vm1241, %v1313, %v1314
      %v1316 = vrot.slane %v1314, 4
      %v1317 = vrot.slane %v257, 5
      %v1318 = vsel %vm1241, %v1316, %v1317
      %v1319 = vrot.slane %v258, 5
      %v1320 = vrot.slane %v1319, 4
      %v1321 = vrot.slane %v259, 5
      %v1322 = vsel %vm1241, %v1320, %v1321
      %v1323 = vrot.slane %v1321, 4
      %v1324 = vrot.slane %v260, 5
      %v1325 = vsel %vm1241, %v1323, %v1324
      %v1326 = vrot.slane %v261, 5
      %v1327 = vrot.slane %v1326, 4
      %v1328 = vrot.slane %v262, 5
      %v1329 = vsel %vm1241, %v1327, %v1328
      %v1330 = vrot.slane %v1328, 4
      %v1331 = vrot.slane %v263, 5
      %v1332 = vsel %vm1241, %v1330, %v1331
      %v1333 = vrot.slane %v264, 5
      %v1334 = vrot.slane %v1333, 4
      %v1335 = vrot.slane %v265, 5
      %v1336 = vsel %vm1241, %v1334, %v1335
      %v1337 = vrot.slane %v1335, 4
      %v1338 = vrot.slane %v266, 5
      %v1339 = vsel %vm1241, %v1337, %v1338
      %v1340 = vrot.slane %v267, 5
      %v1341 = vrot.slane %v1340, 4
      %v1342 = vrot.slane %v268, 5
      %v1343 = vsel %vm1241, %v1341, %v1342
      %v1344 = vrot.slane %v1342, 4
      %v1345 = vrot.slane %v269, 5
      %v1346 = vsel %vm1241, %v1344, %v1345
      %v1347 = vrot.slane %v270, 5
      %v1348 = vrot.slane %v1347, 4
      %v1349 = vrot.slane %v271, 5
      %v1350 = vsel %vm1241, %v1348, %v1349
      %v1351 = vrot.slane %v1349, 4
      %v1352 = vrot.slane %v272, 5
      %v1353 = vsel %vm1241, %v1351, %v1352
      %s1354 = scalar_lea.vmem %s1, 4
      %v1355 = vld [vmem:[%s1354] sm:$0x3]
      %v1356 = vunpack.c.l.b16 %v1245
      %v1357 = vunpack.c.l.b16 %v1248
      %v1358 = vunpack.c.l.b16 %v1252
      %v1359 = vunpack.c.l.b16 %v1255
      %v1360 = vunpack.c.l.b16 %v1259
      %v1361 = vunpack.c.l.b16 %v1262
      %v1362 = vunpack.c.l.b16 %v1266
      %v1363 = vunpack.c.l.b16 %v1269
      %v1364 = vunpack.c.l.b16 %v1273
      %v1365 = vunpack.c.l.b16 %v1276
      %v1366 = vunpack.c.l.b16 %v1280
      %v1367 = vunpack.c.l.b16 %v1283
      %v1368 = vunpack.c.l.b16 %v1287
      %v1369 = vunpack.c.l.b16 %v1290
      %v1370 = vunpack.c.l.b16 %v1294
      %v1371 = vunpack.c.l.b16 %v1297
      %v1372 = vunpack.c.l.b16 %v1301
      %v1373 = vunpack.c.l.b16 %v1304
      %v1374 = vunpack.c.l.b16 %v1308
      %v1375 = vunpack.c.l.b16 %v1311
      %v1376 = vunpack.c.l.b16 %v1315
      %v1377 = vunpack.c.l.b16 %v1318
      %v1378 = vunpack.c.l.b16 %v1322
      %v1379 = vunpack.c.l.b16 %v1325
      %v1380 = vunpack.c.l.b16 %v1329
      %v1381 = vunpack.c.l.b16 %v1332
      %v1382 = vunpack.c.l.b16 %v1336
      %v1383 = vunpack.c.l.b16 %v1339
      %v1384 = vunpack.c.l.b16 %v1343
      %v1385 = vunpack.c.l.b16 %v1346
      %v1386 = vunpack.c.l.b16 %v1350
      %v1387 = vunpack.c.l.b16 %v1353
      %v1388 = vpack.c.b16 %v1357, %v1356
      %v1389 = vpack.c.b16 %v1359, %v1358
      %v1390 = vpack.c.b16 %v1361, %v1360
      %v1391 = vpack.c.b16 %v1363, %v1362
      %v1392 = vpack.c.b16 %v1365, %v1364
      %v1393 = vpack.c.b16 %v1367, %v1366
      %v1394 = vpack.c.b16 %v1369, %v1368
      %v1395 = vpack.c.b16 %v1371, %v1370
      %v1396 = vpack.c.b16 %v1373, %v1372
      %v1397 = vpack.c.b16 %v1375, %v1374
      %v1398 = vpack.c.b16 %v1377, %v1376
      %v1399 = vpack.c.b16 %v1379, %v1378
      %v1400 = vpack.c.b16 %v1381, %v1380
      %v1401 = vpack.c.b16 %v1383, %v1382
      %v1402 = vpack.c.b16 %v1385, %v1384
      %v1403 = vpack.c.b16 %v1387, %v1386
      %v1405 = vsel %vm717, %v1388, 0
      %v1408 = vsel %vm717, %v1389, 0
      %v1411 = vsel %vm717, %v1390, 0
      %v1414 = vsel %vm717, %v1391, 0
      %v1417 = vsel %vm717, %v1392, 0
      %v1420 = vsel %vm717, %v1393, 0
      %v1423 = vsel %vm717, %v1394, 0
      %v1426 = vsel %vm717, %v1395, 0
      %v1429 = vsel %vm717, %v1396, 0
      %v1432 = vsel %vm717, %v1397, 0
      %v1435 = vsel %vm717, %v1398, 0
      %v1438 = vsel %vm717, %v1399, 0
      %v1441 = vsel %vm717, %v1400, 0
      %v1444 = vsel %vm717, %v1401, 0
      %v1447 = vsel %vm717, %v1402, 0
      %v1450 = vsel %vm717, %v1403, 0
      %v1453 = vsel %vm766, %v1355, 0
      %1455 = vmatprep.subr.bf16.mxu0 0
      %1456 = vmatpush1.bf16.msra.mxu0 %v1453
      %1457 = vmatprep.subr.bf16.mxu0 0
      %1458 = vmatpush1.bf16.msra.mxu0 0
      %1459 = vmatprep.subr.bf16.mxu0 0
      %1460 = vmatpush1.bf16.msra.mxu0 0
      %1461 = vmatprep.subr.bf16.mxu0 0
      %1462 = vmatpush1.bf16.msra.mxu0 0
      %1463 = vmatprep.subr.bf16.mxu0 0
      %1464 = vmatpush1.bf16.msra.mxu0 0
      %1465 = vmatprep.subr.bf16.mxu0 0
      %1466 = vmatpush1.bf16.msra.mxu0 0
      %1467 = vmatprep.subr.bf16.mxu0 0
      %1468 = vmatpush1.bf16.msra.mxu0 0
      %1469 = vmatprep.subr.bf16.mxu0 0
      %1470 = vmatpush1.bf16.msra.mxu0 0
      %1471 = vmatprep.subr.bf16.mxu0 0
      %1472 = vmatpush1.bf16.msra.mxu0 0
      %1473 = vmatprep.subr.bf16.mxu0 0
      %1474 = vmatpush1.bf16.msra.mxu0 0
      %1475 = vmatprep.subr.bf16.mxu0 0
      %1476 = vmatpush1.bf16.msra.mxu0 0
      %1477 = vmatprep.subr.bf16.mxu0 0
      %1478 = vmatpush1.bf16.msra.mxu0 0
      %1479 = vmatprep.subr.bf16.mxu0 0
      %1480 = vmatpush1.bf16.msra.mxu0 0
      %1481 = vmatprep.subr.bf16.mxu0 0
      %1482 = vmatpush1.bf16.msra.mxu0 0
      %1483 = vmatprep.subr.bf16.mxu0 0
      %1484 = vmatpush1.bf16.msra.mxu0 0
      %1485 = vmatprep.subr.bf16.mxu0 0
      %1486 = vmatpush1.bf16.msra.mxu0 0
      %1487 = vmatprep.mubr.bf16.mxu0 0
      %1488 = vmatmul.mubr.bf16.gmra.mrb[0].mxu0 %v1405
      %v1489 = vpop.f32.mrb[0].mxu0
      %v1490 = vadd.f32 0.0, %v1489
      %v1491 = vpop.f32.mrb[0].mxu0
      %v1492 = vpop.f32.mrb[0].mxu0
      %v1493 = vadd.f32 0.0, %v1492
      %v1494 = vpop.f32.mrb[0].mxu0
      %1495 = vmatprep.mubr.bf16.mxu0 0
      %1496 = vmatmul.mubr.bf16.gmra.mrb[0].mxu0 %v1408
      %v1497 = vpop.f32.mrb[0].mxu0
      %v1498 = vadd.f32 0.0, %v1497
      %v1499 = vpop.f32.mrb[0].mxu0
      %v1500 = vpop.f32.mrb[0].mxu0
      %v1501 = vadd.f32 0.0, %v1500
      %v1502 = vpop.f32.mrb[0].mxu0
      %1503 = vmatprep.mubr.bf16.mxu0 0
      %1504 = vmatmul.mubr.bf16.gmra.mrb[0].mxu0 %v1411
      %v1505 = vpop.f32.mrb[0].mxu0
      %v1506 = vadd.f32 0.0, %v1505
      %v1507 = vpop.f32.mrb[0].mxu0
      %v1508 = vpop.f32.mrb[0].mxu0
      %v1509 = vadd.f32 0.0, %v1508
      %v1510 = vpop.f32.mrb[0].mxu0
      %1511 = vmatprep.mubr.bf16.mxu0 0
      %1512 = vmatmul.mubr.bf16.gmra.mrb[0].mxu0 %v1414
      %v1513 = vpop.f32.mrb[0].mxu0
      %v1514 = vadd.f32 0.0, %v1513
      %v1515 = vpop.f32.mrb[0].mxu0
      %v1516 = vpop.f32.mrb[0].mxu0
      %v1517 = vadd.f32 0.0, %v1516
      %v1518 = vpop.f32.mrb[0].mxu0
      %1519 = vmatprep.mubr.bf16.mxu0 0
      %1520 = vmatmul.mubr.bf16.gmra.mrb[0].mxu0 %v1417
      %v1521 = vpop.f32.mrb[0].mxu0
      %v1522 = vadd.f32 0.0, %v1521
      %v1523 = vpop.f32.mrb[0].mxu0
      %v1524 = vpop.f32.mrb[0].mxu0
      %v1525 = vadd.f32 0.0, %v1524
      %v1526 = vpop.f32.mrb[0].mxu0
      %1527 = vmatprep.mubr.bf16.mxu0 0
      %1528 = vmatmul.mubr.bf16.gmra.mrb[0].mxu0 %v1420
      %v1529 = vpop.f32.mrb[0].mxu0
      %v1530 = vadd.f32 0.0, %v1529
      %v1531 = vpop.f32.mrb[0].mxu0
      %v1532 = vpop.f32.mrb[0].mxu0
      %v1533 = vadd.f32 0.0, %v1532
      %v1534 = vpop.f32.mrb[0].mxu0
      %1535 = vmatprep.mubr.bf16.mxu0 0
      %1536 = vmatmul.mubr.bf16.gmra.mrb[0].mxu0 %v1423
      %v1537 = vpop.f32.mrb[0].mxu0
      %v1538 = vadd.f32 0.0, %v1537
      %v1539 = vpop.f32.mrb[0].mxu0
      %v1540 = vpop.f32.mrb[0].mxu0
      %v1541 = vadd.f32 0.0, %v1540
      %v1542 = vpop.f32.mrb[0].mxu0
      %1543 = vmatprep.mubr.bf16.mxu0 0
      %1544 = vmatmul.mubr.bf16.gmra.mrb[0].mxu0 %v1426
      %v1545 = vpop.f32.mrb[0].mxu0
      %v1546 = vadd.f32 0.0, %v1545
      %v1547 = vpop.f32.mrb[0].mxu0
      %v1548 = vpop.f32.mrb[0].mxu0
      %v1549 = vadd.f32 0.0, %v1548
      %v1550 = vpop.f32.mrb[0].mxu0
      %1551 = vmatprep.mubr.bf16.mxu0 0
      %1552 = vmatmul.mubr.bf16.gmra.mrb[0].mxu0 %v1429
      %v1553 = vpop.f32.mrb[0].mxu0
      %v1554 = vadd.f32 0.0, %v1553
      %v1555 = vpop.f32.mrb[0].mxu0
      %v1556 = vpop.f32.mrb[0].mxu0
      %v1557 = vadd.f32 0.0, %v1556
      %v1558 = vpop.f32.mrb[0].mxu0
      %1559 = vmatprep.mubr.bf16.mxu0 0
      %1560 = vmatmul.mubr.bf16.gmra.mrb[0].mxu0 %v1432
      %v1561 = vpop.f32.mrb[0].mxu0
      %v1562 = vadd.f32 0.0, %v1561
      %v1563 = vpop.f32.mrb[0].mxu0
      %v1564 = vpop.f32.mrb[0].mxu0
      %v1565 = vadd.f32 0.0, %v1564
      %v1566 = vpop.f32.mrb[0].mxu0
      %1567 = vmatprep.mubr.bf16.mxu0 0
      %1568 = vmatmul.mubr.bf16.gmra.mrb[0].mxu0 %v1435
      %v1569 = vpop.f32.mrb[0].mxu0
      %v1570 = vadd.f32 0.0, %v1569
      %v1571 = vpop.f32.mrb[0].mxu0
      %v1572 = vpop.f32.mrb[0].mxu0
      %v1573 = vadd.f32 0.0, %v1572
      %v1574 = vpop.f32.mrb[0].mxu0
      %1575 = vmatprep.mubr.bf16.mxu0 0
      %1576 = vmatmul.mubr.bf16.gmra.mrb[0].mxu0 %v1438
      %v1577 = vpop.f32.mrb[0].mxu0
      %v1578 = vadd.f32 0.0, %v1577
      %v1579 = vpop.f32.mrb[0].mxu0
      %v1580 = vpop.f32.mrb[0].mxu0
      %v1581 = vadd.f32 0.0, %v1580
      %v1582 = vpop.f32.mrb[0].mxu0
      %1583 = vmatprep.mubr.bf16.mxu0 0
      %1584 = vmatmul.mubr.bf16.gmra.mrb[0].mxu0 %v1441
      %v1585 = vpop.f32.mrb[0].mxu0
      %v1586 = vadd.f32 0.0, %v1585
      %v1587 = vpop.f32.mrb[0].mxu0
      %v1588 = vpop.f32.mrb[0].mxu0
      %v1589 = vadd.f32 0.0, %v1588
      %v1590 = vpop.f32.mrb[0].mxu0
      %1591 = vmatprep.mubr.bf16.mxu0 0
      %1592 = vmatmul.mubr.bf16.gmra.mrb[0].mxu0 %v1444
      %v1593 = vpop.f32.mrb[0].mxu0
      %v1594 = vadd.f32 0.0, %v1593
      %v1595 = vpop.f32.mrb[0].mxu0
      %v1596 = vpop.f32.mrb[0].mxu0
      %v1597 = vadd.f32 0.0, %v1596
      %v1598 = vpop.f32.mrb[0].mxu0
      %1599 = vmatprep.mubr.bf16.mxu0 0
      %1600 = vmatmul.mubr.bf16.gmra.mrb[0].mxu0 %v1447
      %v1601 = vpop.f32.mrb[0].mxu0
      %v1602 = vadd.f32 0.0, %v1601
      %v1603 = vpop.f32.mrb[0].mxu0
      %v1604 = vpop.f32.mrb[0].mxu0
      %v1605 = vadd.f32 0.0, %v1604
      %v1606 = vpop.f32.mrb[0].mxu0
      %1607 = vmatprep.mubr.bf16.mxu0 0
      %1608 = vmatmul.mubr.bf16.gmra.mrb[0].mxu0 %v1450
      %v1609 = vpop.f32.mrb[0].mxu0
      %v1610 = vadd.f32 0.0, %v1609
      %v1611 = vpop.f32.mrb[0].mxu0
      %v1612 = vpop.f32.mrb[0].mxu0
      %v1613 = vadd.f32 0.0, %v1612
      %v1614 = vpop.f32.mrb[0].mxu0
      %1615 = vdwg.mxu0
      %v1616 = vadd.f32 %v1097, %v1490
      %v1617 = vadd.f32 %v1100, %v1493
      %v1618 = vadd.f32 %v1105, %v1498
      %v1619 = vadd.f32 %v1108, %v1501
      %v1620 = vadd.f32 %v1113, %v1506
      %v1621 = vadd.f32 %v1116, %v1509
      %v1622 = vadd.f32 %v1121, %v1514
      %v1623 = vadd.f32 %v1124, %v1517
      %v1624 = vadd.f32 %v1129, %v1522
      %v1625 = vadd.f32 %v1132, %v1525
      %v1626 = vadd.f32 %v1137, %v1530
      %v1627 = vadd.f32 %v1140, %v1533
      %v1628 = vadd.f32 %v1145, %v1538
      %v1629 = vadd.f32 %v1148, %v1541
      %v1630 = vadd.f32 %v1153, %v1546
      %v1631 = vadd.f32 %v1156, %v1549
      %v1632 = vadd.f32 %v1161, %v1554
      %v1633 = vadd.f32 %v1164, %v1557
      %v1634 = vadd.f32 %v1169, %v1562
      %v1635 = vadd.f32 %v1172, %v1565
      %v1636 = vadd.f32 %v1177, %v1570
      %v1637 = vadd.f32 %v1180, %v1573
      %v1638 = vadd.f32 %v1185, %v1578
      %v1639 = vadd.f32 %v1188, %v1581
      %v1640 = vadd.f32 %v1193, %v1586
      %v1641 = vadd.f32 %v1196, %v1589
      %v1642 = vadd.f32 %v1201, %v1594
      %v1643 = vadd.f32 %v1204, %v1597
      %v1644 = vadd.f32 %v1209, %v1602
      %v1645 = vadd.f32 %v1212, %v1605
      %v1646 = vadd.f32 %v1217, %v1610
      %v1647 = vadd.f32 %v1220, %v1613
      %s1648 = scalar_lea.vmem %s1, 6
      %v1649 = vld [vmem:[%s1648] sm:$0x3]
      %v1652 = vunpack.c.l.b16 %v273
      %v1653 = vunpack.c.l.b16 %v274
      %v1654 = vpack.c.b16 %v1653, %v1652
      %v1656 = vsel %vm717, %v1654, 0
      %v1659 = vsel %vm766, %v1649, 0
      %1661 = vmatprep.subr.bf16.mxu0 0
      %1662 = vmatpush1.bf16.msra.mxu0 %v1659
      %1663 = vmatprep.subr.bf16.mxu0 0
      %1664 = vmatpush1.bf16.msra.mxu0 0
      %1665 = vmatprep.subr.bf16.mxu0 0
      %1666 = vmatpush1.bf16.msra.mxu0 0
      %1667 = vmatprep.subr.bf16.mxu0 0
      %1668 = vmatpush1.bf16.msra.mxu0 0
      %1669 = vmatprep.subr.bf16.mxu0 0
      %1670 = vmatpush1.bf16.msra.mxu0 0
      %1671 = vmatprep.subr.bf16.mxu0 0
      %1672 = vmatpush1.bf16.msra.mxu0 0
      %1673 = vmatprep.subr.bf16.mxu0 0
      %1674 = vmatpush1.bf16.msra.mxu0 0
      %1675 = vmatprep.subr.bf16.mxu0 0
      %1676 = vmatpush1.bf16.msra.mxu0 0
      %1677 = vmatprep.subr.bf16.mxu0 0
      %1678 = vmatpush1.bf16.msra.mxu0 0
      %1679 = vmatprep.subr.bf16.mxu0 0
      %1680 = vmatpush1.bf16.msra.mxu0 0
      %1681 = vmatprep.subr.bf16.mxu0 0
      %1682 = vmatpush1.bf16.msra.mxu0 0
      %1683 = vmatprep.subr.bf16.mxu0 0
      %1684 = vmatpush1.bf16.msra.mxu0 0
      %1685 = vmatprep.subr.bf16.mxu0 0
      %1686 = vmatpush1.bf16.msra.mxu0 0
      %1687 = vmatprep.subr.bf16.mxu0 0
      %1688 = vmatpush1.bf16.msra.mxu0 0
      %1689 = vmatprep.subr.bf16.mxu0 0
      %1690 = vmatpush1.bf16.msra.mxu0 0
      %1691 = vmatprep.subr.bf16.mxu0 0
      %1692 = vmatpush1.bf16.msra.mxu0 0
      %1693 = vmatprep.mubr.bf16.mxu0 0
      %1694 = vmatmul.mubr.bf16.gmra.mrb[0].mxu0 %v1015
      %v1695 = vpop.f32.mrb[0].mxu0
      %v1696 = vadd.f32 0.0, %v1695
      %v1697 = vpop.f32.mrb[0].mxu0
      %v1698 = vpop.f32.mrb[0].mxu0
      %v1699 = vadd.f32 0.0, %v1698
      %v1700 = vpop.f32.mrb[0].mxu0
      %1701 = vmatprep.mubr.bf16.mxu0 0
      %1702 = vmatmul.mubr.bf16.gmra.mrb[0].mxu0 %v1018
      %v1703 = vpop.f32.mrb[0].mxu0
      %v1704 = vadd.f32 0.0, %v1703
      %v1705 = vpop.f32.mrb[0].mxu0
      %v1706 = vpop.f32.mrb[0].mxu0
      %v1707 = vadd.f32 0.0, %v1706
      %v1708 = vpop.f32.mrb[0].mxu0
      %1709 = vmatprep.mubr.bf16.mxu0 0
      %1710 = vmatmul.mubr.bf16.gmra.mrb[0].mxu0 %v1021
      %v1711 = vpop.f32.mrb[0].mxu0
      %v1712 = vadd.f32 0.0, %v1711
      %v1713 = vpop.f32.mrb[0].mxu0
      %v1714 = vpop.f32.mrb[0].mxu0
      %v1715 = vadd.f32 0.0, %v1714
      %v1716 = vpop.f32.mrb[0].mxu0
      %1717 = vmatprep.mubr.bf16.mxu0 0
      %1718 = vmatmul.mubr.bf16.gmra.mrb[0].mxu0 %v1024
      %v1719 = vpop.f32.mrb[0].mxu0
      %v1720 = vadd.f32 0.0, %v1719
      %v1721 = vpop.f32.mrb[0].mxu0
      %v1722 = vpop.f32.mrb[0].mxu0
      %v1723 = vadd.f32 0.0, %v1722
      %v1724 = vpop.f32.mrb[0].mxu0
      %1725 = vmatprep.mubr.bf16.mxu0 0
      %1726 = vmatmul.mubr.bf16.gmra.mrb[0].mxu0 %v1027
      %v1727 = vpop.f32.mrb[0].mxu0
      %v1728 = vadd.f32 0.0, %v1727
      %v1729 = vpop.f32.mrb[0].mxu0
      %v1730 = vpop.f32.mrb[0].mxu0
      %v1731 = vadd.f32 0.0, %v1730
      %v1732 = vpop.f32.mrb[0].mxu0
      %1733 = vmatprep.mubr.bf16.mxu0 0
      %1734 = vmatmul.mubr.bf16.gmra.mrb[0].mxu0 %v1030
      %v1735 = vpop.f32.mrb[0].mxu0
      %v1736 = vadd.f32 0.0, %v1735
      %v1737 = vpop.f32.mrb[0].mxu0
      %v1738 = vpop.f32.mrb[0].mxu0
      %v1739 = vadd.f32 0.0, %v1738
      %v1740 = vpop.f32.mrb[0].mxu0
      %1741 = vmatprep.mubr.bf16.mxu0 0
      %1742 = vmatmul.mubr.bf16.gmra.mrb[0].mxu0 %v1033
      %v1743 = vpop.f32.mrb[0].mxu0
      %v1744 = vadd.f32 0.0, %v1743
      %v1745 = vpop.f32.mrb[0].mxu0
      %v1746 = vpop.f32.mrb[0].mxu0
      %v1747 = vadd.f32 0.0, %v1746
      %v1748 = vpop.f32.mrb[0].mxu0
      %1749 = vmatprep.mubr.bf16.mxu0 0
      %1750 = vmatmul.mubr.bf16.gmra.mrb[0].mxu0 %v1036
      %v1751 = vpop.f32.mrb[0].mxu0
      %v1752 = vadd.f32 0.0, %v1751
      %v1753 = vpop.f32.mrb[0].mxu0
      %v1754 = vpop.f32.mrb[0].mxu0
      %v1755 = vadd.f32 0.0, %v1754
      %v1756 = vpop.f32.mrb[0].mxu0
      %1757 = vmatprep.mubr.bf16.mxu0 0
      %1758 = vmatmul.mubr.bf16.gmra.mrb[0].mxu0 %v1039
      %v1759 = vpop.f32.mrb[0].mxu0
      %v1760 = vadd.f32 0.0, %v1759
      %v1761 = vpop.f32.mrb[0].mxu0
      %v1762 = vpop.f32.mrb[0].mxu0
      %v1763 = vadd.f32 0.0, %v1762
      %v1764 = vpop.f32.mrb[0].mxu0
      %1765 = vmatprep.mubr.bf16.mxu0 0
      %1766 = vmatmul.mubr.bf16.gmra.mrb[0].mxu0 %v1042
      %v1767 = vpop.f32.mrb[0].mxu0
      %v1768 = vadd.f32 0.0, %v1767
      %v1769 = vpop.f32.mrb[0].mxu0
      %v1770 = vpop.f32.mrb[0].mxu0
      %v1771 = vadd.f32 0.0, %v1770
      %v1772 = vpop.f32.mrb[0].mxu0
      %1773 = vmatprep.mubr.bf16.mxu0 0
      %1774 = vmatmul.mubr.bf16.gmra.mrb[0].mxu0 %v1045
      %v1775 = vpop.f32.mrb[0].mxu0
      %v1776 = vadd.f32 0.0, %v1775
      %v1777 = vpop.f32.mrb[0].mxu0
      %v1778 = vpop.f32.mrb[0].mxu0
      %v1779 = vadd.f32 0.0, %v1778
      %v1780 = vpop.f32.mrb[0].mxu0
      %1781 = vmatprep.mubr.bf16.mxu0 0
      %1782 = vmatmul.mubr.bf16.gmra.mrb[0].mxu0 %v1048
      %v1783 = vpop.f32.mrb[0].mxu0
      %v1784 = vadd.f32 0.0, %v1783
      %v1785 = vpop.f32.mrb[0].mxu0
      %v1786 = vpop.f32.mrb[0].mxu0
      %v1787 = vadd.f32 0.0, %v1786
      %v1788 = vpop.f32.mrb[0].mxu0
      %1789 = vmatprep.mubr.bf16.mxu0 0
      %1790 = vmatmul.mubr.bf16.gmra.mrb[0].mxu0 %v1051
      %v1791 = vpop.f32.mrb[0].mxu0
      %v1792 = vadd.f32 0.0, %v1791
      %v1793 = vpop.f32.mrb[0].mxu0
      %v1794 = vpop.f32.mrb[0].mxu0
      %v1795 = vadd.f32 0.0, %v1794
      %v1796 = vpop.f32.mrb[0].mxu0
      %1797 = vmatprep.mubr.bf16.mxu0 0
      %1798 = vmatmul.mubr.bf16.gmra.mrb[0].mxu0 %v1054
      %v1799 = vpop.f32.mrb[0].mxu0
      %v1800 = vadd.f32 0.0, %v1799
      %v1801 = vpop.f32.mrb[0].mxu0
      %v1802 = vpop.f32.mrb[0].mxu0
      %v1803 = vadd.f32 0.0, %v1802
      %v1804 = vpop.f32.mrb[0].mxu0
      %1805 = vmatprep.mubr.bf16.mxu0 0
      %1806 = vmatmul.mubr.bf16.gmra.mrb[0].mxu0 %v1057
      %v1807 = vpop.f32.mrb[0].mxu0
      %v1808 = vadd.f32 0.0, %v1807
      %v1809 = vpop.f32.mrb[0].mxu0
      %v1810 = vpop.f32.mrb[0].mxu0
      %v1811 = vadd.f32 0.0, %v1810
      %v1812 = vpop.f32.mrb[0].mxu0
      %1813 = vmatprep.mubr.bf16.mxu0 0
      %1814 = vmatmul.mubr.bf16.gmra.mrb[0].mxu0 %v1656
      %v1815 = vpop.f32.mrb[0].mxu0
      %v1816 = vadd.f32 0.0, %v1815
      %v1817 = vpop.f32.mrb[0].mxu0
      %v1818 = vpop.f32.mrb[0].mxu0
      %v1819 = vadd.f32 0.0, %v1818
      %v1820 = vpop.f32.mrb[0].mxu0
      %1821 = vdwg.mxu0
      %v1822 = vadd.f32 %v1616, %v1696
      %v1823 = vadd.f32 %v1617, %v1699
      %v1824 = vadd.f32 %v1618, %v1704
      %v1825 = vadd.f32 %v1619, %v1707
      %v1826 = vadd.f32 %v1620, %v1712
      %v1827 = vadd.f32 %v1621, %v1715
      %v1828 = vadd.f32 %v1622, %v1720
      %v1829 = vadd.f32 %v1623, %v1723
      %v1830 = vadd.f32 %v1624, %v1728
      %v1831 = vadd.f32 %v1625, %v1731
      %v1832 = vadd.f32 %v1626, %v1736
      %v1833 = vadd.f32 %v1627, %v1739
      %v1834 = vadd.f32 %v1628, %v1744
      %v1835 = vadd.f32 %v1629, %v1747
      %v1836 = vadd.f32 %v1630, %v1752
      %v1837 = vadd.f32 %v1631, %v1755
      %v1838 = vadd.f32 %v1632, %v1760
      %v1839 = vadd.f32 %v1633, %v1763
      %v1840 = vadd.f32 %v1634, %v1768
      %v1841 = vadd.f32 %v1635, %v1771
      %v1842 = vadd.f32 %v1636, %v1776
      %v1843 = vadd.f32 %v1637, %v1779
      %v1844 = vadd.f32 %v1638, %v1784
      %v1845 = vadd.f32 %v1639, %v1787
      %v1846 = vadd.f32 %v1640, %v1792
      %v1847 = vadd.f32 %v1641, %v1795
      %v1848 = vadd.f32 %v1642, %v1800
      %v1849 = vadd.f32 %v1643, %v1803
      %v1850 = vadd.f32 %v1644, %v1808
      %v1851 = vadd.f32 %v1645, %v1811
      %v1852 = vadd.f32 %v1646, %v1816
      %v1853 = vadd.f32 %v1647, %v1819
      %v1855 = vshrl.u32 %v273, 16
      %v1857 = vrot.slane %v1855, 4
      %v1858 = vshll.u32 %v273, 16
      %v1860 = vrot.slane %v1858, 5
      %v1861 = vor.u32 %v1857, %v1860
      %v1862 = vrot.slane %v1861, 4
      %v1864 = vshll.u32 %v274, 16
      %v1866 = vrot.slane %v1864, 5
      %v1867 = vsel %vm282, %v1862, %v1866
      %v1868 = vshrl.u32 %v274, 16
      %v1870 = vrot.slane %v1868, 4
      %v1871 = vor.u32 %v1870, %v1866
      %v1872 = vrot.slane %v1871, 4
      %v1874 = vshll.u32 %v275, 16
      %v1876 = vrot.slane %v1874, 5
      %v1877 = vsel %vm282, %v1872, %v1876
      %s1878 = scalar_lea.vmem %s1, 8
      %v1879 = vld [vmem:[%s1878] sm:$0x3]
      %v1880 = vunpack.c.l.b16 %v1867
      %v1881 = vunpack.c.l.b16 %v1877
      %v1882 = vpack.c.b16 %v1881, %v1880
      %v1884 = vsel %vm717, %v1882, 0
      %v1887 = vsel %vm766, %v1879, 0
      %1889 = vmatprep.subr.bf16.mxu0 0
      %1890 = vmatpush1.bf16.msra.mxu0 %v1887
      %1891 = vmatprep.subr.bf16.mxu0 0
      %1892 = vmatpush1.bf16.msra.mxu0 0
      %1893 = vmatprep.subr.bf16.mxu0 0
      %1894 = vmatpush1.bf16.msra.mxu0 0
      %1895 = vmatprep.subr.bf16.mxu0 0
      %1896 = vmatpush1.bf16.msra.mxu0 0
      %1897 = vmatprep.subr.bf16.mxu0 0
      %1898 = vmatpush1.bf16.msra.mxu0 0
      %1899 = vmatprep.subr.bf16.mxu0 0
      %1900 = vmatpush1.bf16.msra.mxu0 0
      %1901 = vmatprep.subr.bf16.mxu0 0
      %1902 = vmatpush1.bf16.msra.mxu0 0
      %1903 = vmatprep.subr.bf16.mxu0 0
      %1904 = vmatpush1.bf16.msra.mxu0 0
      %1905 = vmatprep.subr.bf16.mxu0 0
      %1906 = vmatpush1.bf16.msra.mxu0 0
      %1907 = vmatprep.subr.bf16.mxu0 0
      %1908 = vmatpush1.bf16.msra.mxu0 0
      %1909 = vmatprep.subr.bf16.mxu0 0
      %1910 = vmatpush1.bf16.msra.mxu0 0
      %1911 = vmatprep.subr.bf16.mxu0 0
      %1912 = vmatpush1.bf16.msra.mxu0 0
      %1913 = vmatprep.subr.bf16.mxu0 0
      %1914 = vmatpush1.bf16.msra.mxu0 0
      %1915 = vmatprep.subr.bf16.mxu0 0
      %1916 = vmatpush1.bf16.msra.mxu0 0
      %1917 = vmatprep.subr.bf16.mxu0 0
      %1918 = vmatpush1.bf16.msra.mxu0 0
      %1919 = vmatprep.subr.bf16.mxu0 0
      %1920 = vmatpush1.bf16.msra.mxu0 0
      %1921 = vmatprep.mubr.bf16.mxu0 0
      %1922 = vmatmul.mubr.bf16.gmra.mrb[0].mxu0 %v722
      %v1923 = vpop.f32.mrb[0].mxu0
      %v1924 = vadd.f32 0.0, %v1923
      %v1925 = vpop.f32.mrb[0].mxu0
      %v1926 = vpop.f32.mrb[0].mxu0
      %v1927 = vadd.f32 0.0, %v1926
      %v1928 = vpop.f32.mrb[0].mxu0
      %1929 = vmatprep.mubr.bf16.mxu0 0
      %1930 = vmatmul.mubr.bf16.gmra.mrb[0].mxu0 %v725
      %v1931 = vpop.f32.mrb[0].mxu0
      %v1932 = vadd.f32 0.0, %v1931
      %v1933 = vpop.f32.mrb[0].mxu0
      %v1934 = vpop.f32.mrb[0].mxu0
      %v1935 = vadd.f32 0.0, %v1934
      %v1936 = vpop.f32.mrb[0].mxu0
      %1937 = vmatprep.mubr.bf16.mxu0 0
      %1938 = vmatmul.mubr.bf16.gmra.mrb[0].mxu0 %v728
      %v1939 = vpop.f32.mrb[0].mxu0
      %v1940 = vadd.f32 0.0, %v1939
      %v1941 = vpop.f32.mrb[0].mxu0
      %v1942 = vpop.f32.mrb[0].mxu0
      %v1943 = vadd.f32 0.0, %v1942
      %v1944 = vpop.f32.mrb[0].mxu0
      %1945 = vmatprep.mubr.bf16.mxu0 0
      %1946 = vmatmul.mubr.bf16.gmra.mrb[0].mxu0 %v731
      %v1947 = vpop.f32.mrb[0].mxu0
      %v1948 = vadd.f32 0.0, %v1947
      %v1949 = vpop.f32.mrb[0].mxu0
      %v1950 = vpop.f32.mrb[0].mxu0
      %v1951 = vadd.f32 0.0, %v1950
      %v1952 = vpop.f32.mrb[0].mxu0
      %1953 = vmatprep.mubr.bf16.mxu0 0
      %1954 = vmatmul.mubr.bf16.gmra.mrb[0].mxu0 %v734
      %v1955 = vpop.f32.mrb[0].mxu0
      %v1956 = vadd.f32 0.0, %v1955
      %v1957 = vpop.f32.mrb[0].mxu0
      %v1958 = vpop.f32.mrb[0].mxu0
      %v1959 = vadd.f32 0.0, %v1958
      %v1960 = vpop.f32.mrb[0].mxu0
      %1961 = vmatprep.mubr.bf16.mxu0 0
      %1962 = vmatmul.mubr.bf16.gmra.mrb[0].mxu0 %v737
      %v1963 = vpop.f32.mrb[0].mxu0
      %v1964 = vadd.f32 0.0, %v1963
      %v1965 = vpop.f32.mrb[0].mxu0
      %v1966 = vpop.f32.mrb[0].mxu0
      %v1967 = vadd.f32 0.0, %v1966
      %v1968 = vpop.f32.mrb[0].mxu0
      %1969 = vmatprep.mubr.bf16.mxu0 0
      %1970 = vmatmul.mubr.bf16.gmra.mrb[0].mxu0 %v740
      %v1971 = vpop.f32.mrb[0].mxu0
      %v1972 = vadd.f32 0.0, %v1971
      %v1973 = vpop.f32.mrb[0].mxu0
      %v1974 = vpop.f32.mrb[0].mxu0
      %v1975 = vadd.f32 0.0, %v1974
      %v1976 = vpop.f32.mrb[0].mxu0
      %1977 = vmatprep.mubr.bf16.mxu0 0
      %1978 = vmatmul.mubr.bf16.gmra.mrb[0].mxu0 %v743
      %v1979 = vpop.f32.mrb[0].mxu0
      %v1980 = vadd.f32 0.0, %v1979
      %v1981 = vpop.f32.mrb[0].mxu0
      %v1982 = vpop.f32.mrb[0].mxu0
      %v1983 = vadd.f32 0.0, %v1982
      %v1984 = vpop.f32.mrb[0].mxu0
      %1985 = vmatprep.mubr.bf16.mxu0 0
      %1986 = vmatmul.mubr.bf16.gmra.mrb[0].mxu0 %v746
      %v1987 = vpop.f32.mrb[0].mxu0
      %v1988 = vadd.f32 0.0, %v1987
      %v1989 = vpop.f32.mrb[0].mxu0
      %v1990 = vpop.f32.mrb[0].mxu0
      %v1991 = vadd.f32 0.0, %v1990
      %v1992 = vpop.f32.mrb[0].mxu0
      %1993 = vmatprep.mubr.bf16.mxu0 0
      %1994 = vmatmul.mubr.bf16.gmra.mrb[0].mxu0 %v749
      %v1995 = vpop.f32.mrb[0].mxu0
      %v1996 = vadd.f32 0.0, %v1995
      %v1997 = vpop.f32.mrb[0].mxu0
      %v1998 = vpop.f32.mrb[0].mxu0
      %v1999 = vadd.f32 0.0, %v1998
      %v2000 = vpop.f32.mrb[0].mxu0
      %2001 = vmatprep.mubr.bf16.mxu0 0
      %2002 = vmatmul.mubr.bf16.gmra.mrb[0].mxu0 %v752
      %v2003 = vpop.f32.mrb[0].mxu0
      %v2004 = vadd.f32 0.0, %v2003
      %v2005 = vpop.f32.mrb[0].mxu0
      %v2006 = vpop.f32.mrb[0].mxu0
      %v2007 = vadd.f32 0.0, %v2006
      %v2008 = vpop.f32.mrb[0].mxu0
      %2009 = vmatprep.mubr.bf16.mxu0 0
      %2010 = vmatmul.mubr.bf16.gmra.mrb[0].mxu0 %v755
      %v2011 = vpop.f32.mrb[0].mxu0
      %v2012 = vadd.f32 0.0, %v2011
      %v2013 = vpop.f32.mrb[0].mxu0
      %v2014 = vpop.f32.mrb[0].mxu0
      %v2015 = vadd.f32 0.0, %v2014
      %v2016 = vpop.f32.mrb[0].mxu0
      %2017 = vmatprep.mubr.bf16.mxu0 0
      %2018 = vmatmul.mubr.bf16.gmra.mrb[0].mxu0 %v758
      %v2019 = vpop.f32.mrb[0].mxu0
      %v2020 = vadd.f32 0.0, %v2019
      %v2021 = vpop.f32.mrb[0].mxu0
      %v2022 = vpop.f32.mrb[0].mxu0
      %v2023 = vadd.f32 0.0, %v2022
      %v2024 = vpop.f32.mrb[0].mxu0
      %2025 = vmatprep.mubr.bf16.mxu0 0
      %2026 = vmatmul.mubr.bf16.gmra.mrb[0].mxu0 %v761
      %v2027 = vpop.f32.mrb[0].mxu0
      %v2028 = vadd.f32 0.0, %v2027
      %v2029 = vpop.f32.mrb[0].mxu0
      %v2030 = vpop.f32.mrb[0].mxu0
      %v2031 = vadd.f32 0.0, %v2030
      %v2032 = vpop.f32.mrb[0].mxu0
      %2033 = vmatprep.mubr.bf16.mxu0 0
      %2034 = vmatmul.mubr.bf16.gmra.mrb[0].mxu0 %v764
      %v2035 = vpop.f32.mrb[0].mxu0
      %v2036 = vadd.f32 0.0, %v2035
      %v2037 = vpop.f32.mrb[0].mxu0
      %v2038 = vpop.f32.mrb[0].mxu0
      %v2039 = vadd.f32 0.0, %v2038
      %v2040 = vpop.f32.mrb[0].mxu0
      %2041 = vmatprep.mubr.bf16.mxu0 0
      %2042 = vmatmul.mubr.bf16.gmra.mrb[0].mxu0 %v1884
      %v2043 = vpop.f32.mrb[0].mxu0
      %v2044 = vadd.f32 0.0, %v2043
      %v2045 = vpop.f32.mrb[0].mxu0
      %v2046 = vpop.f32.mrb[0].mxu0
      %v2047 = vadd.f32 0.0, %v2046
      %v2048 = vpop.f32.mrb[0].mxu0
      %2049 = vdwg.mxu0
      %v2050 = vadd.f32 %v1822, %v1924
      %v2051 = vadd.f32 %v1823, %v1927
      %v2052 = vadd.f32 %v1824, %v1932
      %v2053 = vadd.f32 %v1825, %v1935
      %v2054 = vadd.f32 %v1826, %v1940
      %v2055 = vadd.f32 %v1827, %v1943
      %v2056 = vadd.f32 %v1828, %v1948
      %v2057 = vadd.f32 %v1829, %v1951
      %v2058 = vadd.f32 %v1830, %v1956
      %v2059 = vadd.f32 %v1831, %v1959
      %v2060 = vadd.f32 %v1832, %v1964
      %v2061 = vadd.f32 %v1833, %v1967
      %v2062 = vadd.f32 %v1834, %v1972
      %v2063 = vadd.f32 %v1835, %v1975
      %v2064 = vadd.f32 %v1836, %v1980
      %v2065 = vadd.f32 %v1837, %v1983
      %v2066 = vadd.f32 %v1838, %v1988
      %v2067 = vadd.f32 %v1839, %v1991
      %v2068 = vadd.f32 %v1840, %v1996
      %v2069 = vadd.f32 %v1841, %v1999
      %v2070 = vadd.f32 %v1842, %v2004
      %v2071 = vadd.f32 %v1843, %v2007
      %v2072 = vadd.f32 %v1844, %v2012
      %v2073 = vadd.f32 %v1845, %v2015
      %v2074 = vadd.f32 %v1846, %v2020
      %v2075 = vadd.f32 %v1847, %v2023
      %v2076 = vadd.f32 %v1848, %v2028
      %v2077 = vadd.f32 %v1849, %v2031
      %v2078 = vadd.f32 %v1850, %v2036
      %v2079 = vadd.f32 %v1851, %v2039
      %v2080 = vadd.f32 %v1852, %v2044
      %v2081 = vadd.f32 %v1853, %v2047
      %v2083 = vrot.slane %v273, 5
      %v2084 = vrot.slane %v2083, 4
      %v2085 = vrot.slane %v274, 5
      %v2086 = vsel %vm1241, %v2084, %v2085
      %v2087 = vrot.slane %v2085, 4
      %v2088 = vrot.slane %v275, 5
      %v2089 = vsel %vm1241, %v2087, %v2088
      %s2090 = scalar_lea.vmem %s1, 10
      %v2091 = vld [vmem:[%s2090] sm:$0x3]
      %v2092 = vunpack.c.l.b16 %v2086
      %v2093 = vunpack.c.l.b16 %v2089
      %v2094 = vpack.c.b16 %v2093, %v2092
      %v2096 = vsel %vm717, %v2094, 0
      %v2099 = vsel %vm766, %v2091, 0
      %2101 = vmatprep.subr.bf16.mxu0 0
      %2102 = vmatpush1.bf16.msra.mxu0 %v2099
      %2103 = vmatprep.subr.bf16.mxu0 0
      %2104 = vmatpush1.bf16.msra.mxu0 0
      %2105 = vmatprep.subr.bf16.mxu0 0
      %2106 = vmatpush1.bf16.msra.mxu0 0
      %2107 = vmatprep.subr.bf16.mxu0 0
      %2108 = vmatpush1.bf16.msra.mxu0 0
      %2109 = vmatprep.subr.bf16.mxu0 0
      %2110 = vmatpush1.bf16.msra.mxu0 0
      %2111 = vmatprep.subr.bf16.mxu0 0
      %2112 = vmatpush1.bf16.msra.mxu0 0
      %2113 = vmatprep.subr.bf16.mxu0 0
      %2114 = vmatpush1.bf16.msra.mxu0 0
      %2115 = vmatprep.subr.bf16.mxu0 0
      %2116 = vmatpush1.bf16.msra.mxu0 0
      %2117 = vmatprep.subr.bf16.mxu0 0
      %2118 = vmatpush1.bf16.msra.mxu0 0
      %2119 = vmatprep.subr.bf16.mxu0 0
      %2120 = vmatpush1.bf16.msra.mxu0 0
      %2121 = vmatprep.subr.bf16.mxu0 0
      %2122 = vmatpush1.bf16.msra.mxu0 0
      %2123 = vmatprep.subr.bf16.mxu0 0
      %2124 = vmatpush1.bf16.msra.mxu0 0
      %2125 = vmatprep.subr.bf16.mxu0 0
      %2126 = vmatpush1.bf16.msra.mxu0 0
      %2127 = vmatprep.subr.bf16.mxu0 0
      %2128 = vmatpush1.bf16.msra.mxu0 0
      %2129 = vmatprep.subr.bf16.mxu0 0
      %2130 = vmatpush1.bf16.msra.mxu0 0
      %2131 = vmatprep.subr.bf16.mxu0 0
      %2132 = vmatpush1.bf16.msra.mxu0 0
      %2133 = vmatprep.mubr.bf16.mxu0 0
      %2134 = vmatmul.mubr.bf16.gmra.mrb[0].mxu0 %v1408
      %v2135 = vpop.f32.mrb[0].mxu0
      %v2136 = vadd.f32 0.0, %v2135
      %v2137 = vpop.f32.mrb[0].mxu0
      %v2138 = vpop.f32.mrb[0].mxu0
      %v2139 = vadd.f32 0.0, %v2138
      %v2140 = vpop.f32.mrb[0].mxu0
      %2141 = vmatprep.mubr.bf16.mxu0 0
      %2142 = vmatmul.mubr.bf16.gmra.mrb[0].mxu0 %v1411
      %v2143 = vpop.f32.mrb[0].mxu0
      %v2144 = vadd.f32 0.0, %v2143
      %v2145 = vpop.f32.mrb[0].mxu0
      %v2146 = vpop.f32.mrb[0].mxu0
      %v2147 = vadd.f32 0.0, %v2146
      %v2148 = vpop.f32.mrb[0].mxu0
      %2149 = vmatprep.mubr.bf16.mxu0 0
      %2150 = vmatmul.mubr.bf16.gmra.mrb[0].mxu0 %v1414
      %v2151 = vpop.f32.mrb[0].mxu0
      %v2152 = vadd.f32 0.0, %v2151
      %v2153 = vpop.f32.mrb[0].mxu0
      %v2154 = vpop.f32.mrb[0].mxu0
      %v2155 = vadd.f32 0.0, %v2154
      %v2156 = vpop.f32.mrb[0].mxu0
      %2157 = vmatprep.mubr.bf16.mxu0 0
      %2158 = vmatmul.mubr.bf16.gmra.mrb[0].mxu0 %v1417
      %v2159 = vpop.f32.mrb[0].mxu0
      %v2160 = vadd.f32 0.0, %v2159
      %v2161 = vpop.f32.mrb[0].mxu0
      %v2162 = vpop.f32.mrb[0].mxu0
      %v2163 = vadd.f32 0.0, %v2162
      %v2164 = vpop.f32.mrb[0].mxu0
      %2165 = vmatprep.mubr.bf16.mxu0 0
      %2166 = vmatmul.mubr.bf16.gmra.mrb[0].mxu0 %v1420
      %v2167 = vpop.f32.mrb[0].mxu0
      %v2168 = vadd.f32 0.0, %v2167
      %v2169 = vpop.f32.mrb[0].mxu0
      %v2170 = vpop.f32.mrb[0].mxu0
      %v2171 = vadd.f32 0.0, %v2170
      %v2172 = vpop.f32.mrb[0].mxu0
      %2173 = vmatprep.mubr.bf16.mxu0 0
      %2174 = vmatmul.mubr.bf16.gmra.mrb[0].mxu0 %v1423
      %v2175 = vpop.f32.mrb[0].mxu0
      %v2176 = vadd.f32 0.0, %v2175
      %v2177 = vpop.f32.mrb[0].mxu0
      %v2178 = vpop.f32.mrb[0].mxu0
      %v2179 = vadd.f32 0.0, %v2178
      %v2180 = vpop.f32.mrb[0].mxu0
      %2181 = vmatprep.mubr.bf16.mxu0 0
      %2182 = vmatmul.mubr.bf16.gmra.mrb[0].mxu0 %v1426
      %v2183 = vpop.f32.mrb[0].mxu0
      %v2184 = vadd.f32 0.0, %v2183
      %v2185 = vpop.f32.mrb[0].mxu0
      %v2186 = vpop.f32.mrb[0].mxu0
      %v2187 = vadd.f32 0.0, %v2186
      %v2188 = vpop.f32.mrb[0].mxu0
      %2189 = vmatprep.mubr.bf16.mxu0 0
      %2190 = vmatmul.mubr.bf16.gmra.mrb[0].mxu0 %v1429
      %v2191 = vpop.f32.mrb[0].mxu0
      %v2192 = vadd.f32 0.0, %v2191
      %v2193 = vpop.f32.mrb[0].mxu0
      %v2194 = vpop.f32.mrb[0].mxu0
      %v2195 = vadd.f32 0.0, %v2194
      %v2196 = vpop.f32.mrb[0].mxu0
      %2197 = vmatprep.mubr.bf16.mxu0 0
      %2198 = vmatmul.mubr.bf16.gmra.mrb[0].mxu0 %v1432
      %v2199 = vpop.f32.mrb[0].mxu0
      %v2200 = vadd.f32 0.0, %v2199
      %v2201 = vpop.f32.mrb[0].mxu0
      %v2202 = vpop.f32.mrb[0].mxu0
      %v2203 = vadd.f32 0.0, %v2202
      %v2204 = vpop.f32.mrb[0].mxu0
      %2205 = vmatprep.mubr.bf16.mxu0 0
      %2206 = vmatmul.mubr.bf16.gmra.mrb[0].mxu0 %v1435
      %v2207 = vpop.f32.mrb[0].mxu0
      %v2208 = vadd.f32 0.0, %v2207
      %v2209 = vpop.f32.mrb[0].mxu0
      %v2210 = vpop.f32.mrb[0].mxu0
      %v2211 = vadd.f32 0.0, %v2210
      %v2212 = vpop.f32.mrb[0].mxu0
      %2213 = vmatprep.mubr.bf16.mxu0 0
      %2214 = vmatmul.mubr.bf16.gmra.mrb[0].mxu0 %v1438
      %v2215 = vpop.f32.mrb[0].mxu0
      %v2216 = vadd.f32 0.0, %v2215
      %v2217 = vpop.f32.mrb[0].mxu0
      %v2218 = vpop.f32.mrb[0].mxu0
      %v2219 = vadd.f32 0.0, %v2218
      %v2220 = vpop.f32.mrb[0].mxu0
      %2221 = vmatprep.mubr.bf16.mxu0 0
      %2222 = vmatmul.mubr.bf16.gmra.mrb[0].mxu0 %v1441
      %v2223 = vpop.f32.mrb[0].mxu0
      %v2224 = vadd.f32 0.0, %v2223
      %v2225 = vpop.f32.mrb[0].mxu0
      %v2226 = vpop.f32.mrb[0].mxu0
      %v2227 = vadd.f32 0.0, %v2226
      %v2228 = vpop.f32.mrb[0].mxu0
      %2229 = vmatprep.mubr.bf16.mxu0 0
      %2230 = vmatmul.mubr.bf16.gmra.mrb[0].mxu0 %v1444
      %v2231 = vpop.f32.mrb[0].mxu0
      %v2232 = vadd.f32 0.0, %v2231
      %v2233 = vpop.f32.mrb[0].mxu0
      %v2234 = vpop.f32.mrb[0].mxu0
      %v2235 = vadd.f32 0.0, %v2234
      %v2236 = vpop.f32.mrb[0].mxu0
      %2237 = vmatprep.mubr.bf16.mxu0 0
      %2238 = vmatmul.mubr.bf16.gmra.mrb[0].mxu0 %v1447
      %v2239 = vpop.f32.mrb[0].mxu0
      %v2240 = vadd.f32 0.0, %v2239
      %v2241 = vpop.f32.mrb[0].mxu0
      %v2242 = vpop.f32.mrb[0].mxu0
      %v2243 = vadd.f32 0.0, %v2242
      %v2244 = vpop.f32.mrb[0].mxu0
      %2245 = vmatprep.mubr.bf16.mxu0 0
      %2246 = vmatmul.mubr.bf16.gmra.mrb[0].mxu0 %v1450
      %v2247 = vpop.f32.mrb[0].mxu0
      %v2248 = vadd.f32 0.0, %v2247
      %v2249 = vpop.f32.mrb[0].mxu0
      %v2250 = vpop.f32.mrb[0].mxu0
      %v2251 = vadd.f32 0.0, %v2250
      %v2252 = vpop.f32.mrb[0].mxu0
      %2253 = vmatprep.mubr.bf16.mxu0 0
      %2254 = vmatmul.mubr.bf16.gmra.mrb[0].mxu0 %v2096
      %v2255 = vpop.f32.mrb[0].mxu0
      %v2256 = vadd.f32 0.0, %v2255
      %v2257 = vpop.f32.mrb[0].mxu0
      %v2258 = vpop.f32.mrb[0].mxu0
      %v2259 = vadd.f32 0.0, %v2258
      %v2260 = vpop.f32.mrb[0].mxu0
      %2261 = vdwg.mxu0
      %v2262 = vadd.f32 %v2050, %v2136
      %v2263 = vadd.f32 %v2051, %v2139
      %v2264 = vadd.f32 %v2052, %v2144
      %v2265 = vadd.f32 %v2053, %v2147
      %v2266 = vadd.f32 %v2054, %v2152
      %v2267 = vadd.f32 %v2055, %v2155
      %v2268 = vadd.f32 %v2056, %v2160
      %v2269 = vadd.f32 %v2057, %v2163
      %v2270 = vadd.f32 %v2058, %v2168
      %v2271 = vadd.f32 %v2059, %v2171
      %v2272 = vadd.f32 %v2060, %v2176
      %v2273 = vadd.f32 %v2061, %v2179
      %v2274 = vadd.f32 %v2062, %v2184
      %v2275 = vadd.f32 %v2063, %v2187
      %v2276 = vadd.f32 %v2064, %v2192
      %v2277 = vadd.f32 %v2065, %v2195
      %v2278 = vadd.f32 %v2066, %v2200
      %v2279 = vadd.f32 %v2067, %v2203
      %v2280 = vadd.f32 %v2068, %v2208
      %v2281 = vadd.f32 %v2069, %v2211
      %v2282 = vadd.f32 %v2070, %v2216
      %v2283 = vadd.f32 %v2071, %v2219
      %v2284 = vadd.f32 %v2072, %v2224
      %v2285 = vadd.f32 %v2073, %v2227
      %v2286 = vadd.f32 %v2074, %v2232
      %v2287 = vadd.f32 %v2075, %v2235
      %v2288 = vadd.f32 %v2076, %v2240
      %v2289 = vadd.f32 %v2077, %v2243
      %v2290 = vadd.f32 %v2078, %v2248
      %v2291 = vadd.f32 %v2079, %v2251
      %v2292 = vadd.f32 %v2080, %v2256
      %v2293 = vadd.f32 %v2081, %v2259
      %s2294 = scalar_lea.vmem %s1, 12
      %v2295 = vld [vmem:[%s2294] sm:$0x3]
      %v2298 = vunpack.c.l.b16 %v276
      %v2299 = vunpack.c.l.b16 %v277
      %v2300 = vpack.c.b16 %v2299, %v2298
      %v2302 = vsel %vm717, %v2300, 0
      %v2305 = vsel %vm766, %v2295, 0
      %2307 = vmatprep.subr.bf16.mxu0 0
      %2308 = vmatpush1.bf16.msra.mxu0 %v2305
      %2309 = vmatprep.subr.bf16.mxu0 0
      %2310 = vmatpush1.bf16.msra.mxu0 0
      %2311 = vmatprep.subr.bf16.mxu0 0
      %2312 = vmatpush1.bf16.msra.mxu0 0
      %2313 = vmatprep.subr.bf16.mxu0 0
      %2314 = vmatpush1.bf16.msra.mxu0 0
      %2315 = vmatprep.subr.bf16.mxu0 0
      %2316 = vmatpush1.bf16.msra.mxu0 0
      %2317 = vmatprep.subr.bf16.mxu0 0
      %2318 = vmatpush1.bf16.msra.mxu0 0
      %2319 = vmatprep.subr.bf16.mxu0 0
      %2320 = vmatpush1.bf16.msra.mxu0 0
      %2321 = vmatprep.subr.bf16.mxu0 0
      %2322 = vmatpush1.bf16.msra.mxu0 0
      %2323 = vmatprep.subr.bf16.mxu0 0
      %2324 = vmatpush1.bf16.msra.mxu0 0
      %2325 = vmatprep.subr.bf16.mxu0 0
      %2326 = vmatpush1.bf16.msra.mxu0 0
      %2327 = vmatprep.subr.bf16.mxu0 0
      %2328 = vmatpush1.bf16.msra.mxu0 0
      %2329 = vmatprep.subr.bf16.mxu0 0
      %2330 = vmatpush1.bf16.msra.mxu0 0
      %2331 = vmatprep.subr.bf16.mxu0 0
      %2332 = vmatpush1.bf16.msra.mxu0 0
      %2333 = vmatprep.subr.bf16.mxu0 0
      %2334 = vmatpush1.bf16.msra.mxu0 0
      %2335 = vmatprep.subr.bf16.mxu0 0
      %2336 = vmatpush1.bf16.msra.mxu0 0
      %2337 = vmatprep.subr.bf16.mxu0 0
      %2338 = vmatpush1.bf16.msra.mxu0 0
      %2339 = vmatprep.mubr.bf16.mxu0 0
      %2340 = vmatmul.mubr.bf16.gmra.mrb[0].mxu0 %v1018
      %v2341 = vpop.f32.mrb[0].mxu0
      %v2342 = vadd.f32 0.0, %v2341
      %v2343 = vpop.f32.mrb[0].mxu0
      %v2344 = vpop.f32.mrb[0].mxu0
      %v2345 = vadd.f32 0.0, %v2344
      %v2346 = vpop.f32.mrb[0].mxu0
      %2347 = vmatprep.mubr.bf16.mxu0 0
      %2348 = vmatmul.mubr.bf16.gmra.mrb[0].mxu0 %v1021
      %v2349 = vpop.f32.mrb[0].mxu0
      %v2350 = vadd.f32 0.0, %v2349
      %v2351 = vpop.f32.mrb[0].mxu0
      %v2352 = vpop.f32.mrb[0].mxu0
      %v2353 = vadd.f32 0.0, %v2352
      %v2354 = vpop.f32.mrb[0].mxu0
      %2355 = vmatprep.mubr.bf16.mxu0 0
      %2356 = vmatmul.mubr.bf16.gmra.mrb[0].mxu0 %v1024
      %v2357 = vpop.f32.mrb[0].mxu0
      %v2358 = vadd.f32 0.0, %v2357
      %v2359 = vpop.f32.mrb[0].mxu0
      %v2360 = vpop.f32.mrb[0].mxu0
      %v2361 = vadd.f32 0.0, %v2360
      %v2362 = vpop.f32.mrb[0].mxu0
      %2363 = vmatprep.mubr.bf16.mxu0 0
      %2364 = vmatmul.mubr.bf16.gmra.mrb[0].mxu0 %v1027
      %v2365 = vpop.f32.mrb[0].mxu0
      %v2366 = vadd.f32 0.0, %v2365
      %v2367 = vpop.f32.mrb[0].mxu0
      %v2368 = vpop.f32.mrb[0].mxu0
      %v2369 = vadd.f32 0.0, %v2368
      %v2370 = vpop.f32.mrb[0].mxu0
      %2371 = vmatprep.mubr.bf16.mxu0 0
      %2372 = vmatmul.mubr.bf16.gmra.mrb[0].mxu0 %v1030
      %v2373 = vpop.f32.mrb[0].mxu0
      %v2374 = vadd.f32 0.0, %v2373
      %v2375 = vpop.f32.mrb[0].mxu0
      %v2376 = vpop.f32.mrb[0].mxu0
      %v2377 = vadd.f32 0.0, %v2376
      %v2378 = vpop.f32.mrb[0].mxu0
      %2379 = vmatprep.mubr.bf16.mxu0 0
      %2380 = vmatmul.mubr.bf16.gmra.mrb[0].mxu0 %v1033
      %v2381 = vpop.f32.mrb[0].mxu0
      %v2382 = vadd.f32 0.0, %v2381
      %v2383 = vpop.f32.mrb[0].mxu0
      %v2384 = vpop.f32.mrb[0].mxu0
      %v2385 = vadd.f32 0.0, %v2384
      %v2386 = vpop.f32.mrb[0].mxu0
      %2387 = vmatprep.mubr.bf16.mxu0 0
      %2388 = vmatmul.mubr.bf16.gmra.mrb[0].mxu0 %v1036
      %v2389 = vpop.f32.mrb[0].mxu0
      %v2390 = vadd.f32 0.0, %v2389
      %v2391 = vpop.f32.mrb[0].mxu0
      %v2392 = vpop.f32.mrb[0].mxu0
      %v2393 = vadd.f32 0.0, %v2392
      %v2394 = vpop.f32.mrb[0].mxu0
      %2395 = vmatprep.mubr.bf16.mxu0 0
      %2396 = vmatmul.mubr.bf16.gmra.mrb[0].mxu0 %v1039
      %v2397 = vpop.f32.mrb[0].mxu0
      %v2398 = vadd.f32 0.0, %v2397
      %v2399 = vpop.f32.mrb[0].mxu0
      %v2400 = vpop.f32.mrb[0].mxu0
      %v2401 = vadd.f32 0.0, %v2400
      %v2402 = vpop.f32.mrb[0].mxu0
      %2403 = vmatprep.mubr.bf16.mxu0 0
      %2404 = vmatmul.mubr.bf16.gmra.mrb[0].mxu0 %v1042
      %v2405 = vpop.f32.mrb[0].mxu0
      %v2406 = vadd.f32 0.0, %v2405
      %v2407 = vpop.f32.mrb[0].mxu0
      %v2408 = vpop.f32.mrb[0].mxu0
      %v2409 = vadd.f32 0.0, %v2408
      %v2410 = vpop.f32.mrb[0].mxu0
      %2411 = vmatprep.mubr.bf16.mxu0 0
      %2412 = vmatmul.mubr.bf16.gmra.mrb[0].mxu0 %v1045
      %v2413 = vpop.f32.mrb[0].mxu0
      %v2414 = vadd.f32 0.0, %v2413
      %v2415 = vpop.f32.mrb[0].mxu0
      %v2416 = vpop.f32.mrb[0].mxu0
      %v2417 = vadd.f32 0.0, %v2416
      %v2418 = vpop.f32.mrb[0].mxu0
      %2419 = vmatprep.mubr.bf16.mxu0 0
      %2420 = vmatmul.mubr.bf16.gmra.mrb[0].mxu0 %v1048
      %v2421 = vpop.f32.mrb[0].mxu0
      %v2422 = vadd.f32 0.0, %v2421
      %v2423 = vpop.f32.mrb[0].mxu0
      %v2424 = vpop.f32.mrb[0].mxu0
      %v2425 = vadd.f32 0.0, %v2424
      %v2426 = vpop.f32.mrb[0].mxu0
      %2427 = vmatprep.mubr.bf16.mxu0 0
      %2428 = vmatmul.mubr.bf16.gmra.mrb[0].mxu0 %v1051
      %v2429 = vpop.f32.mrb[0].mxu0
      %v2430 = vadd.f32 0.0, %v2429
      %v2431 = vpop.f32.mrb[0].mxu0
      %v2432 = vpop.f32.mrb[0].mxu0
      %v2433 = vadd.f32 0.0, %v2432
      %v2434 = vpop.f32.mrb[0].mxu0
      %2435 = vmatprep.mubr.bf16.mxu0 0
      %2436 = vmatmul.mubr.bf16.gmra.mrb[0].mxu0 %v1054
      %v2437 = vpop.f32.mrb[0].mxu0
      %v2438 = vadd.f32 0.0, %v2437
      %v2439 = vpop.f32.mrb[0].mxu0
      %v2440 = vpop.f32.mrb[0].mxu0
      %v2441 = vadd.f32 0.0, %v2440
      %v2442 = vpop.f32.mrb[0].mxu0
      %2443 = vmatprep.mubr.bf16.mxu0 0
      %2444 = vmatmul.mubr.bf16.gmra.mrb[0].mxu0 %v1057
      %v2445 = vpop.f32.mrb[0].mxu0
      %v2446 = vadd.f32 0.0, %v2445
      %v2447 = vpop.f32.mrb[0].mxu0
      %v2448 = vpop.f32.mrb[0].mxu0
      %v2449 = vadd.f32 0.0, %v2448
      %v2450 = vpop.f32.mrb[0].mxu0
      %2451 = vmatprep.mubr.bf16.mxu0 0
      %2452 = vmatmul.mubr.bf16.gmra.mrb[0].mxu0 %v1656
      %v2453 = vpop.f32.mrb[0].mxu0
      %v2454 = vadd.f32 0.0, %v2453
      %v2455 = vpop.f32.mrb[0].mxu0
      %v2456 = vpop.f32.mrb[0].mxu0
      %v2457 = vadd.f32 0.0, %v2456
      %v2458 = vpop.f32.mrb[0].mxu0
      %2459 = vmatprep.mubr.bf16.mxu0 0
      %2460 = vmatmul.mubr.bf16.gmra.mrb[0].mxu0 %v2302
      %v2461 = vpop.f32.mrb[0].mxu0
      %v2462 = vadd.f32 0.0, %v2461
      %v2463 = vpop.f32.mrb[0].mxu0
      %v2464 = vpop.f32.mrb[0].mxu0
      %v2465 = vadd.f32 0.0, %v2464
      %v2466 = vpop.f32.mrb[0].mxu0
      %2467 = vdwg.mxu0
      %v2468 = vadd.f32 %v2262, %v2342
      %v2469 = vadd.f32 %v2263, %v2345
      %v2470 = vadd.f32 %v2264, %v2350
      %v2471 = vadd.f32 %v2265, %v2353
      %v2472 = vadd.f32 %v2266, %v2358
      %v2473 = vadd.f32 %v2267, %v2361
      %v2474 = vadd.f32 %v2268, %v2366
      %v2475 = vadd.f32 %v2269, %v2369
      %v2476 = vadd.f32 %v2270, %v2374
      %v2477 = vadd.f32 %v2271, %v2377
      %v2478 = vadd.f32 %v2272, %v2382
      %v2479 = vadd.f32 %v2273, %v2385
      %v2480 = vadd.f32 %v2274, %v2390
      %v2481 = vadd.f32 %v2275, %v2393
      %v2482 = vadd.f32 %v2276, %v2398
      %v2483 = vadd.f32 %v2277, %v2401
      %v2484 = vadd.f32 %v2278, %v2406
      %v2485 = vadd.f32 %v2279, %v2409
      %v2486 = vadd.f32 %v2280, %v2414
      %v2487 = vadd.f32 %v2281, %v2417
      %v2488 = vadd.f32 %v2282, %v2422
      %v2489 = vadd.f32 %v2283, %v2425
      %v2490 = vadd.f32 %v2284, %v2430
      %v2491 = vadd.f32 %v2285, %v2433
      %v2492 = vadd.f32 %v2286, %v2438
      %v2493 = vadd.f32 %v2287, %v2441
      %v2494 = vadd.f32 %v2288, %v2446
      %v2495 = vadd.f32 %v2289, %v2449
      %v2496 = vadd.f32 %v2290, %v2454
      %v2497 = vadd.f32 %v2291, %v2457
      %v2498 = vadd.f32 %v2292, %v2462
      %v2499 = vadd.f32 %v2293, %v2465
      %v2501 = vshrl.u32 %v276, 16
      %v2503 = vrot.slane %v2501, 4
      %v2504 = vshll.u32 %v276, 16
      %v2506 = vrot.slane %v2504, 5
      %v2507 = vor.u32 %v2503, %v2506
      %v2508 = vrot.slane %v2507, 4
      %v2510 = vshll.u32 %v277, 16
      %v2512 = vrot.slane %v2510, 5
      %v2513 = vsel %vm282, %v2508, %v2512
      %v2514 = vshrl.u32 %v277, 16
      %v2516 = vrot.slane %v2514, 4
      %v2517 = vor.u32 %v2516, %v2512
      %v2518 = vrot.slane %v2517, 4
      %v2520 = vshll.u32 %v278, 16
      %v2522 = vrot.slane %v2520, 5
      %v2523 = vsel %vm282, %v2518, %v2522
      %s2524 = scalar_lea.vmem %s1, 14
      %v2525 = vld [vmem:[%s2524] sm:$0x3]
      %v2526 = vunpack.c.l.b16 %v2513
      %v2527 = vunpack.c.l.b16 %v2523
      %v2528 = vpack.c.b16 %v2527, %v2526
      %v2530 = vsel %vm717, %v2528, 0
      %v2533 = vsel %vm766, %v2525, 0
      %2535 = vmatprep.subr.bf16.mxu0 0
      %2536 = vmatpush1.bf16.msra.mxu0 %v2533
      %2537 = vmatprep.subr.bf16.mxu0 0
      %2538 = vmatpush1.bf16.msra.mxu0 0
      %2539 = vmatprep.subr.bf16.mxu0 0
      %2540 = vmatpush1.bf16.msra.mxu0 0
      %2541 = vmatprep.subr.bf16.mxu0 0
      %2542 = vmatpush1.bf16.msra.mxu0 0
      %2543 = vmatprep.subr.bf16.mxu0 0
      %2544 = vmatpush1.bf16.msra.mxu0 0
      %2545 = vmatprep.subr.bf16.mxu0 0
      %2546 = vmatpush1.bf16.msra.mxu0 0
      %2547 = vmatprep.subr.bf16.mxu0 0
      %2548 = vmatpush1.bf16.msra.mxu0 0
      %2549 = vmatprep.subr.bf16.mxu0 0
      %2550 = vmatpush1.bf16.msra.mxu0 0
      %2551 = vmatprep.subr.bf16.mxu0 0
      %2552 = vmatpush1.bf16.msra.mxu0 0
      %2553 = vmatprep.subr.bf16.mxu0 0
      %2554 = vmatpush1.bf16.msra.mxu0 0
      %2555 = vmatprep.subr.bf16.mxu0 0
      %2556 = vmatpush1.bf16.msra.mxu0 0
      %2557 = vmatprep.subr.bf16.mxu0 0
      %2558 = vmatpush1.bf16.msra.mxu0 0
      %2559 = vmatprep.subr.bf16.mxu0 0
      %2560 = vmatpush1.bf16.msra.mxu0 0
      %2561 = vmatprep.subr.bf16.mxu0 0
      %2562 = vmatpush1.bf16.msra.mxu0 0
      %2563 = vmatprep.subr.bf16.mxu0 0
      %2564 = vmatpush1.bf16.msra.mxu0 0
      %2565 = vmatprep.subr.bf16.mxu0 0
      %2566 = vmatpush1.bf16.msra.mxu0 0
      %2567 = vmatprep.mubr.bf16.mxu0 0
      %2568 = vmatmul.mubr.bf16.gmra.mrb[0].mxu0 %v725
      %v2569 = vpop.f32.mrb[0].mxu0
      %v2570 = vadd.f32 0.0, %v2569
      %v2571 = vpop.f32.mrb[0].mxu0
      %v2572 = vpop.f32.mrb[0].mxu0
      %v2573 = vadd.f32 0.0, %v2572
      %v2574 = vpop.f32.mrb[0].mxu0
      %2575 = vmatprep.mubr.bf16.mxu0 0
      %2576 = vmatmul.mubr.bf16.gmra.mrb[0].mxu0 %v728
      %v2577 = vpop.f32.mrb[0].mxu0
      %v2578 = vadd.f32 0.0, %v2577
      %v2579 = vpop.f32.mrb[0].mxu0
      %v2580 = vpop.f32.mrb[0].mxu0
      %v2581 = vadd.f32 0.0, %v2580
      %v2582 = vpop.f32.mrb[0].mxu0
      %2583 = vmatprep.mubr.bf16.mxu0 0
      %2584 = vmatmul.mubr.bf16.gmra.mrb[0].mxu0 %v731
      %v2585 = vpop.f32.mrb[0].mxu0
      %v2586 = vadd.f32 0.0, %v2585
      %v2587 = vpop.f32.mrb[0].mxu0
      %v2588 = vpop.f32.mrb[0].mxu0
      %v2589 = vadd.f32 0.0, %v2588
      %v2590 = vpop.f32.mrb[0].mxu0
      %2591 = vmatprep.mubr.bf16.mxu0 0
      %2592 = vmatmul.mubr.bf16.gmra.mrb[0].mxu0 %v734
      %v2593 = vpop.f32.mrb[0].mxu0
      %v2594 = vadd.f32 0.0, %v2593
      %v2595 = vpop.f32.mrb[0].mxu0
      %v2596 = vpop.f32.mrb[0].mxu0
      %v2597 = vadd.f32 0.0, %v2596
      %v2598 = vpop.f32.mrb[0].mxu0
      %2599 = vmatprep.mubr.bf16.mxu0 0
      %2600 = vmatmul.mubr.bf16.gmra.mrb[0].mxu0 %v737
      %v2601 = vpop.f32.mrb[0].mxu0
      %v2602 = vadd.f32 0.0, %v2601
      %v2603 = vpop.f32.mrb[0].mxu0
      %v2604 = vpop.f32.mrb[0].mxu0
      %v2605 = vadd.f32 0.0, %v2604
      %v2606 = vpop.f32.mrb[0].mxu0
      %2607 = vmatprep.mubr.bf16.mxu0 0
      %2608 = vmatmul.mubr.bf16.gmra.mrb[0].mxu0 %v740
      %v2609 = vpop.f32.mrb[0].mxu0
      %v2610 = vadd.f32 0.0, %v2609
      %v2611 = vpop.f32.mrb[0].mxu0
      %v2612 = vpop.f32.mrb[0].mxu0
      %v2613 = vadd.f32 0.0, %v2612
      %v2614 = vpop.f32.mrb[0].mxu0
      %2615 = vmatprep.mubr.bf16.mxu0 0
      %2616 = vmatmul.mubr.bf16.gmra.mrb[0].mxu0 %v743
      %v2617 = vpop.f32.mrb[0].mxu0
      %v2618 = vadd.f32 0.0, %v2617
      %v2619 = vpop.f32.mrb[0].mxu0
      %v2620 = vpop.f32.mrb[0].mxu0
      %v2621 = vadd.f32 0.0, %v2620
      %v2622 = vpop.f32.mrb[0].mxu0
      %2623 = vmatprep.mubr.bf16.mxu0 0
      %2624 = vmatmul.mubr.bf16.gmra.mrb[0].mxu0 %v746
      %v2625 = vpop.f32.mrb[0].mxu0
      %v2626 = vadd.f32 0.0, %v2625
      %v2627 = vpop.f32.mrb[0].mxu0
      %v2628 = vpop.f32.mrb[0].mxu0
      %v2629 = vadd.f32 0.0, %v2628
      %v2630 = vpop.f32.mrb[0].mxu0
      %2631 = vmatprep.mubr.bf16.mxu0 0
      %2632 = vmatmul.mubr.bf16.gmra.mrb[0].mxu0 %v749
      %v2633 = vpop.f32.mrb[0].mxu0
      %v2634 = vadd.f32 0.0, %v2633
      %v2635 = vpop.f32.mrb[0].mxu0
      %v2636 = vpop.f32.mrb[0].mxu0
      %v2637 = vadd.f32 0.0, %v2636
      %v2638 = vpop.f32.mrb[0].mxu0
      %2639 = vmatprep.mubr.bf16.mxu0 0
      %2640 = vmatmul.mubr.bf16.gmra.mrb[0].mxu0 %v752
      %v2641 = vpop.f32.mrb[0].mxu0
      %v2642 = vadd.f32 0.0, %v2641
      %v2643 = vpop.f32.mrb[0].mxu0
      %v2644 = vpop.f32.mrb[0].mxu0
      %v2645 = vadd.f32 0.0, %v2644
      %v2646 = vpop.f32.mrb[0].mxu0
      %2647 = vmatprep.mubr.bf16.mxu0 0
      %2648 = vmatmul.mubr.bf16.gmra.mrb[0].mxu0 %v755
      %v2649 = vpop.f32.mrb[0].mxu0
      %v2650 = vadd.f32 0.0, %v2649
      %v2651 = vpop.f32.mrb[0].mxu0
      %v2652 = vpop.f32.mrb[0].mxu0
      %v2653 = vadd.f32 0.0, %v2652
      %v2654 = vpop.f32.mrb[0].mxu0
      %2655 = vmatprep.mubr.bf16.mxu0 0
      %2656 = vmatmul.mubr.bf16.gmra.mrb[0].mxu0 %v758
      %v2657 = vpop.f32.mrb[0].mxu0
      %v2658 = vadd.f32 0.0, %v2657
      %v2659 = vpop.f32.mrb[0].mxu0
      %v2660 = vpop.f32.mrb[0].mxu0
      %v2661 = vadd.f32 0.0, %v2660
      %v2662 = vpop.f32.mrb[0].mxu0
      %2663 = vmatprep.mubr.bf16.mxu0 0
      %2664 = vmatmul.mubr.bf16.gmra.mrb[0].mxu0 %v761
      %v2665 = vpop.f32.mrb[0].mxu0
      %v2666 = vadd.f32 0.0, %v2665
      %v2667 = vpop.f32.mrb[0].mxu0
      %v2668 = vpop.f32.mrb[0].mxu0
      %v2669 = vadd.f32 0.0, %v2668
      %v2670 = vpop.f32.mrb[0].mxu0
      %2671 = vmatprep.mubr.bf16.mxu0 0
      %2672 = vmatmul.mubr.bf16.gmra.mrb[0].mxu0 %v764
      %v2673 = vpop.f32.mrb[0].mxu0
      %v2674 = vadd.f32 0.0, %v2673
      %v2675 = vpop.f32.mrb[0].mxu0
      %v2676 = vpop.f32.mrb[0].mxu0
      %v2677 = vadd.f32 0.0, %v2676
      %v2678 = vpop.f32.mrb[0].mxu0
      %2679 = vmatprep.mubr.bf16.mxu0 0
      %2680 = vmatmul.mubr.bf16.gmra.mrb[0].mxu0 %v1884
      %v2681 = vpop.f32.mrb[0].mxu0
      %v2682 = vadd.f32 0.0, %v2681
      %v2683 = vpop.f32.mrb[0].mxu0
      %v2684 = vpop.f32.mrb[0].mxu0
      %v2685 = vadd.f32 0.0, %v2684
      %v2686 = vpop.f32.mrb[0].mxu0
      %2687 = vmatprep.mubr.bf16.mxu0 0
      %2688 = vmatmul.mubr.bf16.gmra.mrb[0].mxu0 %v2530
      %v2689 = vpop.f32.mrb[0].mxu0
      %v2690 = vadd.f32 0.0, %v2689
      %v2691 = vpop.f32.mrb[0].mxu0
      %v2692 = vpop.f32.mrb[0].mxu0
      %v2693 = vadd.f32 0.0, %v2692
      %v2694 = vpop.f32.mrb[0].mxu0
      %2695 = vdwg.mxu0
      %v2696 = vadd.f32 %v2468, %v2570
      %v2697 = vadd.f32 %v2469, %v2573
      %v2698 = vadd.f32 %v2470, %v2578
      %v2699 = vadd.f32 %v2471, %v2581
      %v2700 = vadd.f32 %v2472, %v2586
      %v2701 = vadd.f32 %v2473, %v2589
      %v2702 = vadd.f32 %v2474, %v2594
      %v2703 = vadd.f32 %v2475, %v2597
      %v2704 = vadd.f32 %v2476, %v2602
      %v2705 = vadd.f32 %v2477, %v2605
      %v2706 = vadd.f32 %v2478, %v2610
      %v2707 = vadd.f32 %v2479, %v2613
      %v2708 = vadd.f32 %v2480, %v2618
      %v2709 = vadd.f32 %v2481, %v2621
      %v2710 = vadd.f32 %v2482, %v2626
      %v2711 = vadd.f32 %v2483, %v2629
      %v2712 = vadd.f32 %v2484, %v2634
      %v2713 = vadd.f32 %v2485, %v2637
      %v2714 = vadd.f32 %v2486, %v2642
      %v2715 = vadd.f32 %v2487, %v2645
      %v2716 = vadd.f32 %v2488, %v2650
      %v2717 = vadd.f32 %v2489, %v2653
      %v2718 = vadd.f32 %v2490, %v2658
      %v2719 = vadd.f32 %v2491, %v2661
      %v2720 = vadd.f32 %v2492, %v2666
      %v2721 = vadd.f32 %v2493, %v2669
      %v2722 = vadd.f32 %v2494, %v2674
      %v2723 = vadd.f32 %v2495, %v2677
      %v2724 = vadd.f32 %v2496, %v2682
      %v2725 = vadd.f32 %v2497, %v2685
      %v2726 = vadd.f32 %v2498, %v2690
      %v2727 = vadd.f32 %v2499, %v2693
      %v2729 = vrot.slane %v276, 5
      %v2730 = vrot.slane %v2729, 4
      %v2731 = vrot.slane %v277, 5
      %v2732 = vsel %vm1241, %v2730, %v2731
      %v2733 = vrot.slane %v2731, 4
      %v2734 = vrot.slane %v278, 5
      %v2735 = vsel %vm1241, %v2733, %v2734
      %s2736 = scalar_lea.vmem %s1, 16
      %v2737 = vld [vmem:[%s2736] sm:$0x3]
      %v2738 = vunpack.c.l.b16 %v2732
      %v2739 = vunpack.c.l.b16 %v2735
      %v2740 = vpack.c.b16 %v2739, %v2738
      %v2742 = vsel %vm717, %v2740, 0
      %v2745 = vsel %vm766, %v2737, 0
      %2747 = vmatprep.subr.bf16.mxu0 0
      %2748 = vmatpush1.bf16.msra.mxu0 %v2745
      %2749 = vmatprep.subr.bf16.mxu0 0
      %2750 = vmatpush1.bf16.msra.mxu0 0
      %2751 = vmatprep.subr.bf16.mxu0 0
      %2752 = vmatpush1.bf16.msra.mxu0 0
      %2753 = vmatprep.subr.bf16.mxu0 0
      %2754 = vmatpush1.bf16.msra.mxu0 0
      %2755 = vmatprep.subr.bf16.mxu0 0
      %2756 = vmatpush1.bf16.msra.mxu0 0
      %2757 = vmatprep.subr.bf16.mxu0 0
      %2758 = vmatpush1.bf16.msra.mxu0 0
      %2759 = vmatprep.subr.bf16.mxu0 0
      %2760 = vmatpush1.bf16.msra.mxu0 0
      %2761 = vmatprep.subr.bf16.mxu0 0
      %2762 = vmatpush1.bf16.msra.mxu0 0
      %2763 = vmatprep.subr.bf16.mxu0 0
      %2764 = vmatpush1.bf16.msra.mxu0 0
      %2765 = vmatprep.subr.bf16.mxu0 0
      %2766 = vmatpush1.bf16.msra.mxu0 0
      %2767 = vmatprep.subr.bf16.mxu0 0
      %2768 = vmatpush1.bf16.msra.mxu0 0
      %2769 = vmatprep.subr.bf16.mxu0 0
      %2770 = vmatpush1.bf16.msra.mxu0 0
      %2771 = vmatprep.subr.bf16.mxu0 0
      %2772 = vmatpush1.bf16.msra.mxu0 0
      %2773 = vmatprep.subr.bf16.mxu0 0
      %2774 = vmatpush1.bf16.msra.mxu0 0
      %2775 = vmatprep.subr.bf16.mxu0 0
      %2776 = vmatpush1.bf16.msra.mxu0 0
      %2777 = vmatprep.subr.bf16.mxu0 0
      %2778 = vmatpush1.bf16.msra.mxu0 0
      %2779 = vmatprep.mubr.bf16.mxu0 0
      %2780 = vmatmul.mubr.bf16.gmra.mrb[0].mxu0 %v1411
      %v2781 = vpop.f32.mrb[0].mxu0
      %v2782 = vadd.f32 0.0, %v2781
      %v2783 = vpop.f32.mrb[0].mxu0
      %v2784 = vpop.f32.mrb[0].mxu0
      %v2785 = vadd.f32 0.0, %v2784
      %v2786 = vpop.f32.mrb[0].mxu0
      %2787 = vmatprep.mubr.bf16.mxu0 0
      %2788 = vmatmul.mubr.bf16.gmra.mrb[0].mxu0 %v1414
      %v2789 = vpop.f32.mrb[0].mxu0
      %v2790 = vadd.f32 0.0, %v2789
      %v2791 = vpop.f32.mrb[0].mxu0
      %v2792 = vpop.f32.mrb[0].mxu0
      %v2793 = vadd.f32 0.0, %v2792
      %v2794 = vpop.f32.mrb[0].mxu0
      %2795 = vmatprep.mubr.bf16.mxu0 0
      %2796 = vmatmul.mubr.bf16.gmra.mrb[0].mxu0 %v1417
      %v2797 = vpop.f32.mrb[0].mxu0
      %v2798 = vadd.f32 0.0, %v2797
      %v2799 = vpop.f32.mrb[0].mxu0
      %v2800 = vpop.f32.mrb[0].mxu0
      %v2801 = vadd.f32 0.0, %v2800
      %v2802 = vpop.f32.mrb[0].mxu0
      %2803 = vmatprep.mubr.bf16.mxu0 0
      %2804 = vmatmul.mubr.bf16.gmra.mrb[0].mxu0 %v1420
      %v2805 = vpop.f32.mrb[0].mxu0
      %v2806 = vadd.f32 0.0, %v2805
      %v2807 = vpop.f32.mrb[0].mxu0
      %v2808 = vpop.f32.mrb[0].mxu0
      %v2809 = vadd.f32 0.0, %v2808
      %v2810 = vpop.f32.mrb[0].mxu0
      %2811 = vmatprep.mubr.bf16.mxu0 0
      %2812 = vmatmul.mubr.bf16.gmra.mrb[0].mxu0 %v1423
      %v2813 = vpop.f32.mrb[0].mxu0
      %v2814 = vadd.f32 0.0, %v2813
      %v2815 = vpop.f32.mrb[0].mxu0
      %v2816 = vpop.f32.mrb[0].mxu0
      %v2817 = vadd.f32 0.0, %v2816
      %v2818 = vpop.f32.mrb[0].mxu0
      %2819 = vmatprep.mubr.bf16.mxu0 0
      %2820 = vmatmul.mubr.bf16.gmra.mrb[0].mxu0 %v1426
      %v2821 = vpop.f32.mrb[0].mxu0
      %v2822 = vadd.f32 0.0, %v2821
      %v2823 = vpop.f32.mrb[0].mxu0
      %v2824 = vpop.f32.mrb[0].mxu0
      %v2825 = vadd.f32 0.0, %v2824
      %v2826 = vpop.f32.mrb[0].mxu0
      %2827 = vmatprep.mubr.bf16.mxu0 0
      %2828 = vmatmul.mubr.bf16.gmra.mrb[0].mxu0 %v1429
      %v2829 = vpop.f32.mrb[0].mxu0
      %v2830 = vadd.f32 0.0, %v2829
      %v2831 = vpop.f32.mrb[0].mxu0
      %v2832 = vpop.f32.mrb[0].mxu0
      %v2833 = vadd.f32 0.0, %v2832
      %v2834 = vpop.f32.mrb[0].mxu0
      %2835 = vmatprep.mubr.bf16.mxu0 0
      %2836 = vmatmul.mubr.bf16.gmra.mrb[0].mxu0 %v1432
      %v2837 = vpop.f32.mrb[0].mxu0
      %v2838 = vadd.f32 0.0, %v2837
      %v2839 = vpop.f32.mrb[0].mxu0
      %v2840 = vpop.f32.mrb[0].mxu0
      %v2841 = vadd.f32 0.0, %v2840
      %v2842 = vpop.f32.mrb[0].mxu0
      %2843 = vmatprep.mubr.bf16.mxu0 0
      %2844 = vmatmul.mubr.bf16.gmra.mrb[0].mxu0 %v1435
      %v2845 = vpop.f32.mrb[0].mxu0
      %v2846 = vadd.f32 0.0, %v2845
      %v2847 = vpop.f32.mrb[0].mxu0
      %v2848 = vpop.f32.mrb[0].mxu0
      %v2849 = vadd.f32 0.0, %v2848
      %v2850 = vpop.f32.mrb[0].mxu0
      %2851 = vmatprep.mubr.bf16.mxu0 0
      %2852 = vmatmul.mubr.bf16.gmra.mrb[0].mxu0 %v1438
      %v2853 = vpop.f32.mrb[0].mxu0
      %v2854 = vadd.f32 0.0, %v2853
      %v2855 = vpop.f32.mrb[0].mxu0
      %v2856 = vpop.f32.mrb[0].mxu0
      %v2857 = vadd.f32 0.0, %v2856
      %v2858 = vpop.f32.mrb[0].mxu0
      %2859 = vmatprep.mubr.bf16.mxu0 0
      %2860 = vmatmul.mubr.bf16.gmra.mrb[0].mxu0 %v1441
      %v2861 = vpop.f32.mrb[0].mxu0
      %v2862 = vadd.f32 0.0, %v2861
      %v2863 = vpop.f32.mrb[0].mxu0
      %v2864 = vpop.f32.mrb[0].mxu0
      %v2865 = vadd.f32 0.0, %v2864
      %v2866 = vpop.f32.mrb[0].mxu0
      %2867 = vmatprep.mubr.bf16.mxu0 0
      %2868 = vmatmul.mubr.bf16.gmra.mrb[0].mxu0 %v1444
      %v2869 = vpop.f32.mrb[0].mxu0
      %v2870 = vadd.f32 0.0, %v2869
      %v2871 = vpop.f32.mrb[0].mxu0
      %v2872 = vpop.f32.mrb[0].mxu0
      %v2873 = vadd.f32 0.0, %v2872
      %v2874 = vpop.f32.mrb[0].mxu0
      %2875 = vmatprep.mubr.bf16.mxu0 0
      %2876 = vmatmul.mubr.bf16.gmra.mrb[0].mxu0 %v1447
      %v2877 = vpop.f32.mrb[0].mxu0
      %v2878 = vadd.f32 0.0, %v2877
      %v2879 = vpop.f32.mrb[0].mxu0
      %v2880 = vpop.f32.mrb[0].mxu0
      %v2881 = vadd.f32 0.0, %v2880
      %v2882 = vpop.f32.mrb[0].mxu0
      %2883 = vmatprep.mubr.bf16.mxu0 0
      %2884 = vmatmul.mubr.bf16.gmra.mrb[0].mxu0 %v1450
      %v2885 = vpop.f32.mrb[0].mxu0
      %v2886 = vadd.f32 0.0, %v2885
      %v2887 = vpop.f32.mrb[0].mxu0
      %v2888 = vpop.f32.mrb[0].mxu0
      %v2889 = vadd.f32 0.0, %v2888
      %v2890 = vpop.f32.mrb[0].mxu0
      %2891 = vmatprep.mubr.bf16.mxu0 0
      %2892 = vmatmul.mubr.bf16.gmra.mrb[0].mxu0 %v2096
      %v2893 = vpop.f32.mrb[0].mxu0
      %v2894 = vadd.f32 0.0, %v2893
      %v2895 = vpop.f32.mrb[0].mxu0
      %v2896 = vpop.f32.mrb[0].mxu0
      %v2897 = vadd.f32 0.0, %v2896
      %v2898 = vpop.f32.mrb[0].mxu0
      %2899 = vmatprep.mubr.bf16.mxu0 0
      %2900 = vmatmul.mubr.bf16.gmra.mrb[0].mxu0 %v2742
      %v2901 = vpop.f32.mrb[0].mxu0
      %v2902 = vadd.f32 0.0, %v2901
      %v2903 = vpop.f32.mrb[0].mxu0
      %v2904 = vpop.f32.mrb[0].mxu0
      %v2905 = vadd.f32 0.0, %v2904
      %v2906 = vpop.f32.mrb[0].mxu0
      %2907 = vdwg.mxu0
      %v2908 = vadd.f32 %v2696, %v2782
      %v2909 = vadd.f32 %v2697, %v2785
      %v2910 = vadd.f32 %v2698, %v2790
      %v2911 = vadd.f32 %v2699, %v2793
      %v2912 = vadd.f32 %v2700, %v2798
      %v2913 = vadd.f32 %v2701, %v2801
      %v2914 = vadd.f32 %v2702, %v2806
      %v2915 = vadd.f32 %v2703, %v2809
      %v2916 = vadd.f32 %v2704, %v2814
      %v2917 = vadd.f32 %v2705, %v2817
      %v2918 = vadd.f32 %v2706, %v2822
      %v2919 = vadd.f32 %v2707, %v2825
      %v2920 = vadd.f32 %v2708, %v2830
      %v2921 = vadd.f32 %v2709, %v2833
      %v2922 = vadd.f32 %v2710, %v2838
      %v2923 = vadd.f32 %v2711, %v2841
      %v2924 = vadd.f32 %v2712, %v2846
      %v2925 = vadd.f32 %v2713, %v2849
      %v2926 = vadd.f32 %v2714, %v2854
      %v2927 = vadd.f32 %v2715, %v2857
      %v2928 = vadd.f32 %v2716, %v2862
      %v2929 = vadd.f32 %v2717, %v2865
      %v2930 = vadd.f32 %v2718, %v2870
      %v2931 = vadd.f32 %v2719, %v2873
      %v2932 = vadd.f32 %v2720, %v2878
      %v2933 = vadd.f32 %v2721, %v2881
      %v2934 = vadd.f32 %v2722, %v2886
      %v2935 = vadd.f32 %v2723, %v2889
      %v2936 = vadd.f32 %v2724, %v2894
      %v2937 = vadd.f32 %v2725, %v2897
      %v2938 = vadd.f32 %v2726, %v2902
      %v2939 = vadd.f32 %v2727, %v2905
      %v2956 = vrot.slane %v2910, 7
      %vm2957 = vcmask 1041409
      %v2958 = vsel %vm2957, %v2956, %v2908
      %v2959 = vrot.slane %v2912, 6
      %vm2960 = vcmask 1042434
      %v2961 = vsel %vm2960, %v2959, %v2958
      %v2962 = vrot.slane %v2914, 5
      %vm2963 = vcmask 1043459
      %v2964 = vsel %vm2963, %v2962, %v2961
      %v2965 = vrot.slane %v2916, 4
      %vm2966 = vcmask 1044484
      %v2967 = vsel %vm2966, %v2965, %v2964
      %v2968 = vrot.slane %v2918, 3
      %vm2969 = vcmask 1045509
      %v2970 = vsel %vm2969, %v2968, %v2967
      %v2971 = vrot.slane %v2920, 2
      %vm2972 = vcmask 1046534
      %v2973 = vsel %vm2972, %v2971, %v2970
      %v2974 = vrot.slane %v2922, 1
      %vm2975 = vcmask 1047559
      %v2976 = vsel %vm2975, %v2974, %v2973
      %v2977 = vrot.slane %v2926, 7
      %v2978 = vsel %vm2957, %v2977, %v2924
      %v2979 = vrot.slane %v2928, 6
      %v2980 = vsel %vm2960, %v2979, %v2978
      %v2981 = vrot.slane %v2930, 5
      %v2982 = vsel %vm2963, %v2981, %v2980
      %v2983 = vrot.slane %v2932, 4
      %v2984 = vsel %vm2966, %v2983, %v2982
      %v2985 = vrot.slane %v2934, 3
      %v2986 = vsel %vm2969, %v2985, %v2984
      %v2987 = vrot.slane %v2936, 2
      %v2988 = vsel %vm2972, %v2987, %v2986
      %v2989 = vrot.slane %v2938, 1
      %v2990 = vsel %vm2975, %v2989, %v2988
      %vm2993 = vcmask 64512
      %2994 = vst.msk [vmem:[#allocation2] sm:$0xff] %vm2993, %v2976
      %2995 = vst.msk [vmem:[#allocation2 + $0x8] sm:$0xff] %vm2993, %v2990
      %v2996 = vmul.f32 %v2908, 0.85714287
      %v2997 = vmul.f32 %v2910, 0.85714287
      %v2998 = vmul.f32 %v2912, 0.85714287
      %v2999 = vmul.f32 %v2914, 0.85714287
      %v3000 = vmul.f32 %v2916, 0.85714287
      %v3001 = vmul.f32 %v2918, 0.85714287
      %v3002 = vmul.f32 %v2920, 0.85714287
      %v3003 = vmul.f32 %v2922, 0.85714287
      %v3004 = vmul.f32 %v2924, 0.85714287
      %v3005 = vmul.f32 %v2926, 0.85714287
      %v3006 = vmul.f32 %v2928, 0.85714287
      %v3007 = vmul.f32 %v2930, 0.85714287
      %v3008 = vmul.f32 %v2932, 0.85714287
      %v3009 = vmul.f32 %v2934, 0.85714287
      %v3010 = vmul.f32 %v2936, 0.85714287
      %v3011 = vmul.f32 %v2938, 0.85714287
      %v3012 = vmul.f32 %v2908, 0.14285715
      %v3013 = vmul.f32 %v2910, 0.14285715
      %v3014 = vmul.f32 %v2912, 0.14285715
      %v3015 = vmul.f32 %v2914, 0.14285715
      %v3016 = vmul.f32 %v2916, 0.14285715
      %v3017 = vmul.f32 %v2918, 0.14285715
      %v3018 = vmul.f32 %v2920, 0.14285715
      %v3019 = vmul.f32 %v2922, 0.14285715
      %v3020 = vmul.f32 %v2924, 0.14285715
      %v3021 = vmul.f32 %v2926, 0.14285715
      %v3022 = vmul.f32 %v2928, 0.14285715
      %v3023 = vmul.f32 %v2930, 0.14285715
      %v3024 = vmul.f32 %v2932, 0.14285715
      %v3025 = vmul.f32 %v2934, 0.14285715
      %v3026 = vmul.f32 %v2936, 0.14285715
      %v3027 = vmul.f32 %v2938, 0.14285715
      %v3044 = vrot.slane %v3012, 1
      %v3045 = vrot.slane %v3013, 1
      %v3046 = vrot.slane %v3014, 1
      %v3047 = vrot.slane %v3015, 1
      %v3048 = vrot.slane %v3016, 1
      %v3049 = vrot.slane %v3017, 1
      %v3050 = vrot.slane %v3018, 1
      %v3051 = vrot.slane %v3019, 1
      %v3052 = vrot.slane %v3020, 1
      %v3053 = vrot.slane %v3021, 1
      %v3054 = vrot.slane %v3022, 1
      %v3055 = vrot.slane %v3023, 1
      %v3056 = vrot.slane %v3024, 1
      %v3057 = vrot.slane %v3025, 1
      %v3058 = vrot.slane %v3026, 1
      %v3059 = vrot.slane %v3027, 1
      %v3076 = vadd.f32 %v2996, %v3044
      %v3077 = vadd.f32 %v2997, %v3045
      %v3078 = vadd.f32 %v2998, %v3046
      %v3079 = vadd.f32 %v2999, %v3047
      %v3080 = vadd.f32 %v3000, %v3048
      %v3081 = vadd.f32 %v3001, %v3049
      %v3082 = vadd.f32 %v3002, %v3050
      %v3083 = vadd.f32 %v3003, %v3051
      %v3084 = vadd.f32 %v3004, %v3052
      %v3085 = vadd.f32 %v3005, %v3053
      %v3086 = vadd.f32 %v3006, %v3054
      %v3087 = vadd.f32 %v3007, %v3055
      %v3088 = vadd.f32 %v3008, %v3056
      %v3089 = vadd.f32 %v3009, %v3057
      %v3090 = vadd.f32 %v3010, %v3058
      %v3091 = vadd.f32 %v3011, %v3059
      %v3108 = vrot.slane %v3077, 7
      %v3109 = vsel %vm2963, %v3108, %v3076
      %v3110 = vrot.slane %v3078, 6
      %v3111 = vsel %vm2966, %v3110, %v3109
      %v3112 = vrot.slane %v3079, 5
      %v3113 = vsel %vm2969, %v3112, %v3111
      %v3114 = vrot.slane %v3080, 4
      %v3115 = vsel %vm2972, %v3114, %v3113
      %v3116 = vrot.slane %v3081, 3
      %v3117 = vsel %vm2975, %v3116, %v3115
      %v3118 = vrot.slane %v3082, 2
      %v3119 = vrot.slane %v3083, 1
      %v3120 = vsel %vm2957, %v3119, %v3118
      %v3121 = vsel %vm2960, %v3084, %v3120
      %v3122 = vrot.slane %v3085, 7
      %v3123 = vsel %vm2963, %v3122, %v3121
      %v3124 = vrot.slane %v3086, 6
      %v3125 = vsel %vm2966, %v3124, %v3123
      %v3126 = vrot.slane %v3087, 5
      %v3127 = vsel %vm2969, %v3126, %v3125
      %v3128 = vrot.slane %v3088, 4
      %v3129 = vsel %vm2972, %v3128, %v3127
      %v3130 = vrot.slane %v3089, 3
      %v3131 = vsel %vm2975, %v3130, %v3129
      %v3132 = vrot.slane %v3090, 2
      %v3133 = vrot.slane %v3091, 1
      %v3134 = vsel %vm2957, %v3133, %v3132
      %s3138 = scalar_lea.vmem [#allocation2], 16
      %vm3139 = vcmask 64514
      %3140 = vst.msk [vmem:[%s3138 - $0x2] sm:$0xfc] %vm3139, %v3117
      %3141 = vst.msk [vmem:[%s3138 + $0x6] sm:$0xff] %vm2993, %v3131
      %vm3142 = vcmask 58368
      %3143 = vst.msk [vmem:[%s3138 + $0xe] sm:$0x3] %vm3142, %v3134
      %v3144 = vmul.f32 %v2908, 0.71428573
      %v3145 = vmul.f32 %v2910, 0.71428573
      %v3146 = vmul.f32 %v2912, 0.71428573
      %v3147 = vmul.f32 %v2914, 0.71428573
      %v3148 = vmul.f32 %v2916, 0.71428573
      %v3149 = vmul.f32 %v2918, 0.71428573
      %v3150 = vmul.f32 %v2920, 0.71428573
      %v3151 = vmul.f32 %v2922, 0.71428573
      %v3152 = vmul.f32 %v2924, 0.71428573
      %v3153 = vmul.f32 %v2926, 0.71428573
      %v3154 = vmul.f32 %v2928, 0.71428573
      %v3155 = vmul.f32 %v2930, 0.71428573
      %v3156 = vmul.f32 %v2932, 0.71428573
      %v3157 = vmul.f32 %v2934, 0.71428573
      %v3158 = vmul.f32 %v2936, 0.71428573
      %v3159 = vmul.f32 %v2938, 0.71428573
      %v3160 = vmul.f32 %v2908, 0.2857143
      %v3161 = vmul.f32 %v2910, 0.2857143
      %v3162 = vmul.f32 %v2912, 0.2857143
      %v3163 = vmul.f32 %v2914, 0.2857143
      %v3164 = vmul.f32 %v2916, 0.2857143
      %v3165 = vmul.f32 %v2918, 0.2857143
      %v3166 = vmul.f32 %v2920, 0.2857143
      %v3167 = vmul.f32 %v2922, 0.2857143
      %v3168 = vmul.f32 %v2924, 0.2857143
      %v3169 = vmul.f32 %v2926, 0.2857143
      %v3170 = vmul.f32 %v2928, 0.2857143
      %v3171 = vmul.f32 %v2930, 0.2857143
      %v3172 = vmul.f32 %v2932, 0.2857143
      %v3173 = vmul.f32 %v2934, 0.2857143
      %v3174 = vmul.f32 %v2936, 0.2857143
      %v3175 = vmul.f32 %v2938, 0.2857143
      %v3192 = vrot.slane %v3160, 1
      %v3193 = vrot.slane %v3161, 1
      %v3194 = vrot.slane %v3162, 1
      %v3195 = vrot.slane %v3163, 1
      %v3196 = vrot.slane %v3164, 1
      %v3197 = vrot.slane %v3165, 1
      %v3198 = vrot.slane %v3166, 1
      %v3199 = vrot.slane %v3167, 1
      %v3200 = vrot.slane %v3168, 1
      %v3201 = vrot.slane %v3169, 1
      %v3202 = vrot.slane %v3170, 1
      %v3203 = vrot.slane %v3171, 1
      %v3204 = vrot.slane %v3172, 1
      %v3205 = vrot.slane %v3173, 1
      %v3206 = vrot.slane %v3174, 1
      %v3207 = vrot.slane %v3175, 1
      %v3224 = vadd.f32 %v3144, %v3192
      %v3225 = vadd.f32 %v3145, %v3193
      %v3226 = vadd.f32 %v3146, %v3194
      %v3227 = vadd.f32 %v3147, %v3195
      %v3228 = vadd.f32 %v3148, %v3196
      %v3229 = vadd.f32 %v3149, %v3197
      %v3230 = vadd.f32 %v3150, %v3198
      %v3231 = vadd.f32 %v3151, %v3199
      %v3232 = vadd.f32 %v3152, %v3200
      %v3233 = vadd.f32 %v3153, %v3201
      %v3234 = vadd.f32 %v3154, %v3202
      %v3235 = vadd.f32 %v3155, %v3203
      %v3236 = vadd.f32 %v3156, %v3204
      %v3237 = vadd.f32 %v3157, %v3205
      %v3238 = vadd.f32 %v3158, %v3206
      %v3239 = vadd.f32 %v3159, %v3207
      %v3256 = vrot.slane %v3225, 7
      %v3257 = vsel %vm2969, %v3256, %v3224
      %v3258 = vrot.slane %v3226, 6
      %v3259 = vsel %vm2972, %v3258, %v3257
      %v3260 = vrot.slane %v3227, 5
      %v3261 = vsel %vm2975, %v3260, %v3259
      %v3262 = vrot.slane %v3228, 4
      %v3263 = vrot.slane %v3229, 3
      %v3264 = vsel %vm2957, %v3263, %v3262
      %v3265 = vrot.slane %v3230, 2
      %v3266 = vsel %vm2960, %v3265, %v3264
      %v3267 = vrot.slane %v3231, 1
      %v3268 = vsel %vm2963, %v3267, %v3266
      %v3269 = vsel %vm2966, %v3232, %v3268
      %v3270 = vrot.slane %v3233, 7
      %v3271 = vsel %vm2969, %v3270, %v3269
      %v3272 = vrot.slane %v3234, 6
      %v3273 = vsel %vm2972, %v3272, %v3271
      %v3274 = vrot.slane %v3235, 5
      %v3275 = vsel %vm2975, %v3274, %v3273
      %v3276 = vrot.slane %v3236, 4
      %v3277 = vrot.slane %v3237, 3
      %v3278 = vsel %vm2957, %v3277, %v3276
      %v3279 = vrot.slane %v3238, 2
      %v3280 = vsel %vm2960, %v3279, %v3278
      %v3281 = vrot.slane %v3239, 1
      %v3282 = vsel %vm2963, %v3281, %v3280
      %s3286 = scalar_lea.vmem [#allocation2], 32
      %vm3287 = vcmask 64516
      %3288 = vst.msk [vmem:[%s3286 - $0x4] sm:$0xf0] %vm3287, %v3261
      %3289 = vst.msk [vmem:[%s3286 + $0x4] sm:$0xff] %vm2993, %v3275
      %vm3290 = vcmask 60416
      %3291 = vst.msk [vmem:[%s3286 + $0xc] sm:$0xf] %vm3290, %v3282
      %v3292 = vmul.f32 %v2908, 0.5714286
      %v3293 = vmul.f32 %v2910, 0.5714286
      %v3294 = vmul.f32 %v2912, 0.5714286
      %v3295 = vmul.f32 %v2914, 0.5714286
      %v3296 = vmul.f32 %v2916, 0.5714286
      %v3297 = vmul.f32 %v2918, 0.5714286
      %v3298 = vmul.f32 %v2920, 0.5714286
      %v3299 = vmul.f32 %v2922, 0.5714286
      %v3300 = vmul.f32 %v2924, 0.5714286
      %v3301 = vmul.f32 %v2926, 0.5714286
      %v3302 = vmul.f32 %v2928, 0.5714286
      %v3303 = vmul.f32 %v2930, 0.5714286
      %v3304 = vmul.f32 %v2932, 0.5714286
      %v3305 = vmul.f32 %v2934, 0.5714286
      %v3306 = vmul.f32 %v2936, 0.5714286
      %v3307 = vmul.f32 %v2938, 0.5714286
      %v3308 = vmul.f32 %v2908, 0.42857143
      %v3309 = vmul.f32 %v2910, 0.42857143
      %v3310 = vmul.f32 %v2912, 0.42857143
      %v3311 = vmul.f32 %v2914, 0.42857143
      %v3312 = vmul.f32 %v2916, 0.42857143
      %v3313 = vmul.f32 %v2918, 0.42857143
      %v3314 = vmul.f32 %v2920, 0.42857143
      %v3315 = vmul.f32 %v2922, 0.42857143
      %v3316 = vmul.f32 %v2924, 0.42857143
      %v3317 = vmul.f32 %v2926, 0.42857143
      %v3318 = vmul.f32 %v2928, 0.42857143
      %v3319 = vmul.f32 %v2930, 0.42857143
      %v3320 = vmul.f32 %v2932, 0.42857143
      %v3321 = vmul.f32 %v2934, 0.42857143
      %v3322 = vmul.f32 %v2936, 0.42857143
      %v3323 = vmul.f32 %v2938, 0.42857143
      %v3340 = vrot.slane %v3308, 1
      %v3341 = vrot.slane %v3309, 1
      %v3342 = vrot.slane %v3310, 1
      %v3343 = vrot.slane %v3311, 1
      %v3344 = vrot.slane %v3312, 1
      %v3345 = vrot.slane %v3313, 1
      %v3346 = vrot.slane %v3314, 1
      %v3347 = vrot.slane %v3315, 1
      %v3348 = vrot.slane %v3316, 1
      %v3349 = vrot.slane %v3317, 1
      %v3350 = vrot.slane %v3318, 1
      %v3351 = vrot.slane %v3319, 1
      %v3352 = vrot.slane %v3320, 1
      %v3353 = vrot.slane %v3321, 1
      %v3354 = vrot.slane %v3322, 1
      %v3355 = vrot.slane %v3323, 1
      %v3372 = vadd.f32 %v3292, %v3340
      %v3373 = vadd.f32 %v3293, %v3341
      %v3374 = vadd.f32 %v3294, %v3342
      %v3375 = vadd.f32 %v3295, %v3343
      %v3376 = vadd.f32 %v3296, %v3344
      %v3377 = vadd.f32 %v3297, %v3345
      %v3378 = vadd.f32 %v3298, %v3346
      %v3379 = vadd.f32 %v3299, %v3347
      %v3380 = vadd.f32 %v3300, %v3348
      %v3381 = vadd.f32 %v3301, %v3349
      %v3382 = vadd.f32 %v3302, %v3350
      %v3383 = vadd.f32 %v3303, %v3351
      %v3384 = vadd.f32 %v3304, %v3352
      %v3385 = vadd.f32 %v3305, %v3353
      %v3386 = vadd.f32 %v3306, %v3354
      %v3387 = vadd.f32 %v3307, %v3355
      %v3404 = vrot.slane %v3373, 7
      %v3405 = vsel %vm2975, %v3404, %v3372
      %v3406 = vrot.slane %v3374, 6
      %v3407 = vrot.slane %v3375, 5
      %v3408 = vsel %vm2957, %v3407, %v3406
      %v3409 = vrot.slane %v3376, 4
      %v3410 = vsel %vm2960, %v3409, %v3408
      %v3411 = vrot.slane %v3377, 3
      %v3412 = vsel %vm2963, %v3411, %v3410
      %v3413 = vrot.slane %v3378, 2
      %v3414 = vsel %vm2966, %v3413, %v3412
      %v3415 = vrot.slane %v3379, 1
      %v3416 = vsel %vm2969, %v3415, %v3414
      %v3417 = vsel %vm2972, %v3380, %v3416
      %v3418 = vrot.slane %v3381, 7
      %v3419 = vsel %vm2975, %v3418, %v3417
      %v3420 = vrot.slane %v3382, 6
      %v3421 = vrot.slane %v3383, 5
      %v3422 = vsel %vm2957, %v3421, %v3420
      %v3423 = vrot.slane %v3384, 4
      %v3424 = vsel %vm2960, %v3423, %v3422
      %v3425 = vrot.slane %v3385, 3
      %v3426 = vsel %vm2963, %v3425, %v3424
      %v3427 = vrot.slane %v3386, 2
      %v3428 = vsel %vm2966, %v3427, %v3426
      %v3429 = vrot.slane %v3387, 1
      %v3430 = vsel %vm2969, %v3429, %v3428
      %s3434 = scalar_lea.vmem [#allocation2], 48
      %vm3435 = vcmask 64518
      %3436 = vst.msk [vmem:[%s3434 - $0x6] sm:$0xc0] %vm3435, %v3405
      %3437 = vst.msk [vmem:[%s3434 + $0x2] sm:$0xff] %vm2993, %v3419
      %vm3438 = vcmask 62464
      %3439 = vst.msk [vmem:[%s3434 + $0xa] sm:$0x3f] %vm3438, %v3430
      %v3440 = vmul.f32 %v2909, 0.42857143
      %v3441 = vmul.f32 %v2911, 0.42857143
      %v3442 = vmul.f32 %v2913, 0.42857143
      %v3443 = vmul.f32 %v2915, 0.42857143
      %v3444 = vmul.f32 %v2917, 0.42857143
      %v3445 = vmul.f32 %v2919, 0.42857143
      %v3446 = vmul.f32 %v2921, 0.42857143
      %v3447 = vmul.f32 %v2923, 0.42857143
      %v3448 = vmul.f32 %v2925, 0.42857143
      %v3449 = vmul.f32 %v2927, 0.42857143
      %v3450 = vmul.f32 %v2929, 0.42857143
      %v3451 = vmul.f32 %v2931, 0.42857143
      %v3452 = vmul.f32 %v2933, 0.42857143
      %v3453 = vmul.f32 %v2935, 0.42857143
      %v3454 = vmul.f32 %v2937, 0.42857143
      %v3455 = vmul.f32 %v2939, 0.42857143
      %v3456 = vmul.f32 %v2909, 0.5714286
      %v3457 = vmul.f32 %v2911, 0.5714286
      %v3458 = vmul.f32 %v2913, 0.5714286
      %v3459 = vmul.f32 %v2915, 0.5714286
      %v3460 = vmul.f32 %v2917, 0.5714286
      %v3461 = vmul.f32 %v2919, 0.5714286
      %v3462 = vmul.f32 %v2921, 0.5714286
      %v3463 = vmul.f32 %v2923, 0.5714286
      %v3464 = vmul.f32 %v2925, 0.5714286
      %v3465 = vmul.f32 %v2927, 0.5714286
      %v3466 = vmul.f32 %v2929, 0.5714286
      %v3467 = vmul.f32 %v2931, 0.5714286
      %v3468 = vmul.f32 %v2933, 0.5714286
      %v3469 = vmul.f32 %v2935, 0.5714286
      %v3470 = vmul.f32 %v2937, 0.5714286
      %v3471 = vmul.f32 %v2939, 0.5714286
      %v3488 = vrot.slane %v3456, 1
      %v3489 = vrot.slane %v3457, 1
      %v3490 = vrot.slane %v3458, 1
      %v3491 = vrot.slane %v3459, 1
      %v3492 = vrot.slane %v3460, 1
      %v3493 = vrot.slane %v3461, 1
      %v3494 = vrot.slane %v3462, 1
      %v3495 = vrot.slane %v3463, 1
      %v3496 = vrot.slane %v3464, 1
      %v3497 = vrot.slane %v3465, 1
      %v3498 = vrot.slane %v3466, 1
      %v3499 = vrot.slane %v3467, 1
      %v3500 = vrot.slane %v3468, 1
      %v3501 = vrot.slane %v3469, 1
      %v3502 = vrot.slane %v3470, 1
      %v3503 = vrot.slane %v3471, 1
      %v3520 = vadd.f32 %v3440, %v3488
      %v3521 = vadd.f32 %v3441, %v3489
      %v3522 = vadd.f32 %v3442, %v3490
      %v3523 = vadd.f32 %v3443, %v3491
      %v3524 = vadd.f32 %v3444, %v3492
      %v3525 = vadd.f32 %v3445, %v3493
      %v3526 = vadd.f32 %v3446, %v3494
      %v3527 = vadd.f32 %v3447, %v3495
      %v3528 = vadd.f32 %v3448, %v3496
      %v3529 = vadd.f32 %v3449, %v3497
      %v3530 = vadd.f32 %v3450, %v3498
      %v3531 = vadd.f32 %v3451, %v3499
      %v3532 = vadd.f32 %v3452, %v3500
      %v3533 = vadd.f32 %v3453, %v3501
      %v3534 = vadd.f32 %v3454, %v3502
      %v3535 = vadd.f32 %v3455, %v3503
      %v3552 = vrot.slane %v3521, 7
      %v3553 = vsel %vm2957, %v3552, %v3520
      %v3554 = vrot.slane %v3522, 6
      %v3555 = vsel %vm2960, %v3554, %v3553
      %v3556 = vrot.slane %v3523, 5
      %v3557 = vsel %vm2963, %v3556, %v3555
      %v3558 = vrot.slane %v3524, 4
      %v3559 = vsel %vm2966, %v3558, %v3557
      %v3560 = vrot.slane %v3525, 3
      %v3561 = vsel %vm2969, %v3560, %v3559
      %v3562 = vrot.slane %v3526, 2
      %v3563 = vsel %vm2972, %v3562, %v3561
      %v3564 = vrot.slane %v3527, 1
      %v3565 = vsel %vm2975, %v3564, %v3563
      %v3566 = vrot.slane %v3529, 7
      %v3567 = vsel %vm2957, %v3566, %v3528
      %v3568 = vrot.slane %v3530, 6
      %v3569 = vsel %vm2960, %v3568, %v3567
      %v3570 = vrot.slane %v3531, 5
      %v3571 = vsel %vm2963, %v3570, %v3569
      %v3572 = vrot.slane %v3532, 4
      %v3573 = vsel %vm2966, %v3572, %v3571
      %v3574 = vrot.slane %v3533, 3
      %v3575 = vsel %vm2969, %v3574, %v3573
      %v3576 = vrot.slane %v3534, 2
      %v3577 = vsel %vm2972, %v3576, %v3575
      %v3578 = vrot.slane %v3535, 1
      %v3579 = vsel %vm2975, %v3578, %v3577
      %s3582 = scalar_lea.vmem [#allocation2], 64
      %3583 = vst.msk [vmem:[%s3582] sm:$0xff] %vm2993, %v3565
      %3584 = vst.msk [vmem:[%s3582 + $0x8] sm:$0xff] %vm2993, %v3579
      %v3585 = vmul.f32 %v2909, 0.2857143
      %v3586 = vmul.f32 %v2911, 0.2857143
      %v3587 = vmul.f32 %v2913, 0.2857143
      %v3588 = vmul.f32 %v2915, 0.2857143
      %v3589 = vmul.f32 %v2917, 0.2857143
      %v3590 = vmul.f32 %v2919, 0.2857143
      %v3591 = vmul.f32 %v2921, 0.2857143
      %v3592 = vmul.f32 %v2923, 0.2857143
      %v3593 = vmul.f32 %v2925, 0.2857143
      %v3594 = vmul.f32 %v2927, 0.2857143
      %v3595 = vmul.f32 %v2929, 0.2857143
      %v3596 = vmul.f32 %v2931, 0.2857143
      %v3597 = vmul.f32 %v2933, 0.2857143
      %v3598 = vmul.f32 %v2935, 0.2857143
      %v3599 = vmul.f32 %v2937, 0.2857143
      %v3600 = vmul.f32 %v2939, 0.2857143
      %v3601 = vmul.f32 %v2909, 0.71428573
      %v3602 = vmul.f32 %v2911, 0.71428573
      %v3603 = vmul.f32 %v2913, 0.71428573
      %v3604 = vmul.f32 %v2915, 0.71428573
      %v3605 = vmul.f32 %v2917, 0.71428573
      %v3606 = vmul.f32 %v2919, 0.71428573
      %v3607 = vmul.f32 %v2921, 0.71428573
      %v3608 = vmul.f32 %v2923, 0.71428573
      %v3609 = vmul.f32 %v2925, 0.71428573
      %v3610 = vmul.f32 %v2927, 0.71428573
      %v3611 = vmul.f32 %v2929, 0.71428573
      %v3612 = vmul.f32 %v2931, 0.71428573
      %v3613 = vmul.f32 %v2933, 0.71428573
      %v3614 = vmul.f32 %v2935, 0.71428573
      %v3615 = vmul.f32 %v2937, 0.71428573
      %v3616 = vmul.f32 %v2939, 0.71428573
      %v3633 = vrot.slane %v3601, 1
      %v3634 = vrot.slane %v3602, 1
      %v3635 = vrot.slane %v3603, 1
      %v3636 = vrot.slane %v3604, 1
      %v3637 = vrot.slane %v3605, 1
      %v3638 = vrot.slane %v3606, 1
      %v3639 = vrot.slane %v3607, 1
      %v3640 = vrot.slane %v3608, 1
      %v3641 = vrot.slane %v3609, 1
      %v3642 = vrot.slane %v3610, 1
      %v3643 = vrot.slane %v3611, 1
      %v3644 = vrot.slane %v3612, 1
      %v3645 = vrot.slane %v3613, 1
      %v3646 = vrot.slane %v3614, 1
      %v3647 = vrot.slane %v3615, 1
      %v3648 = vrot.slane %v3616, 1
      %v3665 = vadd.f32 %v3585, %v3633
      %v3666 = vadd.f32 %v3586, %v3634
      %v3667 = vadd.f32 %v3587, %v3635
      %v3668 = vadd.f32 %v3588, %v3636
      %v3669 = vadd.f32 %v3589, %v3637
      %v3670 = vadd.f32 %v3590, %v3638
      %v3671 = vadd.f32 %v3591, %v3639
      %v3672 = vadd.f32 %v3592, %v3640
      %v3673 = vadd.f32 %v3593, %v3641
      %v3674 = vadd.f32 %v3594, %v3642
      %v3675 = vadd.f32 %v3595, %v3643
      %v3676 = vadd.f32 %v3596, %v3644
      %v3677 = vadd.f32 %v3597, %v3645
      %v3678 = vadd.f32 %v3598, %v3646
      %v3679 = vadd.f32 %v3599, %v3647
      %v3680 = vadd.f32 %v3600, %v3648
      %v3697 = vrot.slane %v3666, 7
      %v3698 = vsel %vm2963, %v3697, %v3665
      %v3699 = vrot.slane %v3667, 6
      %v3700 = vsel %vm2966, %v3699, %v3698
      %v3701 = vrot.slane %v3668, 5
      %v3702 = vsel %vm2969, %v3701, %v3700
      %v3703 = vrot.slane %v3669, 4
      %v3704 = vsel %vm2972, %v3703, %v3702
      %v3705 = vrot.slane %v3670, 3
      %v3706 = vsel %vm2975, %v3705, %v3704
      %v3707 = vrot.slane %v3671, 2
      %v3708 = vrot.slane %v3672, 1
      %v3709 = vsel %vm2957, %v3708, %v3707
      %v3710 = vsel %vm2960, %v3673, %v3709
      %v3711 = vrot.slane %v3674, 7
      %v3712 = vsel %vm2963, %v3711, %v3710
      %v3713 = vrot.slane %v3675, 6
      %v3714 = vsel %vm2966, %v3713, %v3712
      %v3715 = vrot.slane %v3676, 5
      %v3716 = vsel %vm2969, %v3715, %v3714
      %v3717 = vrot.slane %v3677, 4
      %v3718 = vsel %vm2972, %v3717, %v3716
      %v3719 = vrot.slane %v3678, 3
      %v3720 = vsel %vm2975, %v3719, %v3718
      %v3721 = vrot.slane %v3679, 2
      %v3722 = vrot.slane %v3680, 1
      %v3723 = vsel %vm2957, %v3722, %v3721
      %s3727 = scalar_lea.vmem [#allocation2], 80
      %3728 = vst.msk [vmem:[%s3727 - $0x2] sm:$0xfc] %vm3139, %v3706
      %3729 = vst.msk [vmem:[%s3727 + $0x6] sm:$0xff] %vm2993, %v3720
      %3730 = vst.msk [vmem:[%s3727 + $0xe] sm:$0x3] %vm3142, %v3723
      %v3731 = vmul.f32 %v2909, 0.14285715
      %v3732 = vmul.f32 %v2911, 0.14285715
      %v3733 = vmul.f32 %v2913, 0.14285715
      %v3734 = vmul.f32 %v2915, 0.14285715
      %v3735 = vmul.f32 %v2917, 0.14285715
      %v3736 = vmul.f32 %v2919, 0.14285715
      %v3737 = vmul.f32 %v2921, 0.14285715
      %v3738 = vmul.f32 %v2923, 0.14285715
      %v3739 = vmul.f32 %v2925, 0.14285715
      %v3740 = vmul.f32 %v2927, 0.14285715
      %v3741 = vmul.f32 %v2929, 0.14285715
      %v3742 = vmul.f32 %v2931, 0.14285715
      %v3743 = vmul.f32 %v2933, 0.14285715
      %v3744 = vmul.f32 %v2935, 0.14285715
      %v3745 = vmul.f32 %v2937, 0.14285715
      %v3746 = vmul.f32 %v2939, 0.14285715
      %v3747 = vmul.f32 %v2909, 0.85714287
      %v3748 = vmul.f32 %v2911, 0.85714287
      %v3749 = vmul.f32 %v2913, 0.85714287
      %v3750 = vmul.f32 %v2915, 0.85714287
      %v3751 = vmul.f32 %v2917, 0.85714287
      %v3752 = vmul.f32 %v2919, 0.85714287
      %v3753 = vmul.f32 %v2921, 0.85714287
      %v3754 = vmul.f32 %v2923, 0.85714287
      %v3755 = vmul.f32 %v2925, 0.85714287
      %v3756 = vmul.f32 %v2927, 0.85714287
      %v3757 = vmul.f32 %v2929, 0.85714287
      %v3758 = vmul.f32 %v2931, 0.85714287
      %v3759 = vmul.f32 %v2933, 0.85714287
      %v3760 = vmul.f32 %v2935, 0.85714287
      %v3761 = vmul.f32 %v2937, 0.85714287
      %v3762 = vmul.f32 %v2939, 0.85714287
      %v3779 = vrot.slane %v3747, 1
      %v3780 = vrot.slane %v3748, 1
      %v3781 = vrot.slane %v3749, 1
      %v3782 = vrot.slane %v3750, 1
      %v3783 = vrot.slane %v3751, 1
      %v3784 = vrot.slane %v3752, 1
      %v3785 = vrot.slane %v3753, 1
      %v3786 = vrot.slane %v3754, 1
      %v3787 = vrot.slane %v3755, 1
      %v3788 = vrot.slane %v3756, 1
      %v3789 = vrot.slane %v3757, 1
      %v3790 = vrot.slane %v3758, 1
      %v3791 = vrot.slane %v3759, 1
      %v3792 = vrot.slane %v3760, 1
      %v3793 = vrot.slane %v3761, 1
      %v3794 = vrot.slane %v3762, 1
      %v3811 = vadd.f32 %v3731, %v3779
      %v3812 = vadd.f32 %v3732, %v3780
      %v3813 = vadd.f32 %v3733, %v3781
      %v3814 = vadd.f32 %v3734, %v3782
      %v3815 = vadd.f32 %v3735, %v3783
      %v3816 = vadd.f32 %v3736, %v3784
      %v3817 = vadd.f32 %v3737, %v3785
      %v3818 = vadd.f32 %v3738, %v3786
      %v3819 = vadd.f32 %v3739, %v3787
      %v3820 = vadd.f32 %v3740, %v3788
      %v3821 = vadd.f32 %v3741, %v3789
      %v3822 = vadd.f32 %v3742, %v3790
      %v3823 = vadd.f32 %v3743, %v3791
      %v3824 = vadd.f32 %v3744, %v3792
      %v3825 = vadd.f32 %v3745, %v3793
      %v3826 = vadd.f32 %v3746, %v3794
      %v3843 = vrot.slane %v3812, 7
      %v3844 = vsel %vm2969, %v3843, %v3811
      %v3845 = vrot.slane %v3813, 6
      %v3846 = vsel %vm2972, %v3845, %v3844
      %v3847 = vrot.slane %v3814, 5
      %v3848 = vsel %vm2975, %v3847, %v3846
      %v3849 = vrot.slane %v3815, 4
      %v3850 = vrot.slane %v3816, 3
      %v3851 = vsel %vm2957, %v3850, %v3849
      %v3852 = vrot.slane %v3817, 2
      %v3853 = vsel %vm2960, %v3852, %v3851
      %v3854 = vrot.slane %v3818, 1
      %v3855 = vsel %vm2963, %v3854, %v3853
      %v3856 = vsel %vm2966, %v3819, %v3855
      %v3857 = vrot.slane %v3820, 7
      %v3858 = vsel %vm2969, %v3857, %v3856
      %v3859 = vrot.slane %v3821, 6
      %v3860 = vsel %vm2972, %v3859, %v3858
      %v3861 = vrot.slane %v3822, 5
      %v3862 = vsel %vm2975, %v3861, %v3860
      %v3863 = vrot.slane %v3823, 4
      %v3864 = vrot.slane %v3824, 3
      %v3865 = vsel %vm2957, %v3864, %v3863
      %v3866 = vrot.slane %v3825, 2
      %v3867 = vsel %vm2960, %v3866, %v3865
      %v3868 = vrot.slane %v3826, 1
      %v3869 = vsel %vm2963, %v3868, %v3867
      %s3873 = scalar_lea.vmem [#allocation2], 96
      %3874 = vst.msk [vmem:[%s3873 - $0x4] sm:$0xf0] %vm3287, %v3848
      %3875 = vst.msk [vmem:[%s3873 + $0x4] sm:$0xff] %vm2993, %v3862
      %3876 = vst.msk [vmem:[%s3873 + $0xc] sm:$0xf] %vm3290, %v3869
      %v3893 = vrot.slane %v2911, 7
      %v3894 = vrot.slane %v2913, 6
      %v3895 = vsel %vm2957, %v3894, %v3893
      %v3896 = vrot.slane %v2915, 5
      %v3897 = vsel %vm2960, %v3896, %v3895
      %v3898 = vrot.slane %v2917, 4
      %v3899 = vsel %vm2963, %v3898, %v3897
      %v3900 = vrot.slane %v2919, 3
      %v3901 = vsel %vm2966, %v3900, %v3899
      %v3902 = vrot.slane %v2921, 2
      %v3903 = vsel %vm2969, %v3902, %v3901
      %v3904 = vrot.slane %v2923, 1
      %v3905 = vsel %vm2972, %v3904, %v3903
      %v3906 = vsel %vm2975, %v2925, %v3905
      %v3907 = vrot.slane %v2927, 7
      %v3908 = vrot.slane %v2929, 6
      %v3909 = vsel %vm2957, %v3908, %v3907
      %v3910 = vrot.slane %v2931, 5
      %v3911 = vsel %vm2960, %v3910, %v3909
      %v3912 = vrot.slane %v2933, 4
      %v3913 = vsel %vm2963, %v3912, %v3911
      %v3914 = vrot.slane %v2935, 3
      %v3915 = vsel %vm2966, %v3914, %v3913
      %v3916 = vrot.slane %v2937, 2
      %v3917 = vsel %vm2969, %v3916, %v3915
      %v3918 = vrot.slane %v2939, 1
      %v3919 = vsel %vm2972, %v3918, %v3917
      %s3923 = scalar_lea.vmem [#allocation2], 112
      %vm3924 = vcmask 64519
      %3925 = vst.msk [vmem:[%s3923 - $0x7] sm:$0x80] %vm3924, %v2909
      %3926 = vst.msk [vmem:[%s3923 + $0x1] sm:$0xff] %vm2993, %v3906
      %vm3927 = vcmask 63488
      %3928 = vst.msk [vmem:[%s3923 + $0x9] sm:$0x7f] %vm3927, %v3919
      %v3929 = vld [vmem:[#allocation2] sm:$0xff]
      %v3930 = vld [vmem:[#allocation2 + $0x8] sm:$0xff]
      %v3931 = vld [vmem:[#allocation2 + $0x10] sm:$0xff]
      %v3932 = vld [vmem:[#allocation2 + $0x18] sm:$0xff]
      %v3933 = vld [vmem:[#allocation2 + $0x20] sm:$0xff]
      %v3934 = vld [vmem:[#allocation2 + $0x28] sm:$0xff]
      %v3935 = vld [vmem:[#allocation2 + $0x30] sm:$0xff]
      %v3936 = vld [vmem:[#allocation2 + $0x38] sm:$0xff]
      %v3937 = vld [vmem:[#allocation2 + $0x40] sm:$0xff]
      %v3938 = vld [vmem:[#allocation2 + $0x48] sm:$0xff]
      %v3939 = vld [vmem:[#allocation2 + $0x50] sm:$0xff]
      %v3940 = vld [vmem:[#allocation2 + $0x58] sm:$0xff]
      %v3941 = vld [vmem:[#allocation2 + $0x60] sm:$0xff]
      %v3942 = vld [vmem:[#allocation2 + $0x68] sm:$0xff]
      %v3943 = vld [vmem:[#allocation2 + $0x70] sm:$0xff]
      %v3944 = vld [vmem:[#allocation2 + $0x78] sm:$0xff]
      %v3953 = vrot.slane %v3931, 7
      %v3954 = vsel %vm2957, %v3953, %v3929
      %v3955 = vrot.slane %v3933, 6
      %v3956 = vsel %vm2960, %v3955, %v3954
      %v3957 = vrot.slane %v3935, 5
      %v3958 = vsel %vm2963, %v3957, %v3956
      %v3959 = vrot.slane %v3937, 4
      %v3960 = vsel %vm2966, %v3959, %v3958
      %v3961 = vrot.slane %v3939, 3
      %v3962 = vsel %vm2969, %v3961, %v3960
      %v3963 = vrot.slane %v3941, 2
      %v3964 = vsel %vm2972, %v3963, %v3962
      %v3965 = vrot.slane %v3943, 1
      %v3966 = vsel %vm2975, %v3965, %v3964
      %3968 = vst.msk [vmem:[#allocation3] sm:$0xff] %vm2993, %v3966
      %v3969 = vmul.f32 %v3929, 0.85714287
      %v3970 = vmul.f32 %v3931, 0.85714287
      %v3971 = vmul.f32 %v3933, 0.85714287
      %v3972 = vmul.f32 %v3935, 0.85714287
      %v3973 = vmul.f32 %v3937, 0.85714287
      %v3974 = vmul.f32 %v3939, 0.85714287
      %v3975 = vmul.f32 %v3941, 0.85714287
      %v3976 = vmul.f32 %v3943, 0.85714287
      %v3977 = vmul.f32 %v3929, 0.14285715
      %v3978 = vmul.f32 %v3931, 0.14285715
      %v3979 = vmul.f32 %v3933, 0.14285715
      %v3980 = vmul.f32 %v3935, 0.14285715
      %v3981 = vmul.f32 %v3937, 0.14285715
      %v3982 = vmul.f32 %v3939, 0.14285715
      %v3983 = vmul.f32 %v3941, 0.14285715
      %v3984 = vmul.f32 %v3943, 0.14285715
      %v3993 = vrot.slane %v3977, 1
      %v3994 = vrot.slane %v3978, 1
      %v3995 = vrot.slane %v3979, 1
      %v3996 = vrot.slane %v3980, 1
      %v3997 = vrot.slane %v3981, 1
      %v3998 = vrot.slane %v3982, 1
      %v3999 = vrot.slane %v3983, 1
      %v4000 = vrot.slane %v3984, 1
      %v4009 = vadd.f32 %v3969, %v3993
      %v4010 = vadd.f32 %v3970, %v3994
      %v4011 = vadd.f32 %v3971, %v3995
      %v4012 = vadd.f32 %v3972, %v3996
      %v4013 = vadd.f32 %v3973, %v3997
      %v4014 = vadd.f32 %v3974, %v3998
      %v4015 = vadd.f32 %v3975, %v3999
      %v4016 = vadd.f32 %v3976, %v4000
      %v4025 = vrot.slane %v4010, 7
      %v4026 = vsel %vm2963, %v4025, %v4009
      %v4027 = vrot.slane %v4011, 6
      %v4028 = vsel %vm2966, %v4027, %v4026
      %v4029 = vrot.slane %v4012, 5
      %v4030 = vsel %vm2969, %v4029, %v4028
      %v4031 = vrot.slane %v4013, 4
      %v4032 = vsel %vm2972, %v4031, %v4030
      %v4033 = vrot.slane %v4014, 3
      %v4034 = vsel %vm2975, %v4033, %v4032
      %v4035 = vrot.slane %v4015, 2
      %v4036 = vrot.slane %v4016, 1
      %v4037 = vsel %vm2957, %v4036, %v4035
      %s4040 = scalar_lea.vmem [#allocation3], 8
      %4041 = vst.msk [vmem:[%s4040 - $0x2] sm:$0xfc] %vm3139, %v4034
      %4042 = vst.msk [vmem:[%s4040 + $0x6] sm:$0x3] %vm3142, %v4037
      %v4043 = vmul.f32 %v3929, 0.71428573
      %v4044 = vmul.f32 %v3931, 0.71428573
      %v4045 = vmul.f32 %v3933, 0.71428573
      %v4046 = vmul.f32 %v3935, 0.71428573
      %v4047 = vmul.f32 %v3937, 0.71428573
      %v4048 = vmul.f32 %v3939, 0.71428573
      %v4049 = vmul.f32 %v3941, 0.71428573
      %v4050 = vmul.f32 %v3943, 0.71428573
      %v4051 = vmul.f32 %v3929, 0.2857143
      %v4052 = vmul.f32 %v3931, 0.2857143
      %v4053 = vmul.f32 %v3933, 0.2857143
      %v4054 = vmul.f32 %v3935, 0.2857143
      %v4055 = vmul.f32 %v3937, 0.2857143
      %v4056 = vmul.f32 %v3939, 0.2857143
      %v4057 = vmul.f32 %v3941, 0.2857143
      %v4058 = vmul.f32 %v3943, 0.2857143
      %v4067 = vrot.slane %v4051, 1
      %v4068 = vrot.slane %v4052, 1
      %v4069 = vrot.slane %v4053, 1
      %v4070 = vrot.slane %v4054, 1
      %v4071 = vrot.slane %v4055, 1
      %v4072 = vrot.slane %v4056, 1
      %v4073 = vrot.slane %v4057, 1
      %v4074 = vrot.slane %v4058, 1
      %v4083 = vadd.f32 %v4043, %v4067
      %v4084 = vadd.f32 %v4044, %v4068
      %v4085 = vadd.f32 %v4045, %v4069
      %v4086 = vadd.f32 %v4046, %v4070
      %v4087 = vadd.f32 %v4047, %v4071
      %v4088 = vadd.f32 %v4048, %v4072
      %v4089 = vadd.f32 %v4049, %v4073
      %v4090 = vadd.f32 %v4050, %v4074
      %v4099 = vrot.slane %v4084, 7
      %v4100 = vsel %vm2969, %v4099, %v4083
      %v4101 = vrot.slane %v4085, 6
      %v4102 = vsel %vm2972, %v4101, %v4100
      %v4103 = vrot.slane %v4086, 5
      %v4104 = vsel %vm2975, %v4103, %v4102
      %v4105 = vrot.slane %v4087, 4
      %v4106 = vrot.slane %v4088, 3
      %v4107 = vsel %vm2957, %v4106, %v4105
      %v4108 = vrot.slane %v4089, 2
      %v4109 = vsel %vm2960, %v4108, %v4107
      %v4110 = vrot.slane %v4090, 1
      %v4111 = vsel %vm2963, %v4110, %v4109
      %s4114 = scalar_lea.vmem [#allocation3], 16
      %4115 = vst.msk [vmem:[%s4114 - $0x4] sm:$0xf0] %vm3287, %v4104
      %4116 = vst.msk [vmem:[%s4114 + $0x4] sm:$0xf] %vm3290, %v4111
      %v4117 = vmul.f32 %v3929, 0.5714286
      %v4118 = vmul.f32 %v3931, 0.5714286
      %v4119 = vmul.f32 %v3933, 0.5714286
      %v4120 = vmul.f32 %v3935, 0.5714286
      %v4121 = vmul.f32 %v3937, 0.5714286
      %v4122 = vmul.f32 %v3939, 0.5714286
      %v4123 = vmul.f32 %v3941, 0.5714286
      %v4124 = vmul.f32 %v3943, 0.5714286
      %v4125 = vmul.f32 %v3929, 0.42857143
      %v4126 = vmul.f32 %v3931, 0.42857143
      %v4127 = vmul.f32 %v3933, 0.42857143
      %v4128 = vmul.f32 %v3935, 0.42857143
      %v4129 = vmul.f32 %v3937, 0.42857143
      %v4130 = vmul.f32 %v3939, 0.42857143
      %v4131 = vmul.f32 %v3941, 0.42857143
      %v4132 = vmul.f32 %v3943, 0.42857143
      %v4141 = vrot.slane %v4125, 1
      %v4142 = vrot.slane %v4126, 1
      %v4143 = vrot.slane %v4127, 1
      %v4144 = vrot.slane %v4128, 1
      %v4145 = vrot.slane %v4129, 1
      %v4146 = vrot.slane %v4130, 1
      %v4147 = vrot.slane %v4131, 1
      %v4148 = vrot.slane %v4132, 1
      %v4157 = vadd.f32 %v4117, %v4141
      %v4158 = vadd.f32 %v4118, %v4142
      %v4159 = vadd.f32 %v4119, %v4143
      %v4160 = vadd.f32 %v4120, %v4144
      %v4161 = vadd.f32 %v4121, %v4145
      %v4162 = vadd.f32 %v4122, %v4146
      %v4163 = vadd.f32 %v4123, %v4147
      %v4164 = vadd.f32 %v4124, %v4148
      %v4173 = vrot.slane %v4158, 7
      %v4174 = vsel %vm2975, %v4173, %v4157
      %v4175 = vrot.slane %v4159, 6
      %v4176 = vrot.slane %v4160, 5
      %v4177 = vsel %vm2957, %v4176, %v4175
      %v4178 = vrot.slane %v4161, 4
      %v4179 = vsel %vm2960, %v4178, %v4177
      %v4180 = vrot.slane %v4162, 3
      %v4181 = vsel %vm2963, %v4180, %v4179
      %v4182 = vrot.slane %v4163, 2
      %v4183 = vsel %vm2966, %v4182, %v4181
      %v4184 = vrot.slane %v4164, 1
      %v4185 = vsel %vm2969, %v4184, %v4183
      %s4188 = scalar_lea.vmem [#allocation3], 24
      %4189 = vst.msk [vmem:[%s4188 - $0x6] sm:$0xc0] %vm3435, %v4174
      %4190 = vst.msk [vmem:[%s4188 + $0x2] sm:$0x3f] %vm3438, %v4185
      %v4191 = vmul.f32 %v3930, 0.42857143
      %v4192 = vmul.f32 %v3932, 0.42857143
      %v4193 = vmul.f32 %v3934, 0.42857143
      %v4194 = vmul.f32 %v3936, 0.42857143
      %v4195 = vmul.f32 %v3938, 0.42857143
      %v4196 = vmul.f32 %v3940, 0.42857143
      %v4197 = vmul.f32 %v3942, 0.42857143
      %v4198 = vmul.f32 %v3944, 0.42857143
      %v4199 = vmul.f32 %v3930, 0.5714286
      %v4200 = vmul.f32 %v3932, 0.5714286
      %v4201 = vmul.f32 %v3934, 0.5714286
      %v4202 = vmul.f32 %v3936, 0.5714286
      %v4203 = vmul.f32 %v3938, 0.5714286
      %v4204 = vmul.f32 %v3940, 0.5714286
      %v4205 = vmul.f32 %v3942, 0.5714286
      %v4206 = vmul.f32 %v3944, 0.5714286
      %v4215 = vrot.slane %v4199, 1
      %v4216 = vrot.slane %v4200, 1
      %v4217 = vrot.slane %v4201, 1
      %v4218 = vrot.slane %v4202, 1
      %v4219 = vrot.slane %v4203, 1
      %v4220 = vrot.slane %v4204, 1
      %v4221 = vrot.slane %v4205, 1
      %v4222 = vrot.slane %v4206, 1
      %v4231 = vadd.f32 %v4191, %v4215
      %v4232 = vadd.f32 %v4192, %v4216
      %v4233 = vadd.f32 %v4193, %v4217
      %v4234 = vadd.f32 %v4194, %v4218
      %v4235 = vadd.f32 %v4195, %v4219
      %v4236 = vadd.f32 %v4196, %v4220
      %v4237 = vadd.f32 %v4197, %v4221
      %v4238 = vadd.f32 %v4198, %v4222
      %v4247 = vrot.slane %v4232, 7
      %v4248 = vsel %vm2957, %v4247, %v4231
      %v4249 = vrot.slane %v4233, 6
      %v4250 = vsel %vm2960, %v4249, %v4248
      %v4251 = vrot.slane %v4234, 5
      %v4252 = vsel %vm2963, %v4251, %v4250
      %v4253 = vrot.slane %v4235, 4
      %v4254 = vsel %vm2966, %v4253, %v4252
      %v4255 = vrot.slane %v4236, 3
      %v4256 = vsel %vm2969, %v4255, %v4254
      %v4257 = vrot.slane %v4237, 2
      %v4258 = vsel %vm2972, %v4257, %v4256
      %v4259 = vrot.slane %v4238, 1
      %v4260 = vsel %vm2975, %v4259, %v4258
      %s4262 = scalar_lea.vmem [#allocation3], 32
      %4263 = vst.msk [vmem:[%s4262] sm:$0xff] %vm2993, %v4260
      %v4264 = vmul.f32 %v3930, 0.2857143
      %v4265 = vmul.f32 %v3932, 0.2857143
      %v4266 = vmul.f32 %v3934, 0.2857143
      %v4267 = vmul.f32 %v3936, 0.2857143
      %v4268 = vmul.f32 %v3938, 0.2857143
      %v4269 = vmul.f32 %v3940, 0.2857143
      %v4270 = vmul.f32 %v3942, 0.2857143
      %v4271 = vmul.f32 %v3944, 0.2857143
      %v4272 = vmul.f32 %v3930, 0.71428573
      %v4273 = vmul.f32 %v3932, 0.71428573
      %v4274 = vmul.f32 %v3934, 0.71428573
      %v4275 = vmul.f32 %v3936, 0.71428573
      %v4276 = vmul.f32 %v3938, 0.71428573
      %v4277 = vmul.f32 %v3940, 0.71428573
      %v4278 = vmul.f32 %v3942, 0.71428573
      %v4279 = vmul.f32 %v3944, 0.71428573
      %v4288 = vrot.slane %v4272, 1
      %v4289 = vrot.slane %v4273, 1
      %v4290 = vrot.slane %v4274, 1
      %v4291 = vrot.slane %v4275, 1
      %v4292 = vrot.slane %v4276, 1
      %v4293 = vrot.slane %v4277, 1
      %v4294 = vrot.slane %v4278, 1
      %v4295 = vrot.slane %v4279, 1
      %v4304 = vadd.f32 %v4264, %v4288
      %v4305 = vadd.f32 %v4265, %v4289
      %v4306 = vadd.f32 %v4266, %v4290
      %v4307 = vadd.f32 %v4267, %v4291
      %v4308 = vadd.f32 %v4268, %v4292
      %v4309 = vadd.f32 %v4269, %v4293
      %v4310 = vadd.f32 %v4270, %v4294
      %v4311 = vadd.f32 %v4271, %v4295
      %v4320 = vrot.slane %v4305, 7
      %v4321 = vsel %vm2963, %v4320, %v4304
      %v4322 = vrot.slane %v4306, 6
      %v4323 = vsel %vm2966, %v4322, %v4321
      %v4324 = vrot.slane %v4307, 5
      %v4325 = vsel %vm2969, %v4324, %v4323
      %v4326 = vrot.slane %v4308, 4
      %v4327 = vsel %vm2972, %v4326, %v4325
      %v4328 = vrot.slane %v4309, 3
      %v4329 = vsel %vm2975, %v4328, %v4327
      %v4330 = vrot.slane %v4310, 2
      %v4331 = vrot.slane %v4311, 1
      %v4332 = vsel %vm2957, %v4331, %v4330
      %s4335 = scalar_lea.vmem [#allocation3], 40
      %4336 = vst.msk [vmem:[%s4335 - $0x2] sm:$0xfc] %vm3139, %v4329
      %4337 = vst.msk [vmem:[%s4335 + $0x6] sm:$0x3] %vm3142, %v4332
      %v4338 = vmul.f32 %v3930, 0.14285715
      %v4339 = vmul.f32 %v3932, 0.14285715
      %v4340 = vmul.f32 %v3934, 0.14285715
      %v4341 = vmul.f32 %v3936, 0.14285715
      %v4342 = vmul.f32 %v3938, 0.14285715
      %v4343 = vmul.f32 %v3940, 0.14285715
      %v4344 = vmul.f32 %v3942, 0.14285715
      %v4345 = vmul.f32 %v3944, 0.14285715
      %v4346 = vmul.f32 %v3930, 0.85714287
      %v4347 = vmul.f32 %v3932, 0.85714287
      %v4348 = vmul.f32 %v3934, 0.85714287
      %v4349 = vmul.f32 %v3936, 0.85714287
      %v4350 = vmul.f32 %v3938, 0.85714287
      %v4351 = vmul.f32 %v3940, 0.85714287
      %v4352 = vmul.f32 %v3942, 0.85714287
      %v4353 = vmul.f32 %v3944, 0.85714287
      %v4362 = vrot.slane %v4346, 1
      %v4363 = vrot.slane %v4347, 1
      %v4364 = vrot.slane %v4348, 1
      %v4365 = vrot.slane %v4349, 1
      %v4366 = vrot.slane %v4350, 1
      %v4367 = vrot.slane %v4351, 1
      %v4368 = vrot.slane %v4352, 1
      %v4369 = vrot.slane %v4353, 1
      %v4378 = vadd.f32 %v4338, %v4362
      %v4379 = vadd.f32 %v4339, %v4363
      %v4380 = vadd.f32 %v4340, %v4364
      %v4381 = vadd.f32 %v4341, %v4365
      %v4382 = vadd.f32 %v4342, %v4366
      %v4383 = vadd.f32 %v4343, %v4367
      %v4384 = vadd.f32 %v4344, %v4368
      %v4385 = vadd.f32 %v4345, %v4369
      %v4394 = vrot.slane %v4379, 7
      %v4395 = vsel %vm2969, %v4394, %v4378
      %v4396 = vrot.slane %v4380, 6
      %v4397 = vsel %vm2972, %v4396, %v4395
      %v4398 = vrot.slane %v4381, 5
      %v4399 = vsel %vm2975, %v4398, %v4397
      %v4400 = vrot.slane %v4382, 4
      %v4401 = vrot.slane %v4383, 3
      %v4402 = vsel %vm2957, %v4401, %v4400
      %v4403 = vrot.slane %v4384, 2
      %v4404 = vsel %vm2960, %v4403, %v4402
      %v4405 = vrot.slane %v4385, 1
      %v4406 = vsel %vm2963, %v4405, %v4404
      %s4409 = scalar_lea.vmem [#allocation3], 48
      %4410 = vst.msk [vmem:[%s4409 - $0x4] sm:$0xf0] %vm3287, %v4399
      %4411 = vst.msk [vmem:[%s4409 + $0x4] sm:$0xf] %vm3290, %v4406
      %v4420 = vrot.slane %v3932, 7
      %v4421 = vrot.slane %v3934, 6
      %v4422 = vsel %vm2957, %v4421, %v4420
      %v4423 = vrot.slane %v3936, 5
      %v4424 = vsel %vm2960, %v4423, %v4422
      %v4425 = vrot.slane %v3938, 4
      %v4426 = vsel %vm2963, %v4425, %v4424
      %v4427 = vrot.slane %v3940, 3
      %v4428 = vsel %vm2966, %v4427, %v4426
      %v4429 = vrot.slane %v3942, 2
      %v4430 = vsel %vm2969, %v4429, %v4428
      %v4431 = vrot.slane %v3944, 1
      %v4432 = vsel %vm2972, %v4431, %v4430
      %s4435 = scalar_lea.vmem [#allocation3], 56
      %4436 = vst.msk [vmem:[%s4435 - $0x7] sm:$0x80] %vm3924, %v3930
      %4437 = vst.msk [vmem:[%s4435 + $0x1] sm:$0x7f] %vm3927, %v4432
      %v4438 = vld [vmem:[#allocation3] sm:$0xff]
      %v4439 = vld [vmem:[#allocation3 + $0x8] sm:$0xff]
      %v4440 = vld [vmem:[#allocation3 + $0x10] sm:$0xff]
      %v4441 = vld [vmem:[#allocation3 + $0x18] sm:$0xff]
      %v4442 = vld [vmem:[#allocation3 + $0x20] sm:$0xff]
      %v4443 = vld [vmem:[#allocation3 + $0x28] sm:$0xff]
      %v4444 = vld [vmem:[#allocation3 + $0x30] sm:$0xff]
      %v4445 = vld [vmem:[#allocation3 + $0x38] sm:$0xff]
      %4446 = vxpose.xlu0.b32.start [1/16] %v4438, 128
      %4447 = vxpose.xlu0.b32.cont [2/16] %v4439, 128
      %4448 = vxpose.xlu0.b32.cont [3/16] %v4440, 128
      %4449 = vxpose.xlu0.b32.cont [4/16] %v4441, 128
      %4450 = vxpose.xlu0.b32.cont [5/16] %v4442, 128
      %4451 = vxpose.xlu0.b32.cont [6/16] %v4443, 128
      %4452 = vxpose.xlu0.b32.cont [7/16] %v4444, 128
      %4453 = vxpose.xlu0.b32.cont [8/16] %v4445, 128
      %4454 = vxpose.xlu0.b32.cont [9/16] 0.0, 128
      %4455 = vxpose.xlu0.b32.cont [10/16] 0.0, 128
      %4456 = vxpose.xlu0.b32.cont [11/16] 0.0, 128
      %4457 = vxpose.xlu0.b32.cont [12/16] 0.0, 128
      %4458 = vxpose.xlu0.b32.cont [13/16] 0.0, 128
      %4459 = vxpose.xlu0.b32.cont [14/16] 0.0, 128
      %4460 = vxpose.xlu0.b32.cont [15/16] 0.0, 128
      %4461 = vxpose.xlu0.b32.end [16/16] 0.0, 128
      %v4462 = vpop.trf.xlu0
      %v4463 = vpop.trf.xlu0
      %v4464 = vpop.trf.xlu0
      %v4465 = vpop.trf.xlu0
      %v4466 = vpop.trf.xlu0
      %v4467 = vpop.trf.xlu0
      %v4468 = vpop.trf.xlu0
      %v4469 = vpop.trf.xlu0
      %v4470 = vpop.trf.xlu0
      %v4471 = vpop.trf.xlu0
      %v4472 = vpop.trf.xlu0
      %v4473 = vpop.trf.xlu0
      %v4474 = vpop.trf.xlu0
      %v4475 = vpop.trf.xlu0
      %v4476 = vpop.trf.xlu0
      %v4477 = vpop.trf.xlu0
      %s4478 = sld [smem:[#allocation4]]
      %vm4479 = vcmp.ge.f32.partialorder %v4462, 0.0
      %v4480 = vstv %s4478
      %v4481 = vmul.f32 %v4480, %v4462
      %v4482 = vsel %vm4479, %v4462, %v4481
      %vm4483 = vcmask 523264
      %v4484 = vsel %vm4483, %v4482, 0.0
      %v4485 = vrot.slane %v4484, 4
      %v4486 = vadd.f32 %v4484, %v4485
      %v4487 = vrot.slane %v4486, 2
      %v4488 = vadd.f32 %v4486, %v4487
      %v4489 = vrot.slane %v4488, 1
      %v4490 = vadd.f32 %v4488, %v4489
      %v4491 = vrcp.pop 8.0
      %v4492 = vmul.f32 %v4490, %v4491
      %v4493 = vsub.f32 %v4482, %v4492
      %v4494 = vmul.f32 %v4493, %v4493
      %v4495 = vsel %vm4483, %v4494, 0.0
      %v4496 = vrot.slane %v4495, 4
      %v4497 = vadd.f32 %v4495, %v4496
      %v4498 = vrot.slane %v4497, 2
      %v4499 = vadd.f32 %v4497, %v4498
      %v4500 = vrot.slane %v4499, 1
      %v4501 = vadd.f32 %v4499, %v4500
      %v4502 = vmul.f32 %v4501, %v4491
      %v4503 = vadd.f32 %v4502, 1e-06
      %v4504 = vrsqrt.pop %v4503
      %v4505 = vmul.f32 %v4493, %v4504
      %v4506 = vld [vmem:[%s3] sm:$0xff]
      %4508 = vset.pattern.permute.xlu0 0
      %4509 = vperm.xlu0 %4508, %v4506
      %v4510 = vpop.permute.xlu0 %4509
      %v4512 = vmul.f32 %v4510, %v4505
      %v4513 = vld [vmem:[%s4] sm:$0xff]
      %4515 = vset.pattern.permute.xlu0 0
      %4516 = vperm.xlu0 %4515, %v4513
      %v4517 = vpop.permute.xlu0 %4516
      %v4519 = vadd.f32 %v4512, %v4517
      %4520 = vst.msk [vmem:[%s223] sm:$0xff] %vm4483, %v4519
      %p4521 = scmp.lt.s32.totalorder %s17, 1
      %s4522 = scalar_select %p4521, %s17, 1
      %s4523 = smul.addr %s4522, 8
      %s4524 = scalar_lea.vmem %s5, %s4523
      // Predicated region
      $region41: #{norm_downsample.1} parent=39 // pred_check
        %p4525 = pneg %p145
      $region42: #{norm_downsample.1} parent=39 // pred_check_branch
        %4527 = sbr.rel (%p4525) target = $region44
      $region43: #{norm_downsample.1} parent=39 // pred_region
        _
      $region44: #{norm_downsample.1} parent=39 // pred_fallthru
        _
    $region40: #{norm_downsample.1} parent=5 // pred_fallthru
      _
    %p4528 = scmp.le.s32.totalorder 2, %s12
    // Predicated region
    $region45: #{norm_downsample.1} parent=5 // pred_check
      %p4529 = pneg %p4528
    $region46: #{norm_downsample.1} parent=5 // pred_check_branch
      %4531 = sbr.rel (%p4529) target = $region48
    $region47: #{norm_downsample.1} parent=5 // pred_region
      %s4532 = ssub.s32 %s12, 2
      // Predicated region
      $region49: #{norm_downsample.1} parent=47 // pred_check
        %p4533 = pneg %p151
      $region50: #{norm_downsample.1} parent=47 // pred_check_branch
        %4535 = sbr.rel (%p4533) target = $region52
      $region51: #{norm_downsample.1} parent=47 // pred_region
        %p4536 = scmp.lt.s32.totalorder %s18, 1
        %s4537 = scalar_select %p4536, %s18, 1
        %s4538 = smul.addr %s4537, 8
        %s4539 = scalar_lea.vmem %s5, %s4538
      $region52: #{norm_downsample.1} parent=47 // pred_fallthru
        _
    $region48: #{norm_downsample.1} parent=5 // pred_fallthru
      _
  $region6: #{norm_downsample.1} parent=0 // loop_footer
    %s16 = sadd.s32 1, %s12
  $region7: #{norm_downsample.1} parent=0 // loop_footer_branch
    %11 = sbr.rel target = $region3
  $region8: #{norm_downsample.1} parent=0 // loop_exit
    _

</llo_original>
